<compile_context>
chip_gen: v7x
topology: tpu7x:2x2x1
jax: 0.10.0
libtpu: 0.0.40
codegen_flags: <defaults>
</compile_context>

<pallas_src>
import functools
import math

import jax
import jax.numpy as jnp
from jax.experimental import pallas as pl
from jax.experimental.pallas import tpu as pltpu


# ----------------------------------------------------------------------------
# Fused Pallas kernel
# ----------------------------------------------------------------------------
def _ptl_kernel(
    x_ref, xg_ref, rel_ref,
    wq_ref, wkv_ref,
    wp1_ref, bp1_ref, wp2_ref, bp2_ref,
    wa1_ref, ba1_ref, wa2_ref, ba2_ref,
    out_ref, *, TM, K, D, elem_dtype,
):
    f32 = jnp.float32
    bf16 = jnp.bfloat16
    ed = elem_dtype

    x = x_ref[...]                           # (TM, D)     bf16
    xg = xg_ref[...]                         # (TM*K, D)   bf16

    # q projection (MXU, bf16 in / f32 accumulate).
    q = jnp.dot(x, wq_ref[...], preferred_element_type=f32)            # (TM, D)

    # Fused k|v projection: one matmul on the big operand, 2D lanes out,
    # then static lane slices to split.
    kv = jnp.dot(xg, wkv_ref[...], preferred_element_type=f32)         # (TM*K, 2D)
    k = kv[:, :D]
    v = kv[:, D:]

    # pos_mlp layer 1 as a single MXU matmul (contraction padded 3 -> 4).
    # The MXU has huge slack at these shapes, so this removes real VPU work.
    rel = rel_ref[...]                       # (TM*K, 4)   bf16
    h = jnp.dot(rel, wp1_ref[...], preferred_element_type=f32) + bp1_ref[...]
    h = jnp.maximum(h, 0.0)                  # (TM*K, H)   f32
    pe = jnp.dot(h.astype(bf16), wp2_ref[...],
                 preferred_element_type=f32) + bp2_ref[...]             # (TM*K, D)

    # (rows, D) -> (TM, K, D): D stays on the lane axis, so these are free.
    k3 = k.reshape(TM, K, D).astype(ed)
    v3 = v.reshape(TM, K, D).astype(ed)
    pe3 = pe.reshape(TM, K, D).astype(ed)

    # attn_mlp on (q - k + pos_enc); elementwise chain in `ed`
    # (bf16 on v6e/v7x, f32 on parts without a bf16 VPU/EUP).
    ai = q.astype(ed)[:, None, :] - k3 + pe3                            # (TM, K, D)
    h2 = jnp.dot(ai.reshape(TM * K, D).astype(bf16), wa1_ref[...],
                 preferred_element_type=f32) + ba1_ref[...]             # (TM*K, D*mult)
    h2 = jnp.maximum(h2, 0.0)
    # Wa2 / ba2 were pre-scaled by 1/sqrt(D) in the wrapper.
    logits = (jnp.dot(h2.astype(bf16), wa2_ref[...],
                      preferred_element_type=f32)
              + ba2_ref[...]).reshape(TM, K, D)                         # f32

    # Softmax over the neighbor axis: reductions in f32, bulky elementwise in
    # `ed`.  Normalization deferred: one approx reciprocal on (TM, D) (EUP).
    m = jnp.max(logits, axis=1, keepdims=True)                          # f32
    e = jnp.exp((logits - m).astype(ed))                                # (TM, K, D)
    num = jnp.sum(e * (v3 + pe3), axis=1, dtype=f32)                    # (TM, D)
    den = jnp.sum(e, axis=1, dtype=f32)                                 # (TM, D)
    out_ref[...] = (num * pl.reciprocal(den, approx=True)).astype(out_ref.dtype)


# ----------------------------------------------------------------------------
# JAX glue (kNN + gather), matching the PyTorch helpers semantically
# ----------------------------------------------------------------------------
def index_points_jax(points, idx):
    # points: (B, M, C), idx: (B, N, K) -> (B, N, K, C)
    B, N, K = idx.shape
    flat = idx.reshape(B, N * K)
    gathered = jnp.take_along_axis(points, flat[..., None], axis=1)
    return gathered.reshape(B, N, K, points.shape[-1])


def knn_jax(query, dataset, k):
    # query: (B, N, 3), dataset: (B, M, 3) -> (B, N, k) indices
    dists = jnp.sum((query[:, :, None, :] - dataset[:, None, :, :]) ** 2, axis=-1)
    return jnp.argsort(dists, axis=-1)[:, :, :k]


def _round_up(a, b):
    return (a + b - 1) // b * b


# ----------------------------------------------------------------------------
# Wrapper
# ----------------------------------------------------------------------------
def point_transformer_layer_pallas(x, pos, params, num_neighbors, *,
                                   tm=256, out_dtype=jnp.bfloat16):
    """x: (B, N, D), pos: (B, N, 3) -> (B, N, D).  (x2/pos2 = None case)"""
    B, N, D = x.shape
    K = num_neighbors
    BN = B * N

    # --- device-aware tiling -------------------------------------------------
    kind = jax.devices()[0].device_kind.lower()
    # v4 (megacore) and v7x expose 2 TensorCores; the "parallel" grid axis is
    # sharded across them, so give them an even grid with >= 2 steps.
    num_tc = 2 if ("v7" in kind or "v4" in kind) else 1
    # bf16 VPU/EUP exists on v6e/v7x; keep the elementwise chain f32 elsewhere.
    elem_dtype = jnp.bfloat16 if ("v6" in kind or "v7" in kind) else jnp.float32

    # Tile size: big tiles amortize the ~0.35us/step overhead; capped at 512 so
    # double-buffered inputs + intermediates stay well inside a 32 MiB scoped
    # VMEM budget (safe on 64-MiB-VMEM v7x).  Single-TC parts may run tiny
    # inputs as a single grid step (no pointless pipeline overhead).
    tm = max(16, min(tm, 512, _round_up(BN, 16)))
    if num_tc > 1:
        tm = min(tm, max(16, _round_up(pl.cdiv(BN, 2 * num_tc), 16)))
    tm = _round_up(tm, 16)
    BN_pad = _round_up(BN, tm * num_tc)   # grid length is a multiple of num_tc

    # --- kNN + gather glue (plain JAX) ---------------------------------------
    # TODO(synk): kNN argsort and the neighbor gather are data-dependent
    # sort/gather ops kept in plain JAX; a scalar-prefetched idx (SMEM) plus an
    # in-kernel DMA gather from x held at memory_space=pl.ANY would remove the
    # K-duplicated x_g HBM round-trip entirely at large scale.
    idx = knn_jax(pos, pos, K)
    knn_xyz = index_points_jax(pos, idx)                   # (B, N, K, 3)
    x_g = index_points_jax(x, idx)                         # (B, N, K, D) raw x; k/v projected in-kernel
    rel = pos[:, :, None, :] - knn_xyz                     # (B, N, K, 3)

    xf = x.reshape(BN, D)
    xg = x_g.reshape(BN, K, D)
    # Relative positions: coord dim padded 3 -> 4 (16-B rows) and carried in
    # bf16 (they only feed a tiny matmul), halving this stream's bytes.
    rel4 = jnp.pad(rel.reshape(BN, K, 3), ((0, 0), (0, 0), (0, 1)))

    pad = BN_pad - BN
    if pad:
        xf = jnp.pad(xf, ((0, pad), (0, 0)))
        xg = jnp.pad(xg, ((0, pad), (0, 0), (0, 0)))
        rel4 = jnp.pad(rel4, ((0, pad), (0, 0), (0, 0)))

    bf16, f32 = jnp.bfloat16, jnp.float32
    x_bf = xf.astype(bf16)                                 # (BN_pad, D)
    xg_bf = xg.reshape(BN_pad * K, D).astype(bf16)         # (BN_pad*K, D)
    rel_bf = rel4.reshape(BN_pad * K, 4).astype(bf16)      # (BN_pad*K, 4)

    # --- weight prep (PyTorch Linear layout (out, in) -> transpose) ----------
    scale = 1.0 / math.sqrt(D)
    wq = params["Wq"].T.astype(bf16)                                         # (D, D)
    wkv = jnp.concatenate([params["Wk"].T, params["Wv"].T], axis=1).astype(bf16)  # (D, 2D)
    wp1 = jnp.pad(params["Wp1"].T, ((0, 1), (0, 0))).astype(bf16)            # (4, H)
    bp1 = params["bp1"].reshape(1, -1).astype(f32)                           # (1, H)
    wp2 = params["Wp2"].T.astype(bf16)                                       # (H, D)
    bp2 = params["bp2"].reshape(1, -1).astype(f32)                           # (1, D)
    wa1 = params["Wa1"].T.astype(bf16)                                       # (D, D*mult)
    ba1 = params["ba1"].reshape(1, -1).astype(f32)                           # (1, D*mult)
    wa2 = (params["Wa2"].T * scale).astype(bf16)                             # (D*mult, D), 1/sqrt(D) folded in
    ba2 = (params["ba2"] * scale).reshape(1, -1).astype(f32)                 # (1, D)

    def const_spec(a):
        # Constant index_map -> block stays VMEM-resident across grid steps.
        # (pipeline_mode=pl.Buffered(1) would drop the second buffer for these
        # never-changing blocks; skipped here — negligible at these sizes.)
        return pl.BlockSpec(a.shape, lambda i, _nd=a.ndim: (0,) * _nd)

    kernel = functools.partial(_ptl_kernel, TM=tm, K=K, D=D, elem_dtype=elem_dtype)

    out = pl.pallas_call(
        kernel,
        out_shape=jax.ShapeDtypeStruct((BN_pad, D), out_dtype),
        grid=(BN_pad // tm,),
        in_specs=[
            pl.BlockSpec((tm, D), lambda i: (i, 0)),          # x
            pl.BlockSpec((tm * K, D), lambda i: (i, 0)),      # gathered x (raw)
            pl.BlockSpec((tm * K, 4), lambda i: (i, 0)),      # relative positions
            const_spec(wq), const_spec(wkv),
            const_spec(wp1), const_spec(bp1), const_spec(wp2), const_spec(bp2),
            const_spec(wa1), const_spec(ba1), const_spec(wa2), const_spec(ba2),
        ],
        out_specs=pl.BlockSpec((tm, D), lambda i: (i, 0)),
        compiler_params=pltpu.CompilerParams(
            dimension_semantics=("parallel",),
            # <= ~48 MiB keeps v7x (64 MiB physical VMEM) safe; 32 MiB is
            # plenty for tm <= 512 at these feature sizes.
            vmem_limit_bytes=32 * 1024 * 1024,
        ),
    )(x_bf, xg_bf, rel_bf,
      wq, wkv, wp1, bp1, wp2, bp2, wa1, ba1, wa2, ba2)

    return out[:BN].reshape(B, N, D)


# ----------------------------------------------------------------------------
# Pure-JAX reference (mirrors the PyTorch forward, f32 HIGHEST precision)
# ----------------------------------------------------------------------------
def reference_forward(x, pos, params, num_neighbors):
    B, N, D = x.shape
    hi = jax.lax.Precision.HIGHEST
    idx = knn_jax(pos, pos, num_neighbors)
    knn_xyz = index_points_jax(pos, idx)

    q = jnp.einsum("bnd,ed->bne", x, params["Wq"], precision=hi)
    k = index_points_jax(jnp.einsum("bmd,ed->bme", x, params["Wk"], precision=hi), idx)
    v = index_points_jax(jnp.einsum("bmd,ed->bme", x, params["Wv"], precision=hi), idx)

    rel = pos[:, :, None, :] - knn_xyz
    pe = jnp.maximum(
        jnp.einsum("bnkc,hc->bnkh", rel, params["Wp1"], precision=hi) + params["bp1"], 0.0)
    pe = jnp.einsum("bnkh,dh->bnkd", pe, params["Wp2"], precision=hi) + params["bp2"]

    ai = q[:, :, None, :] - k + pe
    h = jnp.maximum(
        jnp.einsum("bnkd,ed->bnke", ai, params["Wa1"], precision=hi) + params["ba1"], 0.0)
    logits = jnp.einsum("bnke,de->bnkd", h, params["Wa2"], precision=hi) + params["ba2"]
    attn = jax.nn.softmax(logits / math.sqrt(D), axis=-2)
    return jnp.sum(attn * (v + pe), axis=-2)


# ----------------------------------------------------------------------------
# Main
# ----------------------------------------------------------------------------
if __name__ == "__main__":
    B, N, D = 2, 16, 32          # batch, points, feature dim
    H = 32                       # pos_mlp_hidden_dim
    MULT = 2                     # attn_mlp_hidden_mult
    KNN = 8                      # num_neighbors

    key = jax.random.PRNGKey(0)
    ks = jax.random.split(key, 16)

    x = jax.random.normal(ks[0], (B, N, D), jnp.float32)
    pos = jax.random.normal(ks[1], (B, N, 3), jnp.float32)

    # Deterministic parameter init (PyTorch Linear weight layout: (out, in)).
    params = {
        "Wq": 0.1 * jax.random.normal(ks[2], (D, D), jnp.float32),
        "Wk": 0.1 * jax.random.normal(ks[3], (D, D), jnp.float32),
        "Wv": 0.1 * jax.random.normal(ks[4], (D, D), jnp.float32),
        "Wp1": 0.1 * jax.random.normal(ks[5], (H, 3), jnp.float32),
        "bp1": 0.1 * jax.random.normal(ks[6], (H,), jnp.float32),
        "Wp2": 0.1 * jax.random.normal(ks[7], (D, H), jnp.float32),
        "bp2": 0.1 * jax.random.normal(ks[8], (D,), jnp.float32),
        "Wa1": 0.1 * jax.random.normal(ks[9], (D * MULT, D), jnp.float32),
        "ba1": 0.1 * jax.random.normal(ks[10], (D * MULT,), jnp.float32),
        "Wa2": 0.1 * jax.random.normal(ks[11], (D, D * MULT), jnp.float32),
        "ba2": 0.1 * jax.random.normal(ks[12], (D,), jnp.float32),
    }

    out = point_transformer_layer_pallas(x, pos, params, KNN)
    out = jax.block_until_ready(out)

    ref = jax.block_until_ready(reference_forward(x, pos, params, KNN))
    assert out.shape == (B, N, D)
    # bf16 MXU inputs / bf16 output (f32 accumulation & reductions) vs a
    # HIGHEST-precision f32 reference.
    max_err = float(jnp.max(jnp.abs(out.astype(jnp.float32) - ref)))
    assert max_err < 5e-2, f"mismatch vs reference: max abs err {max_err}"

    print("KERNEL_OK")
</pallas_src>

<mosaic_0001>
module attributes {stable_mosaic.version = 11 : i64} {
  func.func @_ptl_kernel(%arg0: i32, %arg1: memref<32x32xbf16, #tpu.memory_space<vmem>>, %arg2: memref<256x32xbf16, #tpu.memory_space<vmem>>, %arg3: memref<256x4xbf16, #tpu.memory_space<vmem>>, %arg4: memref<32x32xbf16, #tpu.memory_space<vmem>>, %arg5: memref<32x64xbf16, #tpu.memory_space<vmem>>, %arg6: memref<4x32xbf16, #tpu.memory_space<vmem>>, %arg7: memref<1x32xf32, #tpu.memory_space<vmem>>, %arg8: memref<32x32xbf16, #tpu.memory_space<vmem>>, %arg9: memref<1x32xf32, #tpu.memory_space<vmem>>, %arg10: memref<32x64xbf16, #tpu.memory_space<vmem>>, %arg11: memref<1x64xf32, #tpu.memory_space<vmem>>, %arg12: memref<64x32xbf16, #tpu.memory_space<vmem>>, %arg13: memref<1x32xf32, #tpu.memory_space<vmem>>, %arg14: memref<32x32xbf16, #tpu.memory_space<vmem>>) attributes {dimension_semantics = [#tpu.dimension_semantics<parallel>], iteration_bounds = array<i64: 1>, scalar_prefetch = 0 : i64, scratch_operands = 0 : i64, tpu.core_type = #tpu.core_type<tc>, window_params = [{transform_indices = @transform_0, window_bounds = array<i64: 32, 32>}, {transform_indices = @transform_1, window_bounds = array<i64: 256, 32>}, {transform_indices = @transform_2, window_bounds = array<i64: 256, 4>}, {pipeline_mode = #tpu.pipeline_mode<synchronous>, transform_indices = @transform_3, window_bounds = array<i64: 32, 32>}, {pipeline_mode = #tpu.pipeline_mode<synchronous>, transform_indices = @transform_4, window_bounds = array<i64: 32, 64>}, {pipeline_mode = #tpu.pipeline_mode<synchronous>, transform_indices = @transform_5, window_bounds = array<i64: 4, 32>}, {pipeline_mode = #tpu.pipeline_mode<synchronous>, transform_indices = @transform_6, window_bounds = array<i64: 1, 32>}, {pipeline_mode = #tpu.pipeline_mode<synchronous>, transform_indices = @transform_7, window_bounds = array<i64: 32, 32>}, {pipeline_mode = #tpu.pipeline_mode<synchronous>, transform_indices = @transform_8, window_bounds = array<i64: 1, 32>}, {pipeline_mode = #tpu.pipeline_mode<synchronous>, transform_indices = @transform_9, window_bounds = array<i64: 32, 64>}, {pipeline_mode = #tpu.pipeline_mode<synchronous>, transform_indices = @transform_10, window_bounds = array<i64: 1, 64>}, {pipeline_mode = #tpu.pipeline_mode<synchronous>, transform_indices = @transform_11, window_bounds = array<i64: 64, 32>}, {pipeline_mode = #tpu.pipeline_mode<synchronous>, transform_indices = @transform_12, window_bounds = array<i64: 1, 32>}, {transform_indices = @transform_13, window_bounds = array<i64: 32, 32>}]} {
    %c0 = arith.constant 0 : index
    %c0_0 = arith.constant 0 : index
    %0 = vector.load %arg1[%c0, %c0_0] : memref<32x32xbf16, #tpu.memory_space<vmem>>, vector<32x32xbf16>
    %c0_1 = arith.constant 0 : index
    %c0_2 = arith.constant 0 : index
    %1 = vector.load %arg2[%c0_1, %c0_2] : memref<256x32xbf16, #tpu.memory_space<vmem>>, vector<256x32xbf16>
    %c0_3 = arith.constant 0 : index
    %c0_4 = arith.constant 0 : index
    %2 = vector.load %arg4[%c0_3, %c0_4] : memref<32x32xbf16, #tpu.memory_space<vmem>>, vector<32x32xbf16>
    %cst = arith.constant dense<0.000000e+00> : vector<32x32xf32>
    %3 = tpu.matmul %0, %2, %cst {dimension_numbers = #tpu.dot_dimension_numbers<[1], [0], [0], [1], [0, 0, 1, 1], [], []>} : vector<32x32xbf16>, vector<32x32xbf16>, vector<32x32xf32> -> vector<32x32xf32>
    %c0_5 = arith.constant 0 : index
    %c0_6 = arith.constant 0 : index
    %4 = vector.load %arg5[%c0_5, %c0_6] : memref<32x64xbf16, #tpu.memory_space<vmem>>, vector<32x64xbf16>
    %cst_7 = arith.constant dense<0.000000e+00> : vector<256x64xf32>
    %5 = tpu.matmul %1, %4, %cst_7 {dimension_numbers = #tpu.dot_dimension_numbers<[1], [0], [0], [1], [0, 0, 1, 1], [], []>} : vector<256x32xbf16>, vector<32x64xbf16>, vector<256x64xf32> -> vector<256x64xf32>
    %6 = vector.extract_strided_slice %5 {offsets = [0, 0], sizes = [256, 32], strides = [1, 1]} : vector<256x64xf32> to vector<256x32xf32>
    %7 = vector.extract_strided_slice %5 {offsets = [0, 32], sizes = [256, 32], strides = [1, 1]} : vector<256x64xf32> to vector<256x32xf32>
    %c0_8 = arith.constant 0 : index
    %c0_9 = arith.constant 0 : index
    %8 = vector.load %arg3[%c0_8, %c0_9] : memref<256x4xbf16, #tpu.memory_space<vmem>>, vector<256x4xbf16>
    %c0_10 = arith.constant 0 : index
    %c0_11 = arith.constant 0 : index
    %9 = vector.load %arg6[%c0_10, %c0_11] : memref<4x32xbf16, #tpu.memory_space<vmem>>, vector<4x32xbf16>
    %cst_12 = arith.constant dense<0.000000e+00> : vector<256x32xf32>
    %10 = tpu.matmul %8, %9, %cst_12 {dimension_numbers = #tpu.dot_dimension_numbers<[1], [0], [0], [1], [0, 0, 1, 1], [], []>} : vector<256x4xbf16>, vector<4x32xbf16>, vector<256x32xf32> -> vector<256x32xf32>
    %c0_13 = arith.constant 0 : index
    %c0_14 = arith.constant 0 : index
    %11 = vector.load %arg7[%c0_13, %c0_14] : memref<1x32xf32, #tpu.memory_space<vmem>>, vector<1x32xf32>
    %12 = vector.broadcast %11 : vector<1x32xf32> to vector<256x32xf32>
    %13 = arith.addf %10, %12 : vector<256x32xf32>
    %cst_15 = arith.constant 0.000000e+00 : f32
    %14 = vector.broadcast %cst_15 : f32 to vector<256x32xf32>
    %15 = arith.maximumf %13, %14 : vector<256x32xf32>
    %16 = arith.truncf %15 : vector<256x32xf32> to vector<256x32xbf16>
    %c0_16 = arith.constant 0 : index
    %c0_17 = arith.constant 0 : index
    %17 = vector.load %arg8[%c0_16, %c0_17] : memref<32x32xbf16, #tpu.memory_space<vmem>>, vector<32x32xbf16>
    %cst_18 = arith.constant dense<0.000000e+00> : vector<256x32xf32>
    %18 = tpu.matmul %16, %17, %cst_18 {dimension_numbers = #tpu.dot_dimension_numbers<[1], [0], [0], [1], [0, 0, 1, 1], [], []>} : vector<256x32xbf16>, vector<32x32xbf16>, vector<256x32xf32> -> vector<256x32xf32>
    %c0_19 = arith.constant 0 : index
    %c0_20 = arith.constant 0 : index
    %19 = vector.load %arg9[%c0_19, %c0_20] : memref<1x32xf32, #tpu.memory_space<vmem>>, vector<1x32xf32>
    %20 = vector.broadcast %19 : vector<1x32xf32> to vector<256x32xf32>
    %21 = arith.addf %18, %20 : vector<256x32xf32>
    %22 = vector.shape_cast %6 : vector<256x32xf32> to vector<32x8x32xf32>
    %23 = vector.shape_cast %7 : vector<256x32xf32> to vector<32x8x32xf32>
    %24 = vector.shape_cast %21 : vector<256x32xf32> to vector<32x8x32xf32>
    %25 = vector.shape_cast %3 : vector<32x32xf32> to vector<32x1x32xf32>
    %26 = vector.broadcast %25 : vector<32x1x32xf32> to vector<32x8x32xf32>
    %27 = arith.subf %26, %22 : vector<32x8x32xf32>
    %28 = arith.addf %27, %24 : vector<32x8x32xf32>
    %29 = vector.shape_cast %28 : vector<32x8x32xf32> to vector<256x32xf32>
    %30 = arith.truncf %29 : vector<256x32xf32> to vector<256x32xbf16>
    %c0_21 = arith.constant 0 : index
    %c0_22 = arith.constant 0 : index
    %31 = vector.load %arg10[%c0_21, %c0_22] : memref<32x64xbf16, #tpu.memory_space<vmem>>, vector<32x64xbf16>
    %cst_23 = arith.constant dense<0.000000e+00> : vector<256x64xf32>
    %32 = tpu.matmul %30, %31, %cst_23 {dimension_numbers = #tpu.dot_dimension_numbers<[1], [0], [0], [1], [0, 0, 1, 1], [], []>} : vector<256x32xbf16>, vector<32x64xbf16>, vector<256x64xf32> -> vector<256x64xf32>
    %c0_24 = arith.constant 0 : index
    %c0_25 = arith.constant 0 : index
    %33 = vector.load %arg11[%c0_24, %c0_25] : memref<1x64xf32, #tpu.memory_space<vmem>>, vector<1x64xf32>
    %34 = vector.broadcast %33 : vector<1x64xf32> to vector<256x64xf32>
    %35 = arith.addf %32, %34 : vector<256x64xf32>
    %cst_26 = arith.constant 0.000000e+00 : f32
    %36 = vector.broadcast %cst_26 : f32 to vector<256x64xf32>
    %37 = arith.maximumf %35, %36 : vector<256x64xf32>
    %38 = arith.truncf %37 : vector<256x64xf32> to vector<256x64xbf16>
    %c0_27 = arith.constant 0 : index
    %c0_28 = arith.constant 0 : index
    %39 = vector.load %arg12[%c0_27, %c0_28] : memref<64x32xbf16, #tpu.memory_space<vmem>>, vector<64x32xbf16>
    %cst_29 = arith.constant dense<0.000000e+00> : vector<256x32xf32>
    %40 = tpu.matmul %38, %39, %cst_29 {dimension_numbers = #tpu.dot_dimension_numbers<[1], [0], [0], [1], [0, 0, 1, 1], [], []>} : vector<256x64xbf16>, vector<64x32xbf16>, vector<256x32xf32> -> vector<256x32xf32>
    %c0_30 = arith.constant 0 : index
    %c0_31 = arith.constant 0 : index
    %41 = vector.load %arg13[%c0_30, %c0_31] : memref<1x32xf32, #tpu.memory_space<vmem>>, vector<1x32xf32>
    %42 = vector.broadcast %41 : vector<1x32xf32> to vector<256x32xf32>
    %43 = arith.addf %40, %42 : vector<256x32xf32>
    %44 = vector.shape_cast %43 : vector<256x32xf32> to vector<32x8x32xf32>
    %cst_32 = arith.constant dense<0xFF800000> : vector<32x32xf32>
    %45 = vector.multi_reduction <maximumf>, %44, %cst_32 [1] : vector<32x8x32xf32> to vector<32x32xf32>
    %46 = vector.shape_cast %45 : vector<32x32xf32> to vector<32x1x32xf32>
    %47 = vector.broadcast %46 : vector<32x1x32xf32> to vector<32x8x32xf32>
    %48 = arith.subf %44, %47 : vector<32x8x32xf32>
    %49 = math.exp %48 : vector<32x8x32xf32>
    %50 = arith.addf %23, %24 : vector<32x8x32xf32>
    %51 = arith.mulf %49, %50 : vector<32x8x32xf32>
    %cst_33 = arith.constant dense<0.000000e+00> : vector<32x32xf32>
    %52 = vector.multi_reduction <add>, %51, %cst_33 [1] : vector<32x8x32xf32> to vector<32x32xf32>
    %cst_34 = arith.constant dense<0.000000e+00> : vector<32x32xf32>
    %53 = vector.multi_reduction <add>, %49, %cst_34 [1] : vector<32x8x32xf32> to vector<32x32xf32>
    %54 = tpu.reciprocal %53 {approx = true} : vector<32x32xf32> -> vector<32x32xf32>
    %55 = arith.mulf %52, %54 : vector<32x32xf32>
    %56 = arith.truncf %55 : vector<32x32xf32> to vector<32x32xbf16>
    %c0_35 = arith.constant 0 : index
    %c0_36 = arith.constant 0 : index
    %57 = vector.load %arg14[%c0_35, %c0_36] : memref<32x32xbf16, #tpu.memory_space<vmem>>, vector<32x32xbf16>
    tpu.vector_store %arg14[%c0_35, %c0_36], %56 {strides = array<i32>} : memref<32x32xbf16, #tpu.memory_space<vmem>>, vector<32x32xbf16>,
    return
  }
  func.func @transform_0(%arg0: i32) -> (i32, i32) {
    %c0_i32 = arith.constant 0 : i32
    %c0_i32_0 = arith.constant 0 : i32
    return %arg0, %c0_i32 : i32, i32
  }
  func.func @transform_1(%arg0: i32) -> (i32, i32) {
    %c0_i32 = arith.constant 0 : i32
    %c0_i32_0 = arith.constant 0 : i32
    return %arg0, %c0_i32 : i32, i32
  }
  func.func @transform_2(%arg0: i32) -> (i32, i32) {
    %c0_i32 = arith.constant 0 : i32
    %c0_i32_0 = arith.constant 0 : i32
    return %arg0, %c0_i32 : i32, i32
  }
  func.func @transform_3(%arg0: i32) -> (i32, i32) {
    %c0_i32 = arith.constant 0 : i32
    %c0_i32_0 = arith.constant 0 : i32
    %c0_i32_1 = arith.constant 0 : i32
    return %c0_i32, %c0_i32_0 : i32, i32
  }
  func.func @transform_4(%arg0: i32) -> (i32, i32) {
    %c0_i32 = arith.constant 0 : i32
    %c0_i32_0 = arith.constant 0 : i32
    %c0_i32_1 = arith.constant 0 : i32
    return %c0_i32, %c0_i32_0 : i32, i32
  }
  func.func @transform_5(%arg0: i32) -> (i32, i32) {
    %c0_i32 = arith.constant 0 : i32
    %c0_i32_0 = arith.constant 0 : i32
    %c0_i32_1 = arith.constant 0 : i32
    return %c0_i32, %c0_i32_0 : i32, i32
  }
  func.func @transform_6(%arg0: i32) -> (i32, i32) {
    %c0_i32 = arith.constant 0 : i32
    %c0_i32_0 = arith.constant 0 : i32
    %c0_i32_1 = arith.constant 0 : i32
    return %c0_i32, %c0_i32_0 : i32, i32
  }
  func.func @transform_7(%arg0: i32) -> (i32, i32) {
    %c0_i32 = arith.constant 0 : i32
    %c0_i32_0 = arith.constant 0 : i32
    %c0_i32_1 = arith.constant 0 : i32
    return %c0_i32, %c0_i32_0 : i32, i32
  }
  func.func @transform_8(%arg0: i32) -> (i32, i32) {
    %c0_i32 = arith.constant 0 : i32
    %c0_i32_0 = arith.constant 0 : i32
    %c0_i32_1 = arith.constant 0 : i32
    return %c0_i32, %c0_i32_0 : i32, i32
  }
  func.func @transform_9(%arg0: i32) -> (i32, i32) {
    %c0_i32 = arith.constant 0 : i32
    %c0_i32_0 = arith.constant 0 : i32
    %c0_i32_1 = arith.constant 0 : i32
    return %c0_i32, %c0_i32_0 : i32, i32
  }
  func.func @transform_10(%arg0: i32) -> (i32, i32) {
    %c0_i32 = arith.constant 0 : i32
    %c0_i32_0 = arith.constant 0 : i32
    %c0_i32_1 = arith.constant 0 : i32
    return %c0_i32, %c0_i32_0 : i32, i32
  }
  func.func @transform_11(%arg0: i32) -> (i32, i32) {
    %c0_i32 = arith.constant 0 : i32
    %c0_i32_0 = arith.constant 0 : i32
    %c0_i32_1 = arith.constant 0 : i32
    return %c0_i32, %c0_i32_0 : i32, i32
  }
  func.func @transform_12(%arg0: i32) -> (i32, i32) {
    %c0_i32 = arith.constant 0 : i32
    %c0_i32_0 = arith.constant 0 : i32
    %c0_i32_1 = arith.constant 0 : i32
    return %c0_i32, %c0_i32_0 : i32, i32
  }
  func.func @transform_13(%arg0: i32) -> (i32, i32) {
    %c0_i32 = arith.constant 0 : i32
    %c0_i32_0 = arith.constant 0 : i32
    return %arg0, %c0_i32 : i32, i32
  }
}

</mosaic_0001>

<llo_original>
// kernel: tpu_custom_call.1
$region0: #{tpu_custom_call.1}
  #allocation0 [shape = 'u32[]', space=smem, size = 0x4, offset = 0x4, fixed_abs, tag = 'smem constant byte address 0x4 - core index']
  #allocation1 [shape = 'u32[144,128]{1,0:T(1,128)}', space=vmem, size = 0x12000, scoped, tag = 'internal scratch']
  %s0 = inlined_call_operand.vmem [shape: bf16[32,32], index: 0, kind: input, shape index: {}]
  %s1 = inlined_call_operand.vmem [shape: bf16[256,32], index: 1, kind: input, shape index: {}]
  %s2 = inlined_call_operand.vmem [shape: bf16[256,4], index: 2, kind: input, shape index: {}]
  %s3 = inlined_call_operand.vmem [shape: bf16[32,32], index: 3, kind: input, shape index: {}]
  %s4 = inlined_call_operand.vmem [shape: bf16[32,64], index: 4, kind: input, shape index: {}]
  %s5 = inlined_call_operand.vmem [shape: bf16[4,32], index: 5, kind: input, shape index: {}]
  %s6 = inlined_call_operand.vmem [shape: f32[1,32], index: 6, kind: input, shape index: {}]
  %s7 = inlined_call_operand.vmem [shape: bf16[32,32], index: 7, kind: input, shape index: {}]
  %s8 = inlined_call_operand.vmem [shape: f32[1,32], index: 8, kind: input, shape index: {}]
  %s9 = inlined_call_operand.vmem [shape: bf16[32,64], index: 9, kind: input, shape index: {}]
  %s10 = inlined_call_operand.vmem [shape: f32[1,64], index: 10, kind: input, shape index: {}]
  %s11 = inlined_call_operand.vmem [shape: bf16[64,32], index: 11, kind: input, shape index: {}]
  %s12 = inlined_call_operand.vmem [shape: f32[1,32], index: 12, kind: input, shape index: {}]
  %s13 = inlined_call_operand.hbm [shape: bf16[32,32], index: 13, kind: output, shape index: {}]
  %s14 = sld [smem:[#allocation0]]
  $region62: #{tpu_custom_call.1} parent=0
    _
  %s16 = ssub.s32 1, %s14
  %s17 = scalar_select 0, %s16, %s14
  $region1: #{tpu_custom_call.1} parent=0
    #allocation2 [shape = 'u8[8192]{0}', space=vmem, size = 0x2000, scoped, tag = 'output window, operand 0, single buffered']
    #allocation3 [shape = 's32[1]{0}', space=sflag, size = 0x4, scoped, tag = 'scoped memory for tpu_custom_call.1']
    %18 = vsyncpa [#allocation3], 0
    // Predicated region
    $region2: #{tpu_custom_call.1} parent=1 // pred_check
      _
    $region3: #{tpu_custom_call.1} parent=1 // pred_check_branch
      %20 = sbr.rel (0) target = $region5
    $region4: #{tpu_custom_call.1} parent=1 // pred_region
      _
    $region5: #{tpu_custom_call.1} parent=1 // pred_fallthru
      _
    // Predicated region
    $region6: #{tpu_custom_call.1} parent=1 // pred_check
      _
    $region7: #{tpu_custom_call.1} parent=1 // pred_check_branch
      %22 = sbr.rel (0) target = $region9
    $region8: #{tpu_custom_call.1} parent=1 // pred_region
      _
    $region9: #{tpu_custom_call.1} parent=1 // pred_fallthru
      _
    // Predicated region
    $region10: #{tpu_custom_call.1} parent=1 // pred_check
      _
    $region11: #{tpu_custom_call.1} parent=1 // pred_check_branch
      %24 = sbr.rel (0) target = $region13
    $region12: #{tpu_custom_call.1} parent=1 // pred_region
      _
    $region13: #{tpu_custom_call.1} parent=1 // pred_fallthru
      _
    // Predicated region
    $region14: #{tpu_custom_call.1} parent=1 // pred_check
      _
    $region15: #{tpu_custom_call.1} parent=1 // pred_check_branch
      %26 = sbr.rel (0) target = $region17
    $region16: #{tpu_custom_call.1} parent=1 // pred_region
      _
    $region17: #{tpu_custom_call.1} parent=1 // pred_fallthru
      _
    // Predicated region
    $region18: #{tpu_custom_call.1} parent=1 // pred_check
      _
    $region19: #{tpu_custom_call.1} parent=1 // pred_check_branch
      %28 = sbr.rel (0) target = $region21
    $region20: #{tpu_custom_call.1} parent=1 // pred_region
      _
    $region21: #{tpu_custom_call.1} parent=1 // pred_fallthru
      _
    // Predicated region
    $region22: #{tpu_custom_call.1} parent=1 // pred_check
      _
    $region23: #{tpu_custom_call.1} parent=1 // pred_check_branch
      %30 = sbr.rel (0) target = $region25
    $region24: #{tpu_custom_call.1} parent=1 // pred_region
      _
    $region25: #{tpu_custom_call.1} parent=1 // pred_fallthru
      _
    // Predicated region
    $region26: #{tpu_custom_call.1} parent=1 // pred_check
      _
    $region27: #{tpu_custom_call.1} parent=1 // pred_check_branch
      %32 = sbr.rel (0) target = $region29
    $region28: #{tpu_custom_call.1} parent=1 // pred_region
      _
    $region29: #{tpu_custom_call.1} parent=1 // pred_fallthru
      _
    // Predicated region
    $region30: #{tpu_custom_call.1} parent=1 // pred_check
      _
    $region31: #{tpu_custom_call.1} parent=1 // pred_check_branch
      %34 = sbr.rel (0) target = $region33
    $region32: #{tpu_custom_call.1} parent=1 // pred_region
      _
    $region33: #{tpu_custom_call.1} parent=1 // pred_fallthru
      _
    // Predicated region
    $region34: #{tpu_custom_call.1} parent=1 // pred_check
      _
    $region35: #{tpu_custom_call.1} parent=1 // pred_check_branch
      %36 = sbr.rel (0) target = $region37
    $region36: #{tpu_custom_call.1} parent=1 // pred_region
      _
    $region37: #{tpu_custom_call.1} parent=1 // pred_fallthru
      _
    // Predicated region
    $region38: #{tpu_custom_call.1} parent=1 // pred_check
      _
    $region39: #{tpu_custom_call.1} parent=1 // pred_check_branch
      %38 = sbr.rel (0) target = $region41
    $region40: #{tpu_custom_call.1} parent=1 // pred_region
      _
    $region41: #{tpu_custom_call.1} parent=1 // pred_fallthru
      _
    // Predicated region
    $region42: #{tpu_custom_call.1} parent=1 // pred_check
      _
    $region43: #{tpu_custom_call.1} parent=1 // pred_check_branch
      %40 = sbr.rel (0) target = $region45
    $region44: #{tpu_custom_call.1} parent=1 // pred_region
      _
    $region45: #{tpu_custom_call.1} parent=1 // pred_fallthru
      _
    // Predicated region
    $region46: #{tpu_custom_call.1} parent=1 // pred_check
      _
    $region47: #{tpu_custom_call.1} parent=1 // pred_check_branch
      %42 = sbr.rel (0) target = $region49
    $region48: #{tpu_custom_call.1} parent=1 // pred_region
      _
    $region49: #{tpu_custom_call.1} parent=1 // pred_fallthru
      _
    // Predicated region
    $region50: #{tpu_custom_call.1} parent=1 // pred_check
      _
    $region51: #{tpu_custom_call.1} parent=1 // pred_check_branch
      %44 = sbr.rel (0) target = $region53
    $region52: #{tpu_custom_call.1} parent=1 // pred_region
      _
    $region53: #{tpu_custom_call.1} parent=1 // pred_fallthru
      _
    %v46 = vld [vmem:[%s0] sm:$0xf]
    %v47 = vld [vmem:[%s0 + $0x4] sm:$0xf]
    %v48 = vld [vmem:[%s0 + $0x8] sm:$0xf]
    %v49 = vld [vmem:[%s0 + $0xc] sm:$0xf]
    %v50 = vld [vmem:[%s1] sm:$0xf]
    %v51 = vld [vmem:[%s1 + $0x4] sm:$0xf]
    %v52 = vld [vmem:[%s1 + $0x8] sm:$0xf]
    %v53 = vld [vmem:[%s1 + $0xc] sm:$0xf]
    %v54 = vld [vmem:[%s1 + $0x10] sm:$0xf]
    %v55 = vld [vmem:[%s1 + $0x14] sm:$0xf]
    %v56 = vld [vmem:[%s1 + $0x18] sm:$0xf]
    %v57 = vld [vmem:[%s1 + $0x1c] sm:$0xf]
    %v58 = vld [vmem:[%s1 + $0x20] sm:$0xf]
    %v59 = vld [vmem:[%s1 + $0x24] sm:$0xf]
    %v60 = vld [vmem:[%s1 + $0x28] sm:$0xf]
    %v61 = vld [vmem:[%s1 + $0x2c] sm:$0xf]
    %v62 = vld [vmem:[%s1 + $0x30] sm:$0xf]
    %v63 = vld [vmem:[%s1 + $0x34] sm:$0xf]
    %v64 = vld [vmem:[%s1 + $0x38] sm:$0xf]
    %v65 = vld [vmem:[%s1 + $0x3c] sm:$0xf]
    %v66 = vld [vmem:[%s1 + $0x40] sm:$0xf]
    %v67 = vld [vmem:[%s1 + $0x44] sm:$0xf]
    %v68 = vld [vmem:[%s1 + $0x48] sm:$0xf]
    %v69 = vld [vmem:[%s1 + $0x4c] sm:$0xf]
    %v70 = vld [vmem:[%s1 + $0x50] sm:$0xf]
    %v71 = vld [vmem:[%s1 + $0x54] sm:$0xf]
    %v72 = vld [vmem:[%s1 + $0x58] sm:$0xf]
    %v73 = vld [vmem:[%s1 + $0x5c] sm:$0xf]
    %v74 = vld [vmem:[%s1 + $0x60] sm:$0xf]
    %v75 = vld [vmem:[%s1 + $0x64] sm:$0xf]
    %v76 = vld [vmem:[%s1 + $0x68] sm:$0xf]
    %v77 = vld [vmem:[%s1 + $0x6c] sm:$0xf]
    %v78 = vld [vmem:[%s1 + $0x70] sm:$0xf]
    %v79 = vld [vmem:[%s1 + $0x74] sm:$0xf]
    %v80 = vld [vmem:[%s1 + $0x78] sm:$0xf]
    %v81 = vld [vmem:[%s1 + $0x7c] sm:$0xf]
    %v82 = vld [vmem:[%s3] sm:$0xf]
    %v83 = vld [vmem:[%s3 + $0x4] sm:$0xf]
    %v84 = vld [vmem:[%s3 + $0x8] sm:$0xf]
    %v85 = vld [vmem:[%s3 + $0xc] sm:$0xf]
    %v90 = vunpack.c.l.b16 %v46
    %v91 = vunpack.c.l.b16 %v47
    %v92 = vunpack.c.l.b16 %v48
    %v93 = vunpack.c.l.b16 %v49
    %v94 = vpack.c.b16 %v91, %v90
    %v95 = vpack.c.b16 %v93, %v92
    %v100 = vunpack.c.l.b16 %v82
    %v101 = vunpack.c.l.b16 %v83
    %v102 = vunpack.c.l.b16 %v84
    %v103 = vunpack.c.l.b16 %v85
    %v104 = vpack.c.b16 %v101, %v100
    %v105 = vpack.c.b16 %v103, %v102
    %vm108 = vcmask 261120
    %v110 = vsel %vm108, %v94, 0
    %v113 = vsel %vm108, %v95, 0
    %115 = vmatprep.subr.bf16.mxu0 0
    %116 = vmatpush1.bf16.msra.mxu0 %v104
    %117 = vmatprep.subr.bf16.mxu0 0
    %118 = vmatpush1.bf16.msra.mxu0 %v105
    %119 = vmatprep.subr.bf16.mxu0 0
    %120 = vmatpush1.bf16.msra.mxu0 0
    %121 = vmatprep.subr.bf16.mxu0 0
    %122 = vmatpush1.bf16.msra.mxu0 0
    %123 = vmatprep.subr.bf16.mxu0 0
    %124 = vmatpush1.bf16.msra.mxu0 0
    %125 = vmatprep.subr.bf16.mxu0 0
    %126 = vmatpush1.bf16.msra.mxu0 0
    %127 = vmatprep.subr.bf16.mxu0 0
    %128 = vmatpush1.bf16.msra.mxu0 0
    %129 = vmatprep.subr.bf16.mxu0 0
    %130 = vmatpush1.bf16.msra.mxu0 0
    %131 = vmatprep.subr.bf16.mxu0 0
    %132 = vmatpush1.bf16.msra.mxu0 0
    %133 = vmatprep.subr.bf16.mxu0 0
    %134 = vmatpush1.bf16.msra.mxu0 0
    %135 = vmatprep.subr.bf16.mxu0 0
    %136 = vmatpush1.bf16.msra.mxu0 0
    %137 = vmatprep.subr.bf16.mxu0 0
    %138 = vmatpush1.bf16.msra.mxu0 0
    %139 = vmatprep.subr.bf16.mxu0 0
    %140 = vmatpush1.bf16.msra.mxu0 0
    %141 = vmatprep.subr.bf16.mxu0 0
    %142 = vmatpush1.bf16.msra.mxu0 0
    %143 = vmatprep.subr.bf16.mxu0 0
    %144 = vmatpush1.bf16.msra.mxu0 0
    %145 = vmatprep.subr.bf16.mxu0 0
    %146 = vmatpush1.bf16.msra.mxu0 0
    %147 = vmatprep.mubr.bf16.mxu0 0
    %148 = vmatmul.mubr.bf16.gmra.mrb[0].mxu0 %v110
    %v149 = vpop.f32.mrb[0].mxu0
    %v150 = vadd.f32 0.0, %v149
    %v151 = vpop.f32.mrb[0].mxu0
    %v152 = vpop.f32.mrb[0].mxu0
    %v153 = vadd.f32 0.0, %v152
    %v154 = vpop.f32.mrb[0].mxu0
    %155 = vmatprep.mubr.bf16.mxu0 0
    %156 = vmatmul.mubr.bf16.gmra.mrb[0].mxu0 %v113
    %v157 = vpop.f32.mrb[0].mxu0
    %v158 = vadd.f32 0.0, %v157
    %v159 = vpop.f32.mrb[0].mxu0
    %v160 = vpop.f32.mrb[0].mxu0
    %v161 = vadd.f32 0.0, %v160
    %v162 = vpop.f32.mrb[0].mxu0
    %163 = vdwg.mxu0
    %v164 = vld [vmem:[%s4] sm:$0xf]
    %v165 = vld [vmem:[%s4 + $0x4] sm:$0xf]
    %v166 = vld [vmem:[%s4 + $0x8] sm:$0xf]
    %v167 = vld [vmem:[%s4 + $0xc] sm:$0xf]
    %v200 = vunpack.c.l.b16 %v50
    %v201 = vunpack.c.l.b16 %v51
    %v202 = vunpack.c.l.b16 %v52
    %v203 = vunpack.c.l.b16 %v53
    %v204 = vunpack.c.l.b16 %v54
    %v205 = vunpack.c.l.b16 %v55
    %v206 = vunpack.c.l.b16 %v56
    %v207 = vunpack.c.l.b16 %v57
    %v208 = vunpack.c.l.b16 %v58
    %v209 = vunpack.c.l.b16 %v59
    %v210 = vunpack.c.l.b16 %v60
    %v211 = vunpack.c.l.b16 %v61
    %v212 = vunpack.c.l.b16 %v62
    %v213 = vunpack.c.l.b16 %v63
    %v214 = vunpack.c.l.b16 %v64
    %v215 = vunpack.c.l.b16 %v65
    %v216 = vunpack.c.l.b16 %v66
    %v217 = vunpack.c.l.b16 %v67
    %v218 = vunpack.c.l.b16 %v68
    %v219 = vunpack.c.l.b16 %v69
    %v220 = vunpack.c.l.b16 %v70
    %v221 = vunpack.c.l.b16 %v71
    %v222 = vunpack.c.l.b16 %v72
    %v223 = vunpack.c.l.b16 %v73
    %v224 = vunpack.c.l.b16 %v74
    %v225 = vunpack.c.l.b16 %v75
    %v226 = vunpack.c.l.b16 %v76
    %v227 = vunpack.c.l.b16 %v77
    %v228 = vunpack.c.l.b16 %v78
    %v229 = vunpack.c.l.b16 %v79
    %v230 = vunpack.c.l.b16 %v80
    %v231 = vunpack.c.l.b16 %v81
    %v232 = vpack.c.b16 %v201, %v200
    %v233 = vpack.c.b16 %v203, %v202
    %v234 = vpack.c.b16 %v205, %v204
    %v235 = vpack.c.b16 %v207, %v206
    %v236 = vpack.c.b16 %v209, %v208
    %v237 = vpack.c.b16 %v211, %v210
    %v238 = vpack.c.b16 %v213, %v212
    %v239 = vpack.c.b16 %v215, %v214
    %v240 = vpack.c.b16 %v217, %v216
    %v241 = vpack.c.b16 %v219, %v218
    %v242 = vpack.c.b16 %v221, %v220
    %v243 = vpack.c.b16 %v223, %v222
    %v244 = vpack.c.b16 %v225, %v224
    %v245 = vpack.c.b16 %v227, %v226
    %v246 = vpack.c.b16 %v229, %v228
    %v247 = vpack.c.b16 %v231, %v230
    %v252 = vunpack.c.l.b16 %v164
    %v253 = vunpack.c.l.b16 %v165
    %v254 = vunpack.c.l.b16 %v166
    %v255 = vunpack.c.l.b16 %v167
    %v256 = vpack.c.b16 %v253, %v252
    %v257 = vpack.c.b16 %v255, %v254
    %v261 = vsel %vm108, %v232, 0
    %v264 = vsel %vm108, %v233, 0
    %v267 = vsel %vm108, %v234, 0
    %v270 = vsel %vm108, %v235, 0
    %v273 = vsel %vm108, %v236, 0
    %v276 = vsel %vm108, %v237, 0
    %v279 = vsel %vm108, %v238, 0
    %v282 = vsel %vm108, %v239, 0
    %v285 = vsel %vm108, %v240, 0
    %v288 = vsel %vm108, %v241, 0
    %v291 = vsel %vm108, %v242, 0
    %v294 = vsel %vm108, %v243, 0
    %v297 = vsel %vm108, %v244, 0
    %v300 = vsel %vm108, %v245, 0
    %v303 = vsel %vm108, %v246, 0
    %v306 = vsel %vm108, %v247, 0
    %308 = vmatprep.subr.bf16.mxu0 0
    %309 = vmatpush1.bf16.msra.mxu0 %v256
    %310 = vmatprep.subr.bf16.mxu0 0
    %311 = vmatpush1.bf16.msra.mxu0 %v257
    %312 = vmatprep.subr.bf16.mxu0 0
    %313 = vmatpush1.bf16.msra.mxu0 0
    %314 = vmatprep.subr.bf16.mxu0 0
    %315 = vmatpush1.bf16.msra.mxu0 0
    %316 = vmatprep.subr.bf16.mxu0 0
    %317 = vmatpush1.bf16.msra.mxu0 0
    %318 = vmatprep.subr.bf16.mxu0 0
    %319 = vmatpush1.bf16.msra.mxu0 0
    %320 = vmatprep.subr.bf16.mxu0 0
    %321 = vmatpush1.bf16.msra.mxu0 0
    %322 = vmatprep.subr.bf16.mxu0 0
    %323 = vmatpush1.bf16.msra.mxu0 0
    %324 = vmatprep.subr.bf16.mxu0 0
    %325 = vmatpush1.bf16.msra.mxu0 0
    %326 = vmatprep.subr.bf16.mxu0 0
    %327 = vmatpush1.bf16.msra.mxu0 0
    %328 = vmatprep.subr.bf16.mxu0 0
    %329 = vmatpush1.bf16.msra.mxu0 0
    %330 = vmatprep.subr.bf16.mxu0 0
    %331 = vmatpush1.bf16.msra.mxu0 0
    %332 = vmatprep.subr.bf16.mxu0 0
    %333 = vmatpush1.bf16.msra.mxu0 0
    %334 = vmatprep.subr.bf16.mxu0 0
    %335 = vmatpush1.bf16.msra.mxu0 0
    %336 = vmatprep.subr.bf16.mxu0 0
    %337 = vmatpush1.bf16.msra.mxu0 0
    %338 = vmatprep.subr.bf16.mxu0 0
    %339 = vmatpush1.bf16.msra.mxu0 0
    %340 = vmatprep.mubr.bf16.mxu0 0
    %341 = vmatmul.mubr.bf16.gmra.mrb[0].mxu0 %v261
    %v342 = vpop.f32.mrb[0].mxu0
    %v343 = vadd.f32 0.0, %v342
    %v344 = vpop.f32.mrb[0].mxu0
    %v345 = vpop.f32.mrb[0].mxu0
    %v346 = vadd.f32 0.0, %v345
    %v347 = vpop.f32.mrb[0].mxu0
    %348 = vmatprep.mubr.bf16.mxu0 0
    %349 = vmatmul.mubr.bf16.gmra.mrb[0].mxu0 %v264
    %v350 = vpop.f32.mrb[0].mxu0
    %v351 = vadd.f32 0.0, %v350
    %v352 = vpop.f32.mrb[0].mxu0
    %v353 = vpop.f32.mrb[0].mxu0
    %v354 = vadd.f32 0.0, %v353
    %v355 = vpop.f32.mrb[0].mxu0
    %356 = vmatprep.mubr.bf16.mxu0 0
    %357 = vmatmul.mubr.bf16.gmra.mrb[0].mxu0 %v267
    %v358 = vpop.f32.mrb[0].mxu0
    %v359 = vadd.f32 0.0, %v358
    %v360 = vpop.f32.mrb[0].mxu0
    %v361 = vpop.f32.mrb[0].mxu0
    %v362 = vadd.f32 0.0, %v361
    %v363 = vpop.f32.mrb[0].mxu0
    %364 = vmatprep.mubr.bf16.mxu0 0
    %365 = vmatmul.mubr.bf16.gmra.mrb[0].mxu0 %v270
    %v366 = vpop.f32.mrb[0].mxu0
    %v367 = vadd.f32 0.0, %v366
    %v368 = vpop.f32.mrb[0].mxu0
    %v369 = vpop.f32.mrb[0].mxu0
    %v370 = vadd.f32 0.0, %v369
    %v371 = vpop.f32.mrb[0].mxu0
    %372 = vmatprep.mubr.bf16.mxu0 0
    %373 = vmatmul.mubr.bf16.gmra.mrb[0].mxu0 %v273
    %v374 = vpop.f32.mrb[0].mxu0
    %v375 = vadd.f32 0.0, %v374
    %v376 = vpop.f32.mrb[0].mxu0
    %v377 = vpop.f32.mrb[0].mxu0
    %v378 = vadd.f32 0.0, %v377
    %v379 = vpop.f32.mrb[0].mxu0
    %380 = vmatprep.mubr.bf16.mxu0 0
    %381 = vmatmul.mubr.bf16.gmra.mrb[0].mxu0 %v276
    %v382 = vpop.f32.mrb[0].mxu0
    %v383 = vadd.f32 0.0, %v382
    %v384 = vpop.f32.mrb[0].mxu0
    %v385 = vpop.f32.mrb[0].mxu0
    %v386 = vadd.f32 0.0, %v385
    %v387 = vpop.f32.mrb[0].mxu0
    %388 = vmatprep.mubr.bf16.mxu0 0
    %389 = vmatmul.mubr.bf16.gmra.mrb[0].mxu0 %v279
    %v390 = vpop.f32.mrb[0].mxu0
    %v391 = vadd.f32 0.0, %v390
    %v392 = vpop.f32.mrb[0].mxu0
    %v393 = vpop.f32.mrb[0].mxu0
    %v394 = vadd.f32 0.0, %v393
    %v395 = vpop.f32.mrb[0].mxu0
    %396 = vmatprep.mubr.bf16.mxu0 0
    %397 = vmatmul.mubr.bf16.gmra.mrb[0].mxu0 %v282
    %v398 = vpop.f32.mrb[0].mxu0
    %v399 = vadd.f32 0.0, %v398
    %v400 = vpop.f32.mrb[0].mxu0
    %v401 = vpop.f32.mrb[0].mxu0
    %v402 = vadd.f32 0.0, %v401
    %v403 = vpop.f32.mrb[0].mxu0
    %404 = vmatprep.mubr.bf16.mxu0 0
    %405 = vmatmul.mubr.bf16.gmra.mrb[0].mxu0 %v285
    %v406 = vpop.f32.mrb[0].mxu0
    %v407 = vadd.f32 0.0, %v406
    %v408 = vpop.f32.mrb[0].mxu0
    %v409 = vpop.f32.mrb[0].mxu0
    %v410 = vadd.f32 0.0, %v409
    %v411 = vpop.f32.mrb[0].mxu0
    %412 = vmatprep.mubr.bf16.mxu0 0
    %413 = vmatmul.mubr.bf16.gmra.mrb[0].mxu0 %v288
    %v414 = vpop.f32.mrb[0].mxu0
    %v415 = vadd.f32 0.0, %v414
    %v416 = vpop.f32.mrb[0].mxu0
    %v417 = vpop.f32.mrb[0].mxu0
    %v418 = vadd.f32 0.0, %v417
    %v419 = vpop.f32.mrb[0].mxu0
    %420 = vmatprep.mubr.bf16.mxu0 0
    %421 = vmatmul.mubr.bf16.gmra.mrb[0].mxu0 %v291
    %v422 = vpop.f32.mrb[0].mxu0
    %v423 = vadd.f32 0.0, %v422
    %v424 = vpop.f32.mrb[0].mxu0
    %v425 = vpop.f32.mrb[0].mxu0
    %v426 = vadd.f32 0.0, %v425
    %v427 = vpop.f32.mrb[0].mxu0
    %428 = vmatprep.mubr.bf16.mxu0 0
    %429 = vmatmul.mubr.bf16.gmra.mrb[0].mxu0 %v294
    %v430 = vpop.f32.mrb[0].mxu0
    %v431 = vadd.f32 0.0, %v430
    %v432 = vpop.f32.mrb[0].mxu0
    %v433 = vpop.f32.mrb[0].mxu0
    %v434 = vadd.f32 0.0, %v433
    %v435 = vpop.f32.mrb[0].mxu0
    %436 = vmatprep.mubr.bf16.mxu0 0
    %437 = vmatmul.mubr.bf16.gmra.mrb[0].mxu0 %v297
    %v438 = vpop.f32.mrb[0].mxu0
    %v439 = vadd.f32 0.0, %v438
    %v440 = vpop.f32.mrb[0].mxu0
    %v441 = vpop.f32.mrb[0].mxu0
    %v442 = vadd.f32 0.0, %v441
    %v443 = vpop.f32.mrb[0].mxu0
    %444 = vmatprep.mubr.bf16.mxu0 0
    %445 = vmatmul.mubr.bf16.gmra.mrb[0].mxu0 %v300
    %v446 = vpop.f32.mrb[0].mxu0
    %v447 = vadd.f32 0.0, %v446
    %v448 = vpop.f32.mrb[0].mxu0
    %v449 = vpop.f32.mrb[0].mxu0
    %v450 = vadd.f32 0.0, %v449
    %v451 = vpop.f32.mrb[0].mxu0
    %452 = vmatprep.mubr.bf16.mxu0 0
    %453 = vmatmul.mubr.bf16.gmra.mrb[0].mxu0 %v303
    %v454 = vpop.f32.mrb[0].mxu0
    %v455 = vadd.f32 0.0, %v454
    %v456 = vpop.f32.mrb[0].mxu0
    %v457 = vpop.f32.mrb[0].mxu0
    %v458 = vadd.f32 0.0, %v457
    %v459 = vpop.f32.mrb[0].mxu0
    %460 = vmatprep.mubr.bf16.mxu0 0
    %461 = vmatmul.mubr.bf16.gmra.mrb[0].mxu0 %v306
    %v462 = vpop.f32.mrb[0].mxu0
    %v463 = vadd.f32 0.0, %v462
    %v464 = vpop.f32.mrb[0].mxu0
    %v465 = vpop.f32.mrb[0].mxu0
    %v466 = vadd.f32 0.0, %v465
    %v467 = vpop.f32.mrb[0].mxu0
    %468 = vdwg.mxu0
    %v469 = vld [vmem:[%s2] sm:$0xf]
    %v470 = vld [vmem:[%s2 + $0x4] sm:$0xf]
    %v471 = vld [vmem:[%s2 + $0x8] sm:$0xf]
    %v472 = vld [vmem:[%s2 + $0xc] sm:$0xf]
    %v473 = vld [vmem:[%s2 + $0x10] sm:$0xf]
    %v474 = vld [vmem:[%s2 + $0x14] sm:$0xf]
    %v475 = vld [vmem:[%s2 + $0x18] sm:$0xf]
    %v476 = vld [vmem:[%s2 + $0x1c] sm:$0xf]
    %v477 = vld [vmem:[%s2 + $0x20] sm:$0xf]
    %v478 = vld [vmem:[%s2 + $0x24] sm:$0xf]
    %v479 = vld [vmem:[%s2 + $0x28] sm:$0xf]
    %v480 = vld [vmem:[%s2 + $0x2c] sm:$0xf]
    %v481 = vld [vmem:[%s2 + $0x30] sm:$0xf]
    %v482 = vld [vmem:[%s2 + $0x34] sm:$0xf]
    %v483 = vld [vmem:[%s2 + $0x38] sm:$0xf]
    %v484 = vld [vmem:[%s2 + $0x3c] sm:$0xf]
    %v485 = vld [vmem:[%s2 + $0x40] sm:$0xf]
    %v486 = vld [vmem:[%s2 + $0x44] sm:$0xf]
    %v487 = vld [vmem:[%s2 + $0x48] sm:$0xf]
    %v488 = vld [vmem:[%s2 + $0x4c] sm:$0xf]
    %v489 = vld [vmem:[%s2 + $0x50] sm:$0xf]
    %v490 = vld [vmem:[%s2 + $0x54] sm:$0xf]
    %v491 = vld [vmem:[%s2 + $0x58] sm:$0xf]
    %v492 = vld [vmem:[%s2 + $0x5c] sm:$0xf]
    %v493 = vld [vmem:[%s2 + $0x60] sm:$0xf]
    %v494 = vld [vmem:[%s2 + $0x64] sm:$0xf]
    %v495 = vld [vmem:[%s2 + $0x68] sm:$0xf]
    %v496 = vld [vmem:[%s2 + $0x6c] sm:$0xf]
    %v497 = vld [vmem:[%s2 + $0x70] sm:$0xf]
    %v498 = vld [vmem:[%s2 + $0x74] sm:$0xf]
    %v499 = vld [vmem:[%s2 + $0x78] sm:$0xf]
    %v500 = vld [vmem:[%s2 + $0x7c] sm:$0xf]
    %v501 = vld [vmem:[%s5] sm:$0x3]
    %v502 = vld [vmem:[%s6] sm:$0x1]
    %v504 = vlaneseq
    %v505 = vshrl.u32 %v504, 7
    %v506 = vsub.s32 0, %v505
    %v507 = vrot.slane %v502, %v506
    %v541 = vunpack.c.l.b16 %v469
    %v542 = vunpack.c.l.b16 %v470
    %v543 = vunpack.c.l.b16 %v471
    %v544 = vunpack.c.l.b16 %v472
    %v545 = vunpack.c.l.b16 %v473
    %v546 = vunpack.c.l.b16 %v474
    %v547 = vunpack.c.l.b16 %v475
    %v548 = vunpack.c.l.b16 %v476
    %v549 = vunpack.c.l.b16 %v477
    %v550 = vunpack.c.l.b16 %v478
    %v551 = vunpack.c.l.b16 %v479
    %v552 = vunpack.c.l.b16 %v480
    %v553 = vunpack.c.l.b16 %v481
    %v554 = vunpack.c.l.b16 %v482
    %v555 = vunpack.c.l.b16 %v483
    %v556 = vunpack.c.l.b16 %v484
    %v557 = vunpack.c.l.b16 %v485
    %v558 = vunpack.c.l.b16 %v486
    %v559 = vunpack.c.l.b16 %v487
    %v560 = vunpack.c.l.b16 %v488
    %v561 = vunpack.c.l.b16 %v489
    %v562 = vunpack.c.l.b16 %v490
    %v563 = vunpack.c.l.b16 %v491
    %v564 = vunpack.c.l.b16 %v492
    %v565 = vunpack.c.l.b16 %v493
    %v566 = vunpack.c.l.b16 %v494
    %v567 = vunpack.c.l.b16 %v495
    %v568 = vunpack.c.l.b16 %v496
    %v569 = vunpack.c.l.b16 %v497
    %v570 = vunpack.c.l.b16 %v498
    %v571 = vunpack.c.l.b16 %v499
    %v572 = vunpack.c.l.b16 %v500
    %v573 = vpack.c.b16 %v542, %v541
    %v574 = vpack.c.b16 %v544, %v543
    %v575 = vpack.c.b16 %v546, %v545
    %v576 = vpack.c.b16 %v548, %v547
    %v577 = vpack.c.b16 %v550, %v549
    %v578 = vpack.c.b16 %v552, %v551
    %v579 = vpack.c.b16 %v554, %v553
    %v580 = vpack.c.b16 %v556, %v555
    %v581 = vpack.c.b16 %v558, %v557
    %v582 = vpack.c.b16 %v560, %v559
    %v583 = vpack.c.b16 %v562, %v561
    %v584 = vpack.c.b16 %v564, %v563
    %v585 = vpack.c.b16 %v566, %v565
    %v586 = vpack.c.b16 %v568, %v567
    %v587 = vpack.c.b16 %v570, %v569
    %v588 = vpack.c.b16 %v572, %v571
    %vm589 = vcmask 31744
    %v591 = vsel %vm589, %v573, 0
    %v594 = vsel %vm589, %v574, 0
    %v597 = vsel %vm589, %v575, 0
    %v600 = vsel %vm589, %v576, 0
    %v603 = vsel %vm589, %v577, 0
    %v606 = vsel %vm589, %v578, 0
    %v609 = vsel %vm589, %v579, 0
    %v612 = vsel %vm589, %v580, 0
    %v615 = vsel %vm589, %v581, 0
    %v618 = vsel %vm589, %v582, 0
    %v621 = vsel %vm589, %v583, 0
    %v624 = vsel %vm589, %v584, 0
    %v627 = vsel %vm589, %v585, 0
    %v630 = vsel %vm589, %v586, 0
    %v633 = vsel %vm589, %v587, 0
    %v636 = vsel %vm589, %v588, 0
    %vm638 = vcmask 1041408
    %v640 = vsel %vm638, %v501, 0
    %642 = vmatprep.subr.bf16.mxu0 0
    %643 = vmatpush1.bf16.msra.mxu0 %v640
    %644 = vmatprep.subr.bf16.mxu0 0
    %645 = vmatpush1.bf16.msra.mxu0 0
    %646 = vmatprep.subr.bf16.mxu0 0
    %647 = vmatpush1.bf16.msra.mxu0 0
    %648 = vmatprep.subr.bf16.mxu0 0
    %649 = vmatpush1.bf16.msra.mxu0 0
    %650 = vmatprep.subr.bf16.mxu0 0
    %651 = vmatpush1.bf16.msra.mxu0 0
    %652 = vmatprep.subr.bf16.mxu0 0
    %653 = vmatpush1.bf16.msra.mxu0 0
    %654 = vmatprep.subr.bf16.mxu0 0
    %655 = vmatpush1.bf16.msra.mxu0 0
    %656 = vmatprep.subr.bf16.mxu0 0
    %657 = vmatpush1.bf16.msra.mxu0 0
    %658 = vmatprep.subr.bf16.mxu0 0
    %659 = vmatpush1.bf16.msra.mxu0 0
    %660 = vmatprep.subr.bf16.mxu0 0
    %661 = vmatpush1.bf16.msra.mxu0 0
    %662 = vmatprep.subr.bf16.mxu0 0
    %663 = vmatpush1.bf16.msra.mxu0 0
    %664 = vmatprep.subr.bf16.mxu0 0
    %665 = vmatpush1.bf16.msra.mxu0 0
    %666 = vmatprep.subr.bf16.mxu0 0
    %667 = vmatpush1.bf16.msra.mxu0 0
    %668 = vmatprep.subr.bf16.mxu0 0
    %669 = vmatpush1.bf16.msra.mxu0 0
    %670 = vmatprep.subr.bf16.mxu0 0
    %671 = vmatpush1.bf16.msra.mxu0 0
    %672 = vmatprep.subr.bf16.mxu0 0
    %673 = vmatpush1.bf16.msra.mxu0 0
    %674 = vmatprep.mubr.bf16.mxu0 0
    %675 = vmatmul.mubr.bf16.gmra.mrb[0].mxu0 %v591
    %v676 = vpop.f32.mrb[0].mxu0
    %v677 = vadd.f32 %v507, %v676
    %v678 = vpop.f32.mrb[0].mxu0
    %v679 = vpop.f32.mrb[0].mxu0
    %v680 = vadd.f32 %v507, %v679
    %v681 = vpop.f32.mrb[0].mxu0
    %682 = vmatprep.mubr.bf16.mxu0 0
    %683 = vmatmul.mubr.bf16.gmra.mrb[0].mxu0 %v594
    %v684 = vpop.f32.mrb[0].mxu0
    %v685 = vadd.f32 %v507, %v684
    %v686 = vpop.f32.mrb[0].mxu0
    %v687 = vpop.f32.mrb[0].mxu0
    %v688 = vadd.f32 %v507, %v687
    %v689 = vpop.f32.mrb[0].mxu0
    %690 = vmatprep.mubr.bf16.mxu0 0
    %691 = vmatmul.mubr.bf16.gmra.mrb[0].mxu0 %v597
    %v692 = vpop.f32.mrb[0].mxu0
    %v693 = vadd.f32 %v507, %v692
    %v694 = vpop.f32.mrb[0].mxu0
    %v695 = vpop.f32.mrb[0].mxu0
    %v696 = vadd.f32 %v507, %v695
    %v697 = vpop.f32.mrb[0].mxu0
    %698 = vmatprep.mubr.bf16.mxu0 0
    %699 = vmatmul.mubr.bf16.gmra.mrb[0].mxu0 %v600
    %v700 = vpop.f32.mrb[0].mxu0
    %v701 = vadd.f32 %v507, %v700
    %v702 = vpop.f32.mrb[0].mxu0
    %v703 = vpop.f32.mrb[0].mxu0
    %v704 = vadd.f32 %v507, %v703
    %v705 = vpop.f32.mrb[0].mxu0
    %706 = vmatprep.mubr.bf16.mxu0 0
    %707 = vmatmul.mubr.bf16.gmra.mrb[0].mxu0 %v603
    %v708 = vpop.f32.mrb[0].mxu0
    %v709 = vadd.f32 %v507, %v708
    %v710 = vpop.f32.mrb[0].mxu0
    %v711 = vpop.f32.mrb[0].mxu0
    %v712 = vadd.f32 %v507, %v711
    %v713 = vpop.f32.mrb[0].mxu0
    %714 = vmatprep.mubr.bf16.mxu0 0
    %715 = vmatmul.mubr.bf16.gmra.mrb[0].mxu0 %v606
    %v716 = vpop.f32.mrb[0].mxu0
    %v717 = vadd.f32 %v507, %v716
    %v718 = vpop.f32.mrb[0].mxu0
    %v719 = vpop.f32.mrb[0].mxu0
    %v720 = vadd.f32 %v507, %v719
    %v721 = vpop.f32.mrb[0].mxu0
    %722 = vmatprep.mubr.bf16.mxu0 0
    %723 = vmatmul.mubr.bf16.gmra.mrb[0].mxu0 %v609
    %v724 = vpop.f32.mrb[0].mxu0
    %v725 = vadd.f32 %v507, %v724
    %v726 = vpop.f32.mrb[0].mxu0
    %v727 = vpop.f32.mrb[0].mxu0
    %v728 = vadd.f32 %v507, %v727
    %v729 = vpop.f32.mrb[0].mxu0
    %730 = vmatprep.mubr.bf16.mxu0 0
    %731 = vmatmul.mubr.bf16.gmra.mrb[0].mxu0 %v612
    %v732 = vpop.f32.mrb[0].mxu0
    %v733 = vadd.f32 %v507, %v732
    %v734 = vpop.f32.mrb[0].mxu0
    %v735 = vpop.f32.mrb[0].mxu0
    %v736 = vadd.f32 %v507, %v735
    %v737 = vpop.f32.mrb[0].mxu0
    %738 = vmatprep.mubr.bf16.mxu0 0
    %739 = vmatmul.mubr.bf16.gmra.mrb[0].mxu0 %v615
    %v740 = vpop.f32.mrb[0].mxu0
    %v741 = vadd.f32 %v507, %v740
    %v742 = vpop.f32.mrb[0].mxu0
    %v743 = vpop.f32.mrb[0].mxu0
    %v744 = vadd.f32 %v507, %v743
    %v745 = vpop.f32.mrb[0].mxu0
    %746 = vmatprep.mubr.bf16.mxu0 0
    %747 = vmatmul.mubr.bf16.gmra.mrb[0].mxu0 %v618
    %v748 = vpop.f32.mrb[0].mxu0
    %v749 = vadd.f32 %v507, %v748
    %v750 = vpop.f32.mrb[0].mxu0
    %v751 = vpop.f32.mrb[0].mxu0
    %v752 = vadd.f32 %v507, %v751
    %v753 = vpop.f32.mrb[0].mxu0
    %754 = vmatprep.mubr.bf16.mxu0 0
    %755 = vmatmul.mubr.bf16.gmra.mrb[0].mxu0 %v621
    %v756 = vpop.f32.mrb[0].mxu0
    %v757 = vadd.f32 %v507, %v756
    %v758 = vpop.f32.mrb[0].mxu0
    %v759 = vpop.f32.mrb[0].mxu0
    %v760 = vadd.f32 %v507, %v759
    %v761 = vpop.f32.mrb[0].mxu0
    %762 = vmatprep.mubr.bf16.mxu0 0
    %763 = vmatmul.mubr.bf16.gmra.mrb[0].mxu0 %v624
    %v764 = vpop.f32.mrb[0].mxu0
    %v765 = vadd.f32 %v507, %v764
    %v766 = vpop.f32.mrb[0].mxu0
    %v767 = vpop.f32.mrb[0].mxu0
    %v768 = vadd.f32 %v507, %v767
    %v769 = vpop.f32.mrb[0].mxu0
    %770 = vmatprep.mubr.bf16.mxu0 0
    %771 = vmatmul.mubr.bf16.gmra.mrb[0].mxu0 %v627
    %v772 = vpop.f32.mrb[0].mxu0
    %v773 = vadd.f32 %v507, %v772
    %v774 = vpop.f32.mrb[0].mxu0
    %v775 = vpop.f32.mrb[0].mxu0
    %v776 = vadd.f32 %v507, %v775
    %v777 = vpop.f32.mrb[0].mxu0
    %778 = vmatprep.mubr.bf16.mxu0 0
    %779 = vmatmul.mubr.bf16.gmra.mrb[0].mxu0 %v630
    %v780 = vpop.f32.mrb[0].mxu0
    %v781 = vadd.f32 %v507, %v780
    %v782 = vpop.f32.mrb[0].mxu0
    %v783 = vpop.f32.mrb[0].mxu0
    %v784 = vadd.f32 %v507, %v783
    %v785 = vpop.f32.mrb[0].mxu0
    %786 = vmatprep.mubr.bf16.mxu0 0
    %787 = vmatmul.mubr.bf16.gmra.mrb[0].mxu0 %v633
    %v788 = vpop.f32.mrb[0].mxu0
    %v789 = vadd.f32 %v507, %v788
    %v790 = vpop.f32.mrb[0].mxu0
    %v791 = vpop.f32.mrb[0].mxu0
    %v792 = vadd.f32 %v507, %v791
    %v793 = vpop.f32.mrb[0].mxu0
    %794 = vmatprep.mubr.bf16.mxu0 0
    %795 = vmatmul.mubr.bf16.gmra.mrb[0].mxu0 %v636
    %v796 = vpop.f32.mrb[0].mxu0
    %v797 = vadd.f32 %v507, %v796
    %v798 = vpop.f32.mrb[0].mxu0
    %v799 = vpop.f32.mrb[0].mxu0
    %v800 = vadd.f32 %v507, %v799
    %v801 = vpop.f32.mrb[0].mxu0
    %802 = vdwg.mxu0
    %v803 = vmax.f32 %v677, 0.0
    %v804 = vmax.f32 %v680, 0.0
    %v805 = vmax.f32 %v685, 0.0
    %v806 = vmax.f32 %v688, 0.0
    %v807 = vmax.f32 %v693, 0.0
    %v808 = vmax.f32 %v696, 0.0
    %v809 = vmax.f32 %v701, 0.0
    %v810 = vmax.f32 %v704, 0.0
    %v811 = vmax.f32 %v709, 0.0
    %v812 = vmax.f32 %v712, 0.0
    %v813 = vmax.f32 %v717, 0.0
    %v814 = vmax.f32 %v720, 0.0
    %v815 = vmax.f32 %v725, 0.0
    %v816 = vmax.f32 %v728, 0.0
    %v817 = vmax.f32 %v733, 0.0
    %v818 = vmax.f32 %v736, 0.0
    %v819 = vmax.f32 %v741, 0.0
    %v820 = vmax.f32 %v744, 0.0
    %v821 = vmax.f32 %v749, 0.0
    %v822 = vmax.f32 %v752, 0.0
    %v823 = vmax.f32 %v757, 0.0
    %v824 = vmax.f32 %v760, 0.0
    %v825 = vmax.f32 %v765, 0.0
    %v826 = vmax.f32 %v768, 0.0
    %v827 = vmax.f32 %v773, 0.0
    %v828 = vmax.f32 %v776, 0.0
    %v829 = vmax.f32 %v781, 0.0
    %v830 = vmax.f32 %v784, 0.0
    %v831 = vmax.f32 %v789, 0.0
    %v832 = vmax.f32 %v792, 0.0
    %v833 = vmax.f32 %v797, 0.0
    %v834 = vmax.f32 %v800, 0.0
    %v835 = vpack.c.bf16 %v804, %v803
    %v836 = vpack.c.bf16 %v806, %v805
    %v837 = vpack.c.bf16 %v808, %v807
    %v838 = vpack.c.bf16 %v810, %v809
    %v839 = vpack.c.bf16 %v812, %v811
    %v840 = vpack.c.bf16 %v814, %v813
    %v841 = vpack.c.bf16 %v816, %v815
    %v842 = vpack.c.bf16 %v818, %v817
    %v843 = vpack.c.bf16 %v820, %v819
    %v844 = vpack.c.bf16 %v822, %v821
    %v845 = vpack.c.bf16 %v824, %v823
    %v846 = vpack.c.bf16 %v826, %v825
    %v847 = vpack.c.bf16 %v828, %v827
    %v848 = vpack.c.bf16 %v830, %v829
    %v849 = vpack.c.bf16 %v832, %v831
    %v850 = vpack.c.bf16 %v834, %v833
    %v851 = vld [vmem:[%s7] sm:$0xf]
    %v852 = vld [vmem:[%s7 + $0x4] sm:$0xf]
    %v853 = vld [vmem:[%s7 + $0x8] sm:$0xf]
    %v854 = vld [vmem:[%s7 + $0xc] sm:$0xf]
    %v855 = vld [vmem:[%s8] sm:$0x1]
    %v857 = vlaneseq
    %v858 = vshrl.u32 %v857, 7
    %v859 = vsub.s32 0, %v858
    %v860 = vrot.slane %v855, %v859
    %v866 = vunpack.c.l.b16 %v851
    %v867 = vunpack.c.l.b16 %v852
    %v868 = vunpack.c.l.b16 %v853
    %v869 = vunpack.c.l.b16 %v854
    %v870 = vpack.c.b16 %v867, %v866
    %v871 = vpack.c.b16 %v869, %v868
    %v875 = vsel %vm108, %v835, 0
    %v878 = vsel %vm108, %v836, 0
    %v881 = vsel %vm108, %v837, 0
    %v884 = vsel %vm108, %v838, 0
    %v887 = vsel %vm108, %v839, 0
    %v890 = vsel %vm108, %v840, 0
    %v893 = vsel %vm108, %v841, 0
    %v896 = vsel %vm108, %v842, 0
    %v899 = vsel %vm108, %v843, 0
    %v902 = vsel %vm108, %v844, 0
    %v905 = vsel %vm108, %v845, 0
    %v908 = vsel %vm108, %v846, 0
    %v911 = vsel %vm108, %v847, 0
    %v914 = vsel %vm108, %v848, 0
    %v917 = vsel %vm108, %v849, 0
    %v920 = vsel %vm108, %v850, 0
    %922 = vmatprep.subr.bf16.mxu0 0
    %923 = vmatpush1.bf16.msra.mxu0 %v870
    %924 = vmatprep.subr.bf16.mxu0 0
    %925 = vmatpush1.bf16.msra.mxu0 %v871
    %926 = vmatprep.subr.bf16.mxu0 0
    %927 = vmatpush1.bf16.msra.mxu0 0
    %928 = vmatprep.subr.bf16.mxu0 0
    %929 = vmatpush1.bf16.msra.mxu0 0
    %930 = vmatprep.subr.bf16.mxu0 0
    %931 = vmatpush1.bf16.msra.mxu0 0
    %932 = vmatprep.subr.bf16.mxu0 0
    %933 = vmatpush1.bf16.msra.mxu0 0
    %934 = vmatprep.subr.bf16.mxu0 0
    %935 = vmatpush1.bf16.msra.mxu0 0
    %936 = vmatprep.subr.bf16.mxu0 0
    %937 = vmatpush1.bf16.msra.mxu0 0
    %938 = vmatprep.subr.bf16.mxu0 0
    %939 = vmatpush1.bf16.msra.mxu0 0
    %940 = vmatprep.subr.bf16.mxu0 0
    %941 = vmatpush1.bf16.msra.mxu0 0
    %942 = vmatprep.subr.bf16.mxu0 0
    %943 = vmatpush1.bf16.msra.mxu0 0
    %944 = vmatprep.subr.bf16.mxu0 0
    %945 = vmatpush1.bf16.msra.mxu0 0
    %946 = vmatprep.subr.bf16.mxu0 0
    %947 = vmatpush1.bf16.msra.mxu0 0
    %948 = vmatprep.subr.bf16.mxu0 0
    %949 = vmatpush1.bf16.msra.mxu0 0
    %950 = vmatprep.subr.bf16.mxu0 0
    %951 = vmatpush1.bf16.msra.mxu0 0
    %952 = vmatprep.subr.bf16.mxu0 0
    %953 = vmatpush1.bf16.msra.mxu0 0
    %954 = vmatprep.mubr.bf16.mxu0 0
    %955 = vmatmul.mubr.bf16.gmra.mrb[0].mxu0 %v875
    %v956 = vpop.f32.mrb[0].mxu0
    %v957 = vadd.f32 %v860, %v956
    %v958 = vpop.f32.mrb[0].mxu0
    %v959 = vpop.f32.mrb[0].mxu0
    %v960 = vadd.f32 %v860, %v959
    %v961 = vpop.f32.mrb[0].mxu0
    %962 = vmatprep.mubr.bf16.mxu0 0
    %963 = vmatmul.mubr.bf16.gmra.mrb[0].mxu0 %v878
    %v964 = vpop.f32.mrb[0].mxu0
    %v965 = vadd.f32 %v860, %v964
    %v966 = vpop.f32.mrb[0].mxu0
    %v967 = vpop.f32.mrb[0].mxu0
    %v968 = vadd.f32 %v860, %v967
    %v969 = vpop.f32.mrb[0].mxu0
    %970 = vmatprep.mubr.bf16.mxu0 0
    %971 = vmatmul.mubr.bf16.gmra.mrb[0].mxu0 %v881
    %v972 = vpop.f32.mrb[0].mxu0
    %v973 = vadd.f32 %v860, %v972
    %v974 = vpop.f32.mrb[0].mxu0
    %v975 = vpop.f32.mrb[0].mxu0
    %v976 = vadd.f32 %v860, %v975
    %v977 = vpop.f32.mrb[0].mxu0
    %978 = vmatprep.mubr.bf16.mxu0 0
    %979 = vmatmul.mubr.bf16.gmra.mrb[0].mxu0 %v884
    %v980 = vpop.f32.mrb[0].mxu0
    %v981 = vadd.f32 %v860, %v980
    %v982 = vpop.f32.mrb[0].mxu0
    %v983 = vpop.f32.mrb[0].mxu0
    %v984 = vadd.f32 %v860, %v983
    %v985 = vpop.f32.mrb[0].mxu0
    %986 = vmatprep.mubr.bf16.mxu0 0
    %987 = vmatmul.mubr.bf16.gmra.mrb[0].mxu0 %v887
    %v988 = vpop.f32.mrb[0].mxu0
    %v989 = vadd.f32 %v860, %v988
    %v990 = vpop.f32.mrb[0].mxu0
    %v991 = vpop.f32.mrb[0].mxu0
    %v992 = vadd.f32 %v860, %v991
    %v993 = vpop.f32.mrb[0].mxu0
    %994 = vmatprep.mubr.bf16.mxu0 0
    %995 = vmatmul.mubr.bf16.gmra.mrb[0].mxu0 %v890
    %v996 = vpop.f32.mrb[0].mxu0
    %v997 = vadd.f32 %v860, %v996
    %v998 = vpop.f32.mrb[0].mxu0
    %v999 = vpop.f32.mrb[0].mxu0
    %v1000 = vadd.f32 %v860, %v999
    %v1001 = vpop.f32.mrb[0].mxu0
    %1002 = vmatprep.mubr.bf16.mxu0 0
    %1003 = vmatmul.mubr.bf16.gmra.mrb[0].mxu0 %v893
    %v1004 = vpop.f32.mrb[0].mxu0
    %v1005 = vadd.f32 %v860, %v1004
    %v1006 = vpop.f32.mrb[0].mxu0
    %v1007 = vpop.f32.mrb[0].mxu0
    %v1008 = vadd.f32 %v860, %v1007
    %v1009 = vpop.f32.mrb[0].mxu0
    %1010 = vmatprep.mubr.bf16.mxu0 0
    %1011 = vmatmul.mubr.bf16.gmra.mrb[0].mxu0 %v896
    %v1012 = vpop.f32.mrb[0].mxu0
    %v1013 = vadd.f32 %v860, %v1012
    %v1014 = vpop.f32.mrb[0].mxu0
    %v1015 = vpop.f32.mrb[0].mxu0
    %v1016 = vadd.f32 %v860, %v1015
    %v1017 = vpop.f32.mrb[0].mxu0
    %1018 = vmatprep.mubr.bf16.mxu0 0
    %1019 = vmatmul.mubr.bf16.gmra.mrb[0].mxu0 %v899
    %v1020 = vpop.f32.mrb[0].mxu0
    %v1021 = vadd.f32 %v860, %v1020
    %v1022 = vpop.f32.mrb[0].mxu0
    %v1023 = vpop.f32.mrb[0].mxu0
    %v1024 = vadd.f32 %v860, %v1023
    %v1025 = vpop.f32.mrb[0].mxu0
    %1026 = vmatprep.mubr.bf16.mxu0 0
    %1027 = vmatmul.mubr.bf16.gmra.mrb[0].mxu0 %v902
    %v1028 = vpop.f32.mrb[0].mxu0
    %v1029 = vadd.f32 %v860, %v1028
    %v1030 = vpop.f32.mrb[0].mxu0
    %v1031 = vpop.f32.mrb[0].mxu0
    %v1032 = vadd.f32 %v860, %v1031
    %v1033 = vpop.f32.mrb[0].mxu0
    %1034 = vmatprep.mubr.bf16.mxu0 0
    %1035 = vmatmul.mubr.bf16.gmra.mrb[0].mxu0 %v905
    %v1036 = vpop.f32.mrb[0].mxu0
    %v1037 = vadd.f32 %v860, %v1036
    %v1038 = vpop.f32.mrb[0].mxu0
    %v1039 = vpop.f32.mrb[0].mxu0
    %v1040 = vadd.f32 %v860, %v1039
    %v1041 = vpop.f32.mrb[0].mxu0
    %1042 = vmatprep.mubr.bf16.mxu0 0
    %1043 = vmatmul.mubr.bf16.gmra.mrb[0].mxu0 %v908
    %v1044 = vpop.f32.mrb[0].mxu0
    %v1045 = vadd.f32 %v860, %v1044
    %v1046 = vpop.f32.mrb[0].mxu0
    %v1047 = vpop.f32.mrb[0].mxu0
    %v1048 = vadd.f32 %v860, %v1047
    %v1049 = vpop.f32.mrb[0].mxu0
    %1050 = vmatprep.mubr.bf16.mxu0 0
    %1051 = vmatmul.mubr.bf16.gmra.mrb[0].mxu0 %v911
    %v1052 = vpop.f32.mrb[0].mxu0
    %v1053 = vadd.f32 %v860, %v1052
    %v1054 = vpop.f32.mrb[0].mxu0
    %v1055 = vpop.f32.mrb[0].mxu0
    %v1056 = vadd.f32 %v860, %v1055
    %v1057 = vpop.f32.mrb[0].mxu0
    %1058 = vmatprep.mubr.bf16.mxu0 0
    %1059 = vmatmul.mubr.bf16.gmra.mrb[0].mxu0 %v914
    %v1060 = vpop.f32.mrb[0].mxu0
    %v1061 = vadd.f32 %v860, %v1060
    %v1062 = vpop.f32.mrb[0].mxu0
    %v1063 = vpop.f32.mrb[0].mxu0
    %v1064 = vadd.f32 %v860, %v1063
    %v1065 = vpop.f32.mrb[0].mxu0
    %1066 = vmatprep.mubr.bf16.mxu0 0
    %1067 = vmatmul.mubr.bf16.gmra.mrb[0].mxu0 %v917
    %v1068 = vpop.f32.mrb[0].mxu0
    %v1069 = vadd.f32 %v860, %v1068
    %v1070 = vpop.f32.mrb[0].mxu0
    %v1071 = vpop.f32.mrb[0].mxu0
    %v1072 = vadd.f32 %v860, %v1071
    %v1073 = vpop.f32.mrb[0].mxu0
    %1074 = vmatprep.mubr.bf16.mxu0 0
    %1075 = vmatmul.mubr.bf16.gmra.mrb[0].mxu0 %v920
    %v1076 = vpop.f32.mrb[0].mxu0
    %v1077 = vadd.f32 %v860, %v1076
    %v1078 = vpop.f32.mrb[0].mxu0
    %v1079 = vpop.f32.mrb[0].mxu0
    %v1080 = vadd.f32 %v860, %v1079
    %v1081 = vpop.f32.mrb[0].mxu0
    %1082 = vdwg.mxu0
    %v1087 = vcombine.high %v150, %v150
    %v1089 = vunpack.c.l.s4 1966171168
    %v1090 = vunpack.c.0.s8 %v1089
    %v1091 = vlaneseq
    %v1092 = vshrl.u32 %v1091, 7
    %v1093 = vsub.s32 %v1090, %v1092
    %v1094 = vrot.slane %v150, %v1093
    %v1096 = vunpack.c.l.s4 1966171168
    %v1097 = vunpack.c.0.s8 %v1096
    %v1098 = vlaneseq
    %v1099 = vshrl.u32 %v1098, 7
    %v1100 = vsub.s32 %v1097, %v1099
    %v1101 = vrot.slane %v1087, %v1100
    %v1102 = vcombine.high %v1094, %v1094
    %v1103 = vcombine.high %v1101, %v1101
    %v1105 = vunpack.c.l.s4 1966171168
    %v1106 = vunpack.c.0.s8 %v1105
    %v1107 = vlaneseq
    %v1108 = vshrl.u32 %v1107, 7
    %v1109 = vsub.s32 %v1106, %v1108
    %v1110 = vrot.slane %v1094, %v1109
    %v1112 = vunpack.c.l.s4 1966171168
    %v1113 = vunpack.c.0.s8 %v1112
    %v1114 = vlaneseq
    %v1115 = vshrl.u32 %v1114, 7
    %v1116 = vsub.s32 %v1113, %v1115
    %v1117 = vrot.slane %v1101, %v1116
    %v1119 = vunpack.c.l.s4 1966171168
    %v1120 = vunpack.c.0.s8 %v1119
    %v1121 = vlaneseq
    %v1122 = vshrl.u32 %v1121, 7
    %v1123 = vsub.s32 %v1120, %v1122
    %v1124 = vrot.slane %v1102, %v1123
    %v1126 = vunpack.c.l.s4 1966171168
    %v1127 = vunpack.c.0.s8 %v1126
    %v1128 = vlaneseq
    %v1129 = vshrl.u32 %v1128, 7
    %v1130 = vsub.s32 %v1127, %v1129
    %v1131 = vrot.slane %v1103, %v1130
    %v1132 = vcombine.high %v1110, %v1110
    %v1133 = vcombine.high %v1117, %v1117
    %v1134 = vcombine.high %v1124, %v1124
    %v1135 = vcombine.high %v1131, %v1131
    %v1136 = vcombine.high %v153, %v153
    %v1138 = vunpack.c.l.s4 1966171168
    %v1139 = vunpack.c.0.s8 %v1138
    %v1140 = vlaneseq
    %v1141 = vshrl.u32 %v1140, 7
    %v1142 = vsub.s32 %v1139, %v1141
    %v1143 = vrot.slane %v153, %v1142
    %v1145 = vunpack.c.l.s4 1966171168
    %v1146 = vunpack.c.0.s8 %v1145
    %v1147 = vlaneseq
    %v1148 = vshrl.u32 %v1147, 7
    %v1149 = vsub.s32 %v1146, %v1148
    %v1150 = vrot.slane %v1136, %v1149
    %v1151 = vcombine.high %v1143, %v1143
    %v1152 = vcombine.high %v1150, %v1150
    %v1154 = vunpack.c.l.s4 1966171168
    %v1155 = vunpack.c.0.s8 %v1154
    %v1156 = vlaneseq
    %v1157 = vshrl.u32 %v1156, 7
    %v1158 = vsub.s32 %v1155, %v1157
    %v1159 = vrot.slane %v1143, %v1158
    %v1161 = vunpack.c.l.s4 1966171168
    %v1162 = vunpack.c.0.s8 %v1161
    %v1163 = vlaneseq
    %v1164 = vshrl.u32 %v1163, 7
    %v1165 = vsub.s32 %v1162, %v1164
    %v1166 = vrot.slane %v1150, %v1165
    %v1168 = vunpack.c.l.s4 1966171168
    %v1169 = vunpack.c.0.s8 %v1168
    %v1170 = vlaneseq
    %v1171 = vshrl.u32 %v1170, 7
    %v1172 = vsub.s32 %v1169, %v1171
    %v1173 = vrot.slane %v1151, %v1172
    %v1175 = vunpack.c.l.s4 1966171168
    %v1176 = vunpack.c.0.s8 %v1175
    %v1177 = vlaneseq
    %v1178 = vshrl.u32 %v1177, 7
    %v1179 = vsub.s32 %v1176, %v1178
    %v1180 = vrot.slane %v1152, %v1179
    %v1181 = vcombine.high %v1159, %v1159
    %v1182 = vcombine.high %v1166, %v1166
    %v1183 = vcombine.high %v1173, %v1173
    %v1184 = vcombine.high %v1180, %v1180
    %v1185 = vcombine.high %v158, %v158
    %v1187 = vunpack.c.l.s4 1966171168
    %v1188 = vunpack.c.0.s8 %v1187
    %v1189 = vlaneseq
    %v1190 = vshrl.u32 %v1189, 7
    %v1191 = vsub.s32 %v1188, %v1190
    %v1192 = vrot.slane %v158, %v1191
    %v1194 = vunpack.c.l.s4 1966171168
    %v1195 = vunpack.c.0.s8 %v1194
    %v1196 = vlaneseq
    %v1197 = vshrl.u32 %v1196, 7
    %v1198 = vsub.s32 %v1195, %v1197
    %v1199 = vrot.slane %v1185, %v1198
    %v1200 = vcombine.high %v1192, %v1192
    %v1201 = vcombine.high %v1199, %v1199
    %v1203 = vunpack.c.l.s4 1966171168
    %v1204 = vunpack.c.0.s8 %v1203
    %v1205 = vlaneseq
    %v1206 = vshrl.u32 %v1205, 7
    %v1207 = vsub.s32 %v1204, %v1206
    %v1208 = vrot.slane %v1192, %v1207
    %v1210 = vunpack.c.l.s4 1966171168
    %v1211 = vunpack.c.0.s8 %v1210
    %v1212 = vlaneseq
    %v1213 = vshrl.u32 %v1212, 7
    %v1214 = vsub.s32 %v1211, %v1213
    %v1215 = vrot.slane %v1199, %v1214
    %v1217 = vunpack.c.l.s4 1966171168
    %v1218 = vunpack.c.0.s8 %v1217
    %v1219 = vlaneseq
    %v1220 = vshrl.u32 %v1219, 7
    %v1221 = vsub.s32 %v1218, %v1220
    %v1222 = vrot.slane %v1200, %v1221
    %v1224 = vunpack.c.l.s4 1966171168
    %v1225 = vunpack.c.0.s8 %v1224
    %v1226 = vlaneseq
    %v1227 = vshrl.u32 %v1226, 7
    %v1228 = vsub.s32 %v1225, %v1227
    %v1229 = vrot.slane %v1201, %v1228
    %v1230 = vcombine.high %v1208, %v1208
    %v1231 = vcombine.high %v1215, %v1215
    %v1232 = vcombine.high %v1222, %v1222
    %v1233 = vcombine.high %v1229, %v1229
    %v1234 = vcombine.high %v161, %v161
    %v1236 = vunpack.c.l.s4 1966171168
    %v1237 = vunpack.c.0.s8 %v1236
    %v1238 = vlaneseq
    %v1239 = vshrl.u32 %v1238, 7
    %v1240 = vsub.s32 %v1237, %v1239
    %v1241 = vrot.slane %v161, %v1240
    %v1243 = vunpack.c.l.s4 1966171168
    %v1244 = vunpack.c.0.s8 %v1243
    %v1245 = vlaneseq
    %v1246 = vshrl.u32 %v1245, 7
    %v1247 = vsub.s32 %v1244, %v1246
    %v1248 = vrot.slane %v1234, %v1247
    %v1249 = vcombine.high %v1241, %v1241
    %v1250 = vcombine.high %v1248, %v1248
    %v1252 = vunpack.c.l.s4 1966171168
    %v1253 = vunpack.c.0.s8 %v1252
    %v1254 = vlaneseq
    %v1255 = vshrl.u32 %v1254, 7
    %v1256 = vsub.s32 %v1253, %v1255
    %v1257 = vrot.slane %v1241, %v1256
    %v1259 = vunpack.c.l.s4 1966171168
    %v1260 = vunpack.c.0.s8 %v1259
    %v1261 = vlaneseq
    %v1262 = vshrl.u32 %v1261, 7
    %v1263 = vsub.s32 %v1260, %v1262
    %v1264 = vrot.slane %v1248, %v1263
    %v1266 = vunpack.c.l.s4 1966171168
    %v1267 = vunpack.c.0.s8 %v1266
    %v1268 = vlaneseq
    %v1269 = vshrl.u32 %v1268, 7
    %v1270 = vsub.s32 %v1267, %v1269
    %v1271 = vrot.slane %v1249, %v1270
    %v1273 = vunpack.c.l.s4 1966171168
    %v1274 = vunpack.c.0.s8 %v1273
    %v1275 = vlaneseq
    %v1276 = vshrl.u32 %v1275, 7
    %v1277 = vsub.s32 %v1274, %v1276
    %v1278 = vrot.slane %v1250, %v1277
    %v1279 = vcombine.high %v1257, %v1257
    %v1280 = vcombine.high %v1264, %v1264
    %v1281 = vcombine.high %v1271, %v1271
    %v1282 = vcombine.high %v1278, %v1278
    %v1283 = vlaneseq
    %v1284 = vshrl.u32 %v1283, 7
    %v1285 = vsub.s32 0, %v1284
    %v1286 = vrot.slane %v1110, %v1285
    %v1287 = vlaneseq
    %v1288 = vshrl.u32 %v1287, 7
    %v1289 = vsub.s32 0, %v1288
    %v1290 = vrot.slane %v1124, %v1289
    %v1291 = vlaneseq
    %v1292 = vshrl.u32 %v1291, 7
    %v1293 = vsub.s32 0, %v1292
    %v1294 = vrot.slane %v1132, %v1293
    %v1295 = vlaneseq
    %v1296 = vshrl.u32 %v1295, 7
    %v1297 = vsub.s32 0, %v1296
    %v1298 = vrot.slane %v1134, %v1297
    %v1299 = vlaneseq
    %v1300 = vshrl.u32 %v1299, 7
    %v1301 = vsub.s32 0, %v1300
    %v1302 = vrot.slane %v1117, %v1301
    %v1303 = vlaneseq
    %v1304 = vshrl.u32 %v1303, 7
    %v1305 = vsub.s32 0, %v1304
    %v1306 = vrot.slane %v1131, %v1305
    %v1307 = vlaneseq
    %v1308 = vshrl.u32 %v1307, 7
    %v1309 = vsub.s32 0, %v1308
    %v1310 = vrot.slane %v1133, %v1309
    %v1311 = vlaneseq
    %v1312 = vshrl.u32 %v1311, 7
    %v1313 = vsub.s32 0, %v1312
    %v1314 = vrot.slane %v1135, %v1313
    %v1315 = vlaneseq
    %v1316 = vshrl.u32 %v1315, 7
    %v1317 = vsub.s32 0, %v1316
    %v1318 = vrot.slane %v1159, %v1317
    %v1319 = vlaneseq
    %v1320 = vshrl.u32 %v1319, 7
    %v1321 = vsub.s32 0, %v1320
    %v1322 = vrot.slane %v1173, %v1321
    %v1323 = vlaneseq
    %v1324 = vshrl.u32 %v1323, 7
    %v1325 = vsub.s32 0, %v1324
    %v1326 = vrot.slane %v1181, %v1325
    %v1327 = vlaneseq
    %v1328 = vshrl.u32 %v1327, 7
    %v1329 = vsub.s32 0, %v1328
    %v1330 = vrot.slane %v1183, %v1329
    %v1331 = vlaneseq
    %v1332 = vshrl.u32 %v1331, 7
    %v1333 = vsub.s32 0, %v1332
    %v1334 = vrot.slane %v1166, %v1333
    %v1335 = vlaneseq
    %v1336 = vshrl.u32 %v1335, 7
    %v1337 = vsub.s32 0, %v1336
    %v1338 = vrot.slane %v1180, %v1337
    %v1339 = vlaneseq
    %v1340 = vshrl.u32 %v1339, 7
    %v1341 = vsub.s32 0, %v1340
    %v1342 = vrot.slane %v1182, %v1341
    %v1343 = vlaneseq
    %v1344 = vshrl.u32 %v1343, 7
    %v1345 = vsub.s32 0, %v1344
    %v1346 = vrot.slane %v1184, %v1345
    %v1347 = vlaneseq
    %v1348 = vshrl.u32 %v1347, 7
    %v1349 = vsub.s32 0, %v1348
    %v1350 = vrot.slane %v1208, %v1349
    %v1351 = vlaneseq
    %v1352 = vshrl.u32 %v1351, 7
    %v1353 = vsub.s32 0, %v1352
    %v1354 = vrot.slane %v1222, %v1353
    %v1355 = vlaneseq
    %v1356 = vshrl.u32 %v1355, 7
    %v1357 = vsub.s32 0, %v1356
    %v1358 = vrot.slane %v1230, %v1357
    %v1359 = vlaneseq
    %v1360 = vshrl.u32 %v1359, 7
    %v1361 = vsub.s32 0, %v1360
    %v1362 = vrot.slane %v1232, %v1361
    %v1363 = vlaneseq
    %v1364 = vshrl.u32 %v1363, 7
    %v1365 = vsub.s32 0, %v1364
    %v1366 = vrot.slane %v1215, %v1365
    %v1367 = vlaneseq
    %v1368 = vshrl.u32 %v1367, 7
    %v1369 = vsub.s32 0, %v1368
    %v1370 = vrot.slane %v1229, %v1369
    %v1371 = vlaneseq
    %v1372 = vshrl.u32 %v1371, 7
    %v1373 = vsub.s32 0, %v1372
    %v1374 = vrot.slane %v1231, %v1373
    %v1375 = vlaneseq
    %v1376 = vshrl.u32 %v1375, 7
    %v1377 = vsub.s32 0, %v1376
    %v1378 = vrot.slane %v1233, %v1377
    %v1379 = vlaneseq
    %v1380 = vshrl.u32 %v1379, 7
    %v1381 = vsub.s32 0, %v1380
    %v1382 = vrot.slane %v1257, %v1381
    %v1383 = vlaneseq
    %v1384 = vshrl.u32 %v1383, 7
    %v1385 = vsub.s32 0, %v1384
    %v1386 = vrot.slane %v1271, %v1385
    %v1387 = vlaneseq
    %v1388 = vshrl.u32 %v1387, 7
    %v1389 = vsub.s32 0, %v1388
    %v1390 = vrot.slane %v1279, %v1389
    %v1391 = vlaneseq
    %v1392 = vshrl.u32 %v1391, 7
    %v1393 = vsub.s32 0, %v1392
    %v1394 = vrot.slane %v1281, %v1393
    %v1395 = vlaneseq
    %v1396 = vshrl.u32 %v1395, 7
    %v1397 = vsub.s32 0, %v1396
    %v1398 = vrot.slane %v1264, %v1397
    %v1399 = vlaneseq
    %v1400 = vshrl.u32 %v1399, 7
    %v1401 = vsub.s32 0, %v1400
    %v1402 = vrot.slane %v1278, %v1401
    %v1403 = vlaneseq
    %v1404 = vshrl.u32 %v1403, 7
    %v1405 = vsub.s32 0, %v1404
    %v1406 = vrot.slane %v1280, %v1405
    %v1407 = vlaneseq
    %v1408 = vshrl.u32 %v1407, 7
    %v1409 = vsub.s32 0, %v1408
    %v1410 = vrot.slane %v1282, %v1409
    %v1443 = vsub.f32 %v1286, %v343
    %v1444 = vsub.f32 %v1290, %v346
    %v1445 = vsub.f32 %v1294, %v351
    %v1446 = vsub.f32 %v1298, %v354
    %v1447 = vsub.f32 %v1302, %v359
    %v1448 = vsub.f32 %v1306, %v362
    %v1449 = vsub.f32 %v1310, %v367
    %v1450 = vsub.f32 %v1314, %v370
    %v1451 = vsub.f32 %v1318, %v375
    %v1452 = vsub.f32 %v1322, %v378
    %v1453 = vsub.f32 %v1326, %v383
    %v1454 = vsub.f32 %v1330, %v386
    %v1455 = vsub.f32 %v1334, %v391
    %v1456 = vsub.f32 %v1338, %v394
    %v1457 = vsub.f32 %v1342, %v399
    %v1458 = vsub.f32 %v1346, %v402
    %v1459 = vsub.f32 %v1350, %v407
    %v1460 = vsub.f32 %v1354, %v410
    %v1461 = vsub.f32 %v1358, %v415
    %v1462 = vsub.f32 %v1362, %v418
    %v1463 = vsub.f32 %v1366, %v423
    %v1464 = vsub.f32 %v1370, %v426
    %v1465 = vsub.f32 %v1374, %v431
    %v1466 = vsub.f32 %v1378, %v434
    %v1467 = vsub.f32 %v1382, %v439
    %v1468 = vsub.f32 %v1386, %v442
    %v1469 = vsub.f32 %v1390, %v447
    %v1470 = vsub.f32 %v1394, %v450
    %v1471 = vsub.f32 %v1398, %v455
    %v1472 = vsub.f32 %v1402, %v458
    %v1473 = vsub.f32 %v1406, %v463
    %v1474 = vsub.f32 %v1410, %v466
    %v1475 = vadd.f32 %v1443, %v957
    %v1476 = vadd.f32 %v1444, %v960
    %v1477 = vadd.f32 %v1445, %v965
    %v1478 = vadd.f32 %v1446, %v968
    %v1479 = vadd.f32 %v1447, %v973
    %v1480 = vadd.f32 %v1448, %v976
    %v1481 = vadd.f32 %v1449, %v981
    %v1482 = vadd.f32 %v1450, %v984
    %v1483 = vadd.f32 %v1451, %v989
    %v1484 = vadd.f32 %v1452, %v992
    %v1485 = vadd.f32 %v1453, %v997
    %v1486 = vadd.f32 %v1454, %v1000
    %v1487 = vadd.f32 %v1455, %v1005
    %v1488 = vadd.f32 %v1456, %v1008
    %v1489 = vadd.f32 %v1457, %v1013
    %v1490 = vadd.f32 %v1458, %v1016
    %v1491 = vadd.f32 %v1459, %v1021
    %v1492 = vadd.f32 %v1460, %v1024
    %v1493 = vadd.f32 %v1461, %v1029
    %v1494 = vadd.f32 %v1462, %v1032
    %v1495 = vadd.f32 %v1463, %v1037
    %v1496 = vadd.f32 %v1464, %v1040
    %v1497 = vadd.f32 %v1465, %v1045
    %v1498 = vadd.f32 %v1466, %v1048
    %v1499 = vadd.f32 %v1467, %v1053
    %v1500 = vadd.f32 %v1468, %v1056
    %v1501 = vadd.f32 %v1469, %v1061
    %v1502 = vadd.f32 %v1470, %v1064
    %v1503 = vadd.f32 %v1471, %v1069
    %v1504 = vadd.f32 %v1472, %v1072
    %v1505 = vadd.f32 %v1473, %v1077
    %v1506 = vadd.f32 %v1474, %v1080
    %v1507 = vpack.c.bf16 %v1476, %v1475
    %v1508 = vpack.c.bf16 %v1478, %v1477
    %v1509 = vpack.c.bf16 %v1480, %v1479
    %v1510 = vpack.c.bf16 %v1482, %v1481
    %v1511 = vpack.c.bf16 %v1484, %v1483
    %v1512 = vpack.c.bf16 %v1486, %v1485
    %v1513 = vpack.c.bf16 %v1488, %v1487
    %v1514 = vpack.c.bf16 %v1490, %v1489
    %v1515 = vpack.c.bf16 %v1492, %v1491
    %v1516 = vpack.c.bf16 %v1494, %v1493
    %v1517 = vpack.c.bf16 %v1496, %v1495
    %v1518 = vpack.c.bf16 %v1498, %v1497
    %v1519 = vpack.c.bf16 %v1500, %v1499
    %v1520 = vpack.c.bf16 %v1502, %v1501
    %v1521 = vpack.c.bf16 %v1504, %v1503
    %v1522 = vpack.c.bf16 %v1506, %v1505
    %v1523 = vld [vmem:[%s9] sm:$0xf]
    %v1524 = vld [vmem:[%s9 + $0x4] sm:$0xf]
    %v1525 = vld [vmem:[%s9 + $0x8] sm:$0xf]
    %v1526 = vld [vmem:[%s9 + $0xc] sm:$0xf]
    %v1527 = vld [vmem:[%s10] sm:$0x1]
    %v1529 = vlaneseq
    %v1530 = vshrl.u32 %v1529, 7
    %v1531 = vsub.s32 0, %v1530
    %v1532 = vrot.slane %v1527, %v1531
    %v1538 = vunpack.c.l.b16 %v1523
    %v1539 = vunpack.c.l.b16 %v1524
    %v1540 = vunpack.c.l.b16 %v1525
    %v1541 = vunpack.c.l.b16 %v1526
    %v1542 = vpack.c.b16 %v1539, %v1538
    %v1543 = vpack.c.b16 %v1541, %v1540
    %v1547 = vsel %vm108, %v1507, 0
    %v1550 = vsel %vm108, %v1508, 0
    %v1553 = vsel %vm108, %v1509, 0
    %v1556 = vsel %vm108, %v1510, 0
    %v1559 = vsel %vm108, %v1511, 0
    %v1562 = vsel %vm108, %v1512, 0
    %v1565 = vsel %vm108, %v1513, 0
    %v1568 = vsel %vm108, %v1514, 0
    %v1571 = vsel %vm108, %v1515, 0
    %v1574 = vsel %vm108, %v1516, 0
    %v1577 = vsel %vm108, %v1517, 0
    %v1580 = vsel %vm108, %v1518, 0
    %v1583 = vsel %vm108, %v1519, 0
    %v1586 = vsel %vm108, %v1520, 0
    %v1589 = vsel %vm108, %v1521, 0
    %v1592 = vsel %vm108, %v1522, 0
    %1594 = vmatprep.subr.bf16.mxu0 0
    %1595 = vmatpush1.bf16.msra.mxu0 %v1542
    %1596 = vmatprep.subr.bf16.mxu0 0
    %1597 = vmatpush1.bf16.msra.mxu0 %v1543
    %1598 = vmatprep.subr.bf16.mxu0 0
    %1599 = vmatpush1.bf16.msra.mxu0 0
    %1600 = vmatprep.subr.bf16.mxu0 0
    %1601 = vmatpush1.bf16.msra.mxu0 0
    %1602 = vmatprep.subr.bf16.mxu0 0
    %1603 = vmatpush1.bf16.msra.mxu0 0
    %1604 = vmatprep.subr.bf16.mxu0 0
    %1605 = vmatpush1.bf16.msra.mxu0 0
    %1606 = vmatprep.subr.bf16.mxu0 0
    %1607 = vmatpush1.bf16.msra.mxu0 0
    %1608 = vmatprep.subr.bf16.mxu0 0
    %1609 = vmatpush1.bf16.msra.mxu0 0
    %1610 = vmatprep.subr.bf16.mxu0 0
    %1611 = vmatpush1.bf16.msra.mxu0 0
    %1612 = vmatprep.subr.bf16.mxu0 0
    %1613 = vmatpush1.bf16.msra.mxu0 0
    %1614 = vmatprep.subr.bf16.mxu0 0
    %1615 = vmatpush1.bf16.msra.mxu0 0
    %1616 = vmatprep.subr.bf16.mxu0 0
    %1617 = vmatpush1.bf16.msra.mxu0 0
    %1618 = vmatprep.subr.bf16.mxu0 0
    %1619 = vmatpush1.bf16.msra.mxu0 0
    %1620 = vmatprep.subr.bf16.mxu0 0
    %1621 = vmatpush1.bf16.msra.mxu0 0
    %1622 = vmatprep.subr.bf16.mxu0 0
    %1623 = vmatpush1.bf16.msra.mxu0 0
    %1624 = vmatprep.subr.bf16.mxu0 0
    %1625 = vmatpush1.bf16.msra.mxu0 0
    %1626 = vmatprep.mubr.bf16.mxu0 0
    %1627 = vmatmul.mubr.bf16.gmra.mrb[0].mxu0 %v1547
    %v1628 = vpop.f32.mrb[0].mxu0
    %v1629 = vadd.f32 %v1532, %v1628
    %v1630 = vpop.f32.mrb[0].mxu0
    %v1631 = vpop.f32.mrb[0].mxu0
    %v1632 = vadd.f32 %v1532, %v1631
    %v1633 = vpop.f32.mrb[0].mxu0
    %1634 = vmatprep.mubr.bf16.mxu0 0
    %1635 = vmatmul.mubr.bf16.gmra.mrb[0].mxu0 %v1550
    %v1636 = vpop.f32.mrb[0].mxu0
    %v1637 = vadd.f32 %v1532, %v1636
    %v1638 = vpop.f32.mrb[0].mxu0
    %v1639 = vpop.f32.mrb[0].mxu0
    %v1640 = vadd.f32 %v1532, %v1639
    %v1641 = vpop.f32.mrb[0].mxu0
    %1642 = vmatprep.mubr.bf16.mxu0 0
    %1643 = vmatmul.mubr.bf16.gmra.mrb[0].mxu0 %v1553
    %v1644 = vpop.f32.mrb[0].mxu0
    %v1645 = vadd.f32 %v1532, %v1644
    %v1646 = vpop.f32.mrb[0].mxu0
    %v1647 = vpop.f32.mrb[0].mxu0
    %v1648 = vadd.f32 %v1532, %v1647
    %v1649 = vpop.f32.mrb[0].mxu0
    %1650 = vmatprep.mubr.bf16.mxu0 0
    %1651 = vmatmul.mubr.bf16.gmra.mrb[0].mxu0 %v1556
    %v1652 = vpop.f32.mrb[0].mxu0
    %v1653 = vadd.f32 %v1532, %v1652
    %v1654 = vpop.f32.mrb[0].mxu0
    %v1655 = vpop.f32.mrb[0].mxu0
    %v1656 = vadd.f32 %v1532, %v1655
    %v1657 = vpop.f32.mrb[0].mxu0
    %1658 = vmatprep.mubr.bf16.mxu0 0
    %1659 = vmatmul.mubr.bf16.gmra.mrb[0].mxu0 %v1559
    %v1660 = vpop.f32.mrb[0].mxu0
    %v1661 = vadd.f32 %v1532, %v1660
    %v1662 = vpop.f32.mrb[0].mxu0
    %v1663 = vpop.f32.mrb[0].mxu0
    %v1664 = vadd.f32 %v1532, %v1663
    %v1665 = vpop.f32.mrb[0].mxu0
    %1666 = vmatprep.mubr.bf16.mxu0 0
    %1667 = vmatmul.mubr.bf16.gmra.mrb[0].mxu0 %v1562
    %v1668 = vpop.f32.mrb[0].mxu0
    %v1669 = vadd.f32 %v1532, %v1668
    %v1670 = vpop.f32.mrb[0].mxu0
    %v1671 = vpop.f32.mrb[0].mxu0
    %v1672 = vadd.f32 %v1532, %v1671
    %v1673 = vpop.f32.mrb[0].mxu0
    %1674 = vmatprep.mubr.bf16.mxu0 0
    %1675 = vmatmul.mubr.bf16.gmra.mrb[0].mxu0 %v1565
    %v1676 = vpop.f32.mrb[0].mxu0
    %v1677 = vadd.f32 %v1532, %v1676
    %v1678 = vpop.f32.mrb[0].mxu0
    %v1679 = vpop.f32.mrb[0].mxu0
    %v1680 = vadd.f32 %v1532, %v1679
    %v1681 = vpop.f32.mrb[0].mxu0
    %1682 = vmatprep.mubr.bf16.mxu0 0
    %1683 = vmatmul.mubr.bf16.gmra.mrb[0].mxu0 %v1568
    %v1684 = vpop.f32.mrb[0].mxu0
    %v1685 = vadd.f32 %v1532, %v1684
    %v1686 = vpop.f32.mrb[0].mxu0
    %v1687 = vpop.f32.mrb[0].mxu0
    %v1688 = vadd.f32 %v1532, %v1687
    %v1689 = vpop.f32.mrb[0].mxu0
    %1690 = vmatprep.mubr.bf16.mxu0 0
    %1691 = vmatmul.mubr.bf16.gmra.mrb[0].mxu0 %v1571
    %v1692 = vpop.f32.mrb[0].mxu0
    %v1693 = vadd.f32 %v1532, %v1692
    %v1694 = vpop.f32.mrb[0].mxu0
    %v1695 = vpop.f32.mrb[0].mxu0
    %v1696 = vadd.f32 %v1532, %v1695
    %v1697 = vpop.f32.mrb[0].mxu0
    %1698 = vmatprep.mubr.bf16.mxu0 0
    %1699 = vmatmul.mubr.bf16.gmra.mrb[0].mxu0 %v1574
    %v1700 = vpop.f32.mrb[0].mxu0
    %v1701 = vadd.f32 %v1532, %v1700
    %v1702 = vpop.f32.mrb[0].mxu0
    %v1703 = vpop.f32.mrb[0].mxu0
    %v1704 = vadd.f32 %v1532, %v1703
    %v1705 = vpop.f32.mrb[0].mxu0
    %1706 = vmatprep.mubr.bf16.mxu0 0
    %1707 = vmatmul.mubr.bf16.gmra.mrb[0].mxu0 %v1577
    %v1708 = vpop.f32.mrb[0].mxu0
    %v1709 = vadd.f32 %v1532, %v1708
    %v1710 = vpop.f32.mrb[0].mxu0
    %v1711 = vpop.f32.mrb[0].mxu0
    %v1712 = vadd.f32 %v1532, %v1711
    %v1713 = vpop.f32.mrb[0].mxu0
    %1714 = vmatprep.mubr.bf16.mxu0 0
    %1715 = vmatmul.mubr.bf16.gmra.mrb[0].mxu0 %v1580
    %v1716 = vpop.f32.mrb[0].mxu0
    %v1717 = vadd.f32 %v1532, %v1716
    %v1718 = vpop.f32.mrb[0].mxu0
    %v1719 = vpop.f32.mrb[0].mxu0
    %v1720 = vadd.f32 %v1532, %v1719
    %v1721 = vpop.f32.mrb[0].mxu0
    %1722 = vmatprep.mubr.bf16.mxu0 0
    %1723 = vmatmul.mubr.bf16.gmra.mrb[0].mxu0 %v1583
    %v1724 = vpop.f32.mrb[0].mxu0
    %v1725 = vadd.f32 %v1532, %v1724
    %v1726 = vpop.f32.mrb[0].mxu0
    %v1727 = vpop.f32.mrb[0].mxu0
    %v1728 = vadd.f32 %v1532, %v1727
    %v1729 = vpop.f32.mrb[0].mxu0
    %1730 = vmatprep.mubr.bf16.mxu0 0
    %1731 = vmatmul.mubr.bf16.gmra.mrb[0].mxu0 %v1586
    %v1732 = vpop.f32.mrb[0].mxu0
    %v1733 = vadd.f32 %v1532, %v1732
    %v1734 = vpop.f32.mrb[0].mxu0
    %v1735 = vpop.f32.mrb[0].mxu0
    %v1736 = vadd.f32 %v1532, %v1735
    %v1737 = vpop.f32.mrb[0].mxu0
    %1738 = vmatprep.mubr.bf16.mxu0 0
    %1739 = vmatmul.mubr.bf16.gmra.mrb[0].mxu0 %v1589
    %v1740 = vpop.f32.mrb[0].mxu0
    %v1741 = vadd.f32 %v1532, %v1740
    %v1742 = vpop.f32.mrb[0].mxu0
    %v1743 = vpop.f32.mrb[0].mxu0
    %v1744 = vadd.f32 %v1532, %v1743
    %v1745 = vpop.f32.mrb[0].mxu0
    %1746 = vmatprep.mubr.bf16.mxu0 0
    %1747 = vmatmul.mubr.bf16.gmra.mrb[0].mxu0 %v1592
    %v1748 = vpop.f32.mrb[0].mxu0
    %v1749 = vadd.f32 %v1532, %v1748
    %v1750 = vpop.f32.mrb[0].mxu0
    %v1751 = vpop.f32.mrb[0].mxu0
    %v1752 = vadd.f32 %v1532, %v1751
    %v1753 = vpop.f32.mrb[0].mxu0
    %1754 = vdwg.mxu0
    %v1755 = vmax.f32 %v1629, 0.0
    %v1756 = vmax.f32 %v1632, 0.0
    %v1757 = vmax.f32 %v1637, 0.0
    %v1758 = vmax.f32 %v1640, 0.0
    %v1759 = vmax.f32 %v1645, 0.0
    %v1760 = vmax.f32 %v1648, 0.0
    %v1761 = vmax.f32 %v1653, 0.0
    %v1762 = vmax.f32 %v1656, 0.0
    %v1763 = vmax.f32 %v1661, 0.0
    %v1764 = vmax.f32 %v1664, 0.0
    %v1765 = vmax.f32 %v1669, 0.0
    %v1766 = vmax.f32 %v1672, 0.0
    %v1767 = vmax.f32 %v1677, 0.0
    %v1768 = vmax.f32 %v1680, 0.0
    %v1769 = vmax.f32 %v1685, 0.0
    %v1770 = vmax.f32 %v1688, 0.0
    %v1771 = vmax.f32 %v1693, 0.0
    %v1772 = vmax.f32 %v1696, 0.0
    %v1773 = vmax.f32 %v1701, 0.0
    %v1774 = vmax.f32 %v1704, 0.0
    %v1775 = vmax.f32 %v1709, 0.0
    %v1776 = vmax.f32 %v1712, 0.0
    %v1777 = vmax.f32 %v1717, 0.0
    %v1778 = vmax.f32 %v1720, 0.0
    %v1779 = vmax.f32 %v1725, 0.0
    %v1780 = vmax.f32 %v1728, 0.0
    %v1781 = vmax.f32 %v1733, 0.0
    %v1782 = vmax.f32 %v1736, 0.0
    %v1783 = vmax.f32 %v1741, 0.0
    %v1784 = vmax.f32 %v1744, 0.0
    %v1785 = vmax.f32 %v1749, 0.0
    %v1786 = vmax.f32 %v1752, 0.0
    %v1787 = vpack.c.bf16 %v1756, %v1755
    %v1788 = vpack.c.bf16 %v1758, %v1757
    %v1789 = vpack.c.bf16 %v1760, %v1759
    %v1790 = vpack.c.bf16 %v1762, %v1761
    %v1791 = vpack.c.bf16 %v1764, %v1763
    %v1792 = vpack.c.bf16 %v1766, %v1765
    %v1793 = vpack.c.bf16 %v1768, %v1767
    %v1794 = vpack.c.bf16 %v1770, %v1769
    %v1795 = vpack.c.bf16 %v1772, %v1771
    %v1796 = vpack.c.bf16 %v1774, %v1773
    %v1797 = vpack.c.bf16 %v1776, %v1775
    %v1798 = vpack.c.bf16 %v1778, %v1777
    %v1799 = vpack.c.bf16 %v1780, %v1779
    %v1800 = vpack.c.bf16 %v1782, %v1781
    %v1801 = vpack.c.bf16 %v1784, %v1783
    %v1802 = vpack.c.bf16 %v1786, %v1785
    %v1803 = vld [vmem:[%s11] sm:$0xf]
    %v1804 = vld [vmem:[%s11 + $0x4] sm:$0xf]
    %v1805 = vld [vmem:[%s11 + $0x8] sm:$0xf]
    %v1806 = vld [vmem:[%s11 + $0xc] sm:$0xf]
    %v1807 = vld [vmem:[%s11 + $0x10] sm:$0xf]
    %v1808 = vld [vmem:[%s11 + $0x14] sm:$0xf]
    %v1809 = vld [vmem:[%s11 + $0x18] sm:$0xf]
    %v1810 = vld [vmem:[%s11 + $0x1c] sm:$0xf]
    %v1811 = vld [vmem:[%s12] sm:$0x1]
    %v1813 = vlaneseq
    %v1814 = vshrl.u32 %v1813, 7
    %v1815 = vsub.s32 0, %v1814
    %v1816 = vrot.slane %v1811, %v1815
    %v1826 = vunpack.c.l.b16 %v1803
    %v1827 = vunpack.c.l.b16 %v1804
    %v1828 = vunpack.c.l.b16 %v1805
    %v1829 = vunpack.c.l.b16 %v1806
    %v1830 = vunpack.c.l.b16 %v1807
    %v1831 = vunpack.c.l.b16 %v1808
    %v1832 = vunpack.c.l.b16 %v1809
    %v1833 = vunpack.c.l.b16 %v1810
    %v1834 = vpack.c.b16 %v1827, %v1826
    %v1835 = vpack.c.b16 %v1829, %v1828
    %v1836 = vpack.c.b16 %v1831, %v1830
    %v1837 = vpack.c.b16 %v1833, %v1832
    %vm1842 = vcmask 523264
    %v1844 = vsel %vm1842, %v1787, 0
    %v1847 = vsel %vm1842, %v1788, 0
    %v1850 = vsel %vm1842, %v1789, 0
    %v1853 = vsel %vm1842, %v1790, 0
    %v1856 = vsel %vm1842, %v1791, 0
    %v1859 = vsel %vm1842, %v1792, 0
    %v1862 = vsel %vm1842, %v1793, 0
    %v1865 = vsel %vm1842, %v1794, 0
    %v1868 = vsel %vm1842, %v1795, 0
    %v1871 = vsel %vm1842, %v1796, 0
    %v1874 = vsel %vm1842, %v1797, 0
    %v1877 = vsel %vm1842, %v1798, 0
    %v1880 = vsel %vm1842, %v1799, 0
    %v1883 = vsel %vm1842, %v1800, 0
    %v1886 = vsel %vm1842, %v1801, 0
    %v1889 = vsel %vm1842, %v1802, 0
    %1891 = vmatprep.subr.bf16.mxu0 0
    %1892 = vmatpush1.bf16.msra.mxu0 %v1834
    %1893 = vmatprep.subr.bf16.mxu0 0
    %1894 = vmatpush1.bf16.msra.mxu0 %v1835
    %1895 = vmatprep.subr.bf16.mxu0 0
    %1896 = vmatpush1.bf16.msra.mxu0 %v1836
    %1897 = vmatprep.subr.bf16.mxu0 0
    %1898 = vmatpush1.bf16.msra.mxu0 %v1837
    %1899 = vmatprep.subr.bf16.mxu0 0
    %1900 = vmatpush1.bf16.msra.mxu0 0
    %1901 = vmatprep.subr.bf16.mxu0 0
    %1902 = vmatpush1.bf16.msra.mxu0 0
    %1903 = vmatprep.subr.bf16.mxu0 0
    %1904 = vmatpush1.bf16.msra.mxu0 0
    %1905 = vmatprep.subr.bf16.mxu0 0
    %1906 = vmatpush1.bf16.msra.mxu0 0
    %1907 = vmatprep.subr.bf16.mxu0 0
    %1908 = vmatpush1.bf16.msra.mxu0 0
    %1909 = vmatprep.subr.bf16.mxu0 0
    %1910 = vmatpush1.bf16.msra.mxu0 0
    %1911 = vmatprep.subr.bf16.mxu0 0
    %1912 = vmatpush1.bf16.msra.mxu0 0
    %1913 = vmatprep.subr.bf16.mxu0 0
    %1914 = vmatpush1.bf16.msra.mxu0 0
    %1915 = vmatprep.subr.bf16.mxu0 0
    %1916 = vmatpush1.bf16.msra.mxu0 0
    %1917 = vmatprep.subr.bf16.mxu0 0
    %1918 = vmatpush1.bf16.msra.mxu0 0
    %1919 = vmatprep.subr.bf16.mxu0 0
    %1920 = vmatpush1.bf16.msra.mxu0 0
    %1921 = vmatprep.subr.bf16.mxu0 0
    %1922 = vmatpush1.bf16.msra.mxu0 0
    %1923 = vmatprep.mubr.bf16.mxu0 0
    %1924 = vmatmul.mubr.bf16.gmra.mrb[0].mxu0 %v1844
    %v1925 = vpop.f32.mrb[0].mxu0
    %v1926 = vadd.f32 %v1816, %v1925
    %v1927 = vpop.f32.mrb[0].mxu0
    %v1928 = vpop.f32.mrb[0].mxu0
    %v1929 = vadd.f32 %v1816, %v1928
    %v1930 = vpop.f32.mrb[0].mxu0
    %1931 = vmatprep.mubr.bf16.mxu0 0
    %1932 = vmatmul.mubr.bf16.gmra.mrb[0].mxu0 %v1847
    %v1933 = vpop.f32.mrb[0].mxu0
    %v1934 = vadd.f32 %v1816, %v1933
    %v1935 = vpop.f32.mrb[0].mxu0
    %v1936 = vpop.f32.mrb[0].mxu0
    %v1937 = vadd.f32 %v1816, %v1936
    %v1938 = vpop.f32.mrb[0].mxu0
    %1939 = vmatprep.mubr.bf16.mxu0 0
    %1940 = vmatmul.mubr.bf16.gmra.mrb[0].mxu0 %v1850
    %v1941 = vpop.f32.mrb[0].mxu0
    %v1942 = vadd.f32 %v1816, %v1941
    %v1943 = vpop.f32.mrb[0].mxu0
    %v1944 = vpop.f32.mrb[0].mxu0
    %v1945 = vadd.f32 %v1816, %v1944
    %v1946 = vpop.f32.mrb[0].mxu0
    %1947 = vmatprep.mubr.bf16.mxu0 0
    %1948 = vmatmul.mubr.bf16.gmra.mrb[0].mxu0 %v1853
    %v1949 = vpop.f32.mrb[0].mxu0
    %v1950 = vadd.f32 %v1816, %v1949
    %v1951 = vpop.f32.mrb[0].mxu0
    %v1952 = vpop.f32.mrb[0].mxu0
    %v1953 = vadd.f32 %v1816, %v1952
    %v1954 = vpop.f32.mrb[0].mxu0
    %1955 = vmatprep.mubr.bf16.mxu0 0
    %1956 = vmatmul.mubr.bf16.gmra.mrb[0].mxu0 %v1856
    %v1957 = vpop.f32.mrb[0].mxu0
    %v1958 = vadd.f32 %v1816, %v1957
    %v1959 = vpop.f32.mrb[0].mxu0
    %v1960 = vpop.f32.mrb[0].mxu0
    %v1961 = vadd.f32 %v1816, %v1960
    %v1962 = vpop.f32.mrb[0].mxu0
    %1963 = vmatprep.mubr.bf16.mxu0 0
    %1964 = vmatmul.mubr.bf16.gmra.mrb[0].mxu0 %v1859
    %v1965 = vpop.f32.mrb[0].mxu0
    %v1966 = vadd.f32 %v1816, %v1965
    %v1967 = vpop.f32.mrb[0].mxu0
    %v1968 = vpop.f32.mrb[0].mxu0
    %v1969 = vadd.f32 %v1816, %v1968
    %v1970 = vpop.f32.mrb[0].mxu0
    %1971 = vmatprep.mubr.bf16.mxu0 0
    %1972 = vmatmul.mubr.bf16.gmra.mrb[0].mxu0 %v1862
    %v1973 = vpop.f32.mrb[0].mxu0
    %v1974 = vadd.f32 %v1816, %v1973
    %v1975 = vpop.f32.mrb[0].mxu0
    %v1976 = vpop.f32.mrb[0].mxu0
    %v1977 = vadd.f32 %v1816, %v1976
    %v1978 = vpop.f32.mrb[0].mxu0
    %1979 = vmatprep.mubr.bf16.mxu0 0
    %1980 = vmatmul.mubr.bf16.gmra.mrb[0].mxu0 %v1865
    %v1981 = vpop.f32.mrb[0].mxu0
    %v1982 = vadd.f32 %v1816, %v1981
    %v1983 = vpop.f32.mrb[0].mxu0
    %v1984 = vpop.f32.mrb[0].mxu0
    %v1985 = vadd.f32 %v1816, %v1984
    %v1986 = vpop.f32.mrb[0].mxu0
    %1987 = vmatprep.mubr.bf16.mxu0 0
    %1988 = vmatmul.mubr.bf16.gmra.mrb[0].mxu0 %v1868
    %v1989 = vpop.f32.mrb[0].mxu0
    %v1990 = vadd.f32 %v1816, %v1989
    %v1991 = vpop.f32.mrb[0].mxu0
    %v1992 = vpop.f32.mrb[0].mxu0
    %v1993 = vadd.f32 %v1816, %v1992
    %v1994 = vpop.f32.mrb[0].mxu0
    %1995 = vmatprep.mubr.bf16.mxu0 0
    %1996 = vmatmul.mubr.bf16.gmra.mrb[0].mxu0 %v1871
    %v1997 = vpop.f32.mrb[0].mxu0
    %v1998 = vadd.f32 %v1816, %v1997
    %v1999 = vpop.f32.mrb[0].mxu0
    %v2000 = vpop.f32.mrb[0].mxu0
    %v2001 = vadd.f32 %v1816, %v2000
    %v2002 = vpop.f32.mrb[0].mxu0
    %2003 = vmatprep.mubr.bf16.mxu0 0
    %2004 = vmatmul.mubr.bf16.gmra.mrb[0].mxu0 %v1874
    %v2005 = vpop.f32.mrb[0].mxu0
    %v2006 = vadd.f32 %v1816, %v2005
    %v2007 = vpop.f32.mrb[0].mxu0
    %v2008 = vpop.f32.mrb[0].mxu0
    %v2009 = vadd.f32 %v1816, %v2008
    %v2010 = vpop.f32.mrb[0].mxu0
    %2011 = vmatprep.mubr.bf16.mxu0 0
    %2012 = vmatmul.mubr.bf16.gmra.mrb[0].mxu0 %v1877
    %v2013 = vpop.f32.mrb[0].mxu0
    %v2014 = vadd.f32 %v1816, %v2013
    %v2015 = vpop.f32.mrb[0].mxu0
    %v2016 = vpop.f32.mrb[0].mxu0
    %v2017 = vadd.f32 %v1816, %v2016
    %v2018 = vpop.f32.mrb[0].mxu0
    %2019 = vmatprep.mubr.bf16.mxu0 0
    %2020 = vmatmul.mubr.bf16.gmra.mrb[0].mxu0 %v1880
    %v2021 = vpop.f32.mrb[0].mxu0
    %v2022 = vadd.f32 %v1816, %v2021
    %v2023 = vpop.f32.mrb[0].mxu0
    %v2024 = vpop.f32.mrb[0].mxu0
    %v2025 = vadd.f32 %v1816, %v2024
    %v2026 = vpop.f32.mrb[0].mxu0
    %2027 = vmatprep.mubr.bf16.mxu0 0
    %2028 = vmatmul.mubr.bf16.gmra.mrb[0].mxu0 %v1883
    %v2029 = vpop.f32.mrb[0].mxu0
    %v2030 = vadd.f32 %v1816, %v2029
    %v2031 = vpop.f32.mrb[0].mxu0
    %v2032 = vpop.f32.mrb[0].mxu0
    %v2033 = vadd.f32 %v1816, %v2032
    %v2034 = vpop.f32.mrb[0].mxu0
    %2035 = vmatprep.mubr.bf16.mxu0 0
    %2036 = vmatmul.mubr.bf16.gmra.mrb[0].mxu0 %v1886
    %v2037 = vpop.f32.mrb[0].mxu0
    %v2038 = vadd.f32 %v1816, %v2037
    %v2039 = vpop.f32.mrb[0].mxu0
    %v2040 = vpop.f32.mrb[0].mxu0
    %v2041 = vadd.f32 %v1816, %v2040
    %v2042 = vpop.f32.mrb[0].mxu0
    %2043 = vmatprep.mubr.bf16.mxu0 0
    %2044 = vmatmul.mubr.bf16.gmra.mrb[0].mxu0 %v1889
    %v2045 = vpop.f32.mrb[0].mxu0
    %v2046 = vadd.f32 %v1816, %v2045
    %v2047 = vpop.f32.mrb[0].mxu0
    %v2048 = vpop.f32.mrb[0].mxu0
    %v2049 = vadd.f32 %v1816, %v2048
    %v2050 = vpop.f32.mrb[0].mxu0
    %2051 = vdwg.mxu0
    %v2052 = vsel %vm108, %v1926, -inf
    %v2053 = vrot.slane %v2052, 4
    %v2054 = vmax.f32 %v2052, %v2053
    %v2055 = vrot.slane %v2054, 2
    %v2056 = vmax.f32 %v2054, %v2055
    %v2057 = vrot.slane %v2056, 1
    %v2058 = vmax.f32 %v2056, %v2057
    %v2059 = vsel %vm108, %v1929, -inf
    %v2060 = vrot.slane %v2059, 4
    %v2061 = vmax.f32 %v2059, %v2060
    %v2062 = vrot.slane %v2061, 2
    %v2063 = vmax.f32 %v2061, %v2062
    %v2064 = vrot.slane %v2063, 1
    %v2065 = vmax.f32 %v2063, %v2064
    %v2066 = vsel %vm108, %v1934, -inf
    %v2067 = vrot.slane %v2066, 4
    %v2068 = vmax.f32 %v2066, %v2067
    %v2069 = vrot.slane %v2068, 2
    %v2070 = vmax.f32 %v2068, %v2069
    %v2071 = vrot.slane %v2070, 1
    %v2072 = vmax.f32 %v2070, %v2071
    %v2073 = vsel %vm108, %v1937, -inf
    %v2074 = vrot.slane %v2073, 4
    %v2075 = vmax.f32 %v2073, %v2074
    %v2076 = vrot.slane %v2075, 2
    %v2077 = vmax.f32 %v2075, %v2076
    %v2078 = vrot.slane %v2077, 1
    %v2079 = vmax.f32 %v2077, %v2078
    %v2080 = vsel %vm108, %v1942, -inf
    %v2081 = vrot.slane %v2080, 4
    %v2082 = vmax.f32 %v2080, %v2081
    %v2083 = vrot.slane %v2082, 2
    %v2084 = vmax.f32 %v2082, %v2083
    %v2085 = vrot.slane %v2084, 1
    %v2086 = vmax.f32 %v2084, %v2085
    %v2087 = vsel %vm108, %v1945, -inf
    %v2088 = vrot.slane %v2087, 4
    %v2089 = vmax.f32 %v2087, %v2088
    %v2090 = vrot.slane %v2089, 2
    %v2091 = vmax.f32 %v2089, %v2090
    %v2092 = vrot.slane %v2091, 1
    %v2093 = vmax.f32 %v2091, %v2092
    %v2094 = vsel %vm108, %v1950, -inf
    %v2095 = vrot.slane %v2094, 4
    %v2096 = vmax.f32 %v2094, %v2095
    %v2097 = vrot.slane %v2096, 2
    %v2098 = vmax.f32 %v2096, %v2097
    %v2099 = vrot.slane %v2098, 1
    %v2100 = vmax.f32 %v2098, %v2099
    %v2101 = vsel %vm108, %v1953, -inf
    %v2102 = vrot.slane %v2101, 4
    %v2103 = vmax.f32 %v2101, %v2102
    %v2104 = vrot.slane %v2103, 2
    %v2105 = vmax.f32 %v2103, %v2104
    %v2106 = vrot.slane %v2105, 1
    %v2107 = vmax.f32 %v2105, %v2106
    %v2108 = vsel %vm108, %v1958, -inf
    %v2109 = vrot.slane %v2108, 4
    %v2110 = vmax.f32 %v2108, %v2109
    %v2111 = vrot.slane %v2110, 2
    %v2112 = vmax.f32 %v2110, %v2111
    %v2113 = vrot.slane %v2112, 1
    %v2114 = vmax.f32 %v2112, %v2113
    %v2115 = vsel %vm108, %v1961, -inf
    %v2116 = vrot.slane %v2115, 4
    %v2117 = vmax.f32 %v2115, %v2116
    %v2118 = vrot.slane %v2117, 2
    %v2119 = vmax.f32 %v2117, %v2118
    %v2120 = vrot.slane %v2119, 1
    %v2121 = vmax.f32 %v2119, %v2120
    %v2122 = vsel %vm108, %v1966, -inf
    %v2123 = vrot.slane %v2122, 4
    %v2124 = vmax.f32 %v2122, %v2123
    %v2125 = vrot.slane %v2124, 2
    %v2126 = vmax.f32 %v2124, %v2125
    %v2127 = vrot.slane %v2126, 1
    %v2128 = vmax.f32 %v2126, %v2127
    %v2129 = vsel %vm108, %v1969, -inf
    %v2130 = vrot.slane %v2129, 4
    %v2131 = vmax.f32 %v2129, %v2130
    %v2132 = vrot.slane %v2131, 2
    %v2133 = vmax.f32 %v2131, %v2132
    %v2134 = vrot.slane %v2133, 1
    %v2135 = vmax.f32 %v2133, %v2134
    %v2136 = vsel %vm108, %v1974, -inf
    %v2137 = vrot.slane %v2136, 4
    %v2138 = vmax.f32 %v2136, %v2137
    %v2139 = vrot.slane %v2138, 2
    %v2140 = vmax.f32 %v2138, %v2139
    %v2141 = vrot.slane %v2140, 1
    %v2142 = vmax.f32 %v2140, %v2141
    %v2143 = vsel %vm108, %v1977, -inf
    %v2144 = vrot.slane %v2143, 4
    %v2145 = vmax.f32 %v2143, %v2144
    %v2146 = vrot.slane %v2145, 2
    %v2147 = vmax.f32 %v2145, %v2146
    %v2148 = vrot.slane %v2147, 1
    %v2149 = vmax.f32 %v2147, %v2148
    %v2150 = vsel %vm108, %v1982, -inf
    %v2151 = vrot.slane %v2150, 4
    %v2152 = vmax.f32 %v2150, %v2151
    %v2153 = vrot.slane %v2152, 2
    %v2154 = vmax.f32 %v2152, %v2153
    %v2155 = vrot.slane %v2154, 1
    %v2156 = vmax.f32 %v2154, %v2155
    %v2157 = vsel %vm108, %v1985, -inf
    %v2158 = vrot.slane %v2157, 4
    %v2159 = vmax.f32 %v2157, %v2158
    %v2160 = vrot.slane %v2159, 2
    %v2161 = vmax.f32 %v2159, %v2160
    %v2162 = vrot.slane %v2161, 1
    %v2163 = vmax.f32 %v2161, %v2162
    %v2164 = vsel %vm108, %v1990, -inf
    %v2165 = vrot.slane %v2164, 4
    %v2166 = vmax.f32 %v2164, %v2165
    %v2167 = vrot.slane %v2166, 2
    %v2168 = vmax.f32 %v2166, %v2167
    %v2169 = vrot.slane %v2168, 1
    %v2170 = vmax.f32 %v2168, %v2169
    %v2171 = vsel %vm108, %v1993, -inf
    %v2172 = vrot.slane %v2171, 4
    %v2173 = vmax.f32 %v2171, %v2172
    %v2174 = vrot.slane %v2173, 2
    %v2175 = vmax.f32 %v2173, %v2174
    %v2176 = vrot.slane %v2175, 1
    %v2177 = vmax.f32 %v2175, %v2176
    %v2178 = vsel %vm108, %v1998, -inf
    %v2179 = vrot.slane %v2178, 4
    %v2180 = vmax.f32 %v2178, %v2179
    %v2181 = vrot.slane %v2180, 2
    %v2182 = vmax.f32 %v2180, %v2181
    %v2183 = vrot.slane %v2182, 1
    %v2184 = vmax.f32 %v2182, %v2183
    %v2185 = vsel %vm108, %v2001, -inf
    %v2186 = vrot.slane %v2185, 4
    %v2187 = vmax.f32 %v2185, %v2186
    %v2188 = vrot.slane %v2187, 2
    %v2189 = vmax.f32 %v2187, %v2188
    %v2190 = vrot.slane %v2189, 1
    %v2191 = vmax.f32 %v2189, %v2190
    %v2192 = vsel %vm108, %v2006, -inf
    %v2193 = vrot.slane %v2192, 4
    %v2194 = vmax.f32 %v2192, %v2193
    %v2195 = vrot.slane %v2194, 2
    %v2196 = vmax.f32 %v2194, %v2195
    %v2197 = vrot.slane %v2196, 1
    %v2198 = vmax.f32 %v2196, %v2197
    %v2199 = vsel %vm108, %v2009, -inf
    %v2200 = vrot.slane %v2199, 4
    %v2201 = vmax.f32 %v2199, %v2200
    %v2202 = vrot.slane %v2201, 2
    %v2203 = vmax.f32 %v2201, %v2202
    %v2204 = vrot.slane %v2203, 1
    %v2205 = vmax.f32 %v2203, %v2204
    %v2206 = vsel %vm108, %v2014, -inf
    %v2207 = vrot.slane %v2206, 4
    %v2208 = vmax.f32 %v2206, %v2207
    %v2209 = vrot.slane %v2208, 2
    %v2210 = vmax.f32 %v2208, %v2209
    %v2211 = vrot.slane %v2210, 1
    %v2212 = vmax.f32 %v2210, %v2211
    %v2213 = vsel %vm108, %v2017, -inf
    %v2214 = vrot.slane %v2213, 4
    %v2215 = vmax.f32 %v2213, %v2214
    %v2216 = vrot.slane %v2215, 2
    %v2217 = vmax.f32 %v2215, %v2216
    %v2218 = vrot.slane %v2217, 1
    %v2219 = vmax.f32 %v2217, %v2218
    %v2220 = vsel %vm108, %v2022, -inf
    %v2221 = vrot.slane %v2220, 4
    %v2222 = vmax.f32 %v2220, %v2221
    %v2223 = vrot.slane %v2222, 2
    %v2224 = vmax.f32 %v2222, %v2223
    %v2225 = vrot.slane %v2224, 1
    %v2226 = vmax.f32 %v2224, %v2225
    %v2227 = vsel %vm108, %v2025, -inf
    %v2228 = vrot.slane %v2227, 4
    %v2229 = vmax.f32 %v2227, %v2228
    %v2230 = vrot.slane %v2229, 2
    %v2231 = vmax.f32 %v2229, %v2230
    %v2232 = vrot.slane %v2231, 1
    %v2233 = vmax.f32 %v2231, %v2232
    %v2234 = vsel %vm108, %v2030, -inf
    %v2235 = vrot.slane %v2234, 4
    %v2236 = vmax.f32 %v2234, %v2235
    %v2237 = vrot.slane %v2236, 2
    %v2238 = vmax.f32 %v2236, %v2237
    %v2239 = vrot.slane %v2238, 1
    %v2240 = vmax.f32 %v2238, %v2239
    %v2241 = vsel %vm108, %v2033, -inf
    %v2242 = vrot.slane %v2241, 4
    %v2243 = vmax.f32 %v2241, %v2242
    %v2244 = vrot.slane %v2243, 2
    %v2245 = vmax.f32 %v2243, %v2244
    %v2246 = vrot.slane %v2245, 1
    %v2247 = vmax.f32 %v2245, %v2246
    %v2248 = vsel %vm108, %v2038, -inf
    %v2249 = vrot.slane %v2248, 4
    %v2250 = vmax.f32 %v2248, %v2249
    %v2251 = vrot.slane %v2250, 2
    %v2252 = vmax.f32 %v2250, %v2251
    %v2253 = vrot.slane %v2252, 1
    %v2254 = vmax.f32 %v2252, %v2253
    %v2255 = vsel %vm108, %v2041, -inf
    %v2256 = vrot.slane %v2255, 4
    %v2257 = vmax.f32 %v2255, %v2256
    %v2258 = vrot.slane %v2257, 2
    %v2259 = vmax.f32 %v2257, %v2258
    %v2260 = vrot.slane %v2259, 1
    %v2261 = vmax.f32 %v2259, %v2260
    %v2262 = vsel %vm108, %v2046, -inf
    %v2263 = vrot.slane %v2262, 4
    %v2264 = vmax.f32 %v2262, %v2263
    %v2265 = vrot.slane %v2264, 2
    %v2266 = vmax.f32 %v2264, %v2265
    %v2267 = vrot.slane %v2266, 1
    %v2268 = vmax.f32 %v2266, %v2267
    %v2269 = vsel %vm108, %v2049, -inf
    %v2270 = vrot.slane %v2269, 4
    %v2271 = vmax.f32 %v2269, %v2270
    %v2272 = vrot.slane %v2271, 2
    %v2273 = vmax.f32 %v2271, %v2272
    %v2274 = vrot.slane %v2273, 1
    %v2275 = vmax.f32 %v2273, %v2274
    %v2276 = vsub.f32 %v1926, %v2058
    %v2277 = vsub.f32 %v1929, %v2065
    %v2278 = vsub.f32 %v1934, %v2072
    %v2279 = vsub.f32 %v1937, %v2079
    %v2280 = vsub.f32 %v1942, %v2086
    %v2281 = vsub.f32 %v1945, %v2093
    %v2282 = vsub.f32 %v1950, %v2100
    %v2283 = vsub.f32 %v1953, %v2107
    %v2284 = vsub.f32 %v1958, %v2114
    %v2285 = vsub.f32 %v1961, %v2121
    %v2286 = vsub.f32 %v1966, %v2128
    %v2287 = vsub.f32 %v1969, %v2135
    %v2288 = vsub.f32 %v1974, %v2142
    %v2289 = vsub.f32 %v1977, %v2149
    %v2290 = vsub.f32 %v1982, %v2156
    %v2291 = vsub.f32 %v1985, %v2163
    %v2292 = vsub.f32 %v1990, %v2170
    %v2293 = vsub.f32 %v1993, %v2177
    %v2294 = vsub.f32 %v1998, %v2184
    %v2295 = vsub.f32 %v2001, %v2191
    %v2296 = vsub.f32 %v2006, %v2198
    %v2297 = vsub.f32 %v2009, %v2205
    %v2298 = vsub.f32 %v2014, %v2212
    %v2299 = vsub.f32 %v2017, %v2219
    %v2300 = vsub.f32 %v2022, %v2226
    %v2301 = vsub.f32 %v2025, %v2233
    %v2302 = vsub.f32 %v2030, %v2240
    %v2303 = vsub.f32 %v2033, %v2247
    %v2304 = vsub.f32 %v2038, %v2254
    %v2305 = vsub.f32 %v2041, %v2261
    %v2306 = vsub.f32 %v2046, %v2268
    %v2307 = vsub.f32 %v2049, %v2275
    %v2308 = vmul.f32 %v2276, 1.442695
    %v2309 = vpow.pop %v2308
    %v2310 = vmul.f32 %v2277, 1.442695
    %v2311 = vpow.pop %v2310
    %v2312 = vmul.f32 %v2278, 1.442695
    %v2313 = vpow.pop %v2312
    %v2314 = vmul.f32 %v2279, 1.442695
    %v2315 = vpow.pop %v2314
    %v2316 = vmul.f32 %v2280, 1.442695
    %v2317 = vpow.pop %v2316
    %v2318 = vmul.f32 %v2281, 1.442695
    %v2319 = vpow.pop %v2318
    %v2320 = vmul.f32 %v2282, 1.442695
    %v2321 = vpow.pop %v2320
    %v2322 = vmul.f32 %v2283, 1.442695
    %v2323 = vpow.pop %v2322
    %v2324 = vmul.f32 %v2284, 1.442695
    %v2325 = vpow.pop %v2324
    %v2326 = vmul.f32 %v2285, 1.442695
    %v2327 = vpow.pop %v2326
    %v2328 = vmul.f32 %v2286, 1.442695
    %v2329 = vpow.pop %v2328
    %v2330 = vmul.f32 %v2287, 1.442695
    %v2331 = vpow.pop %v2330
    %v2332 = vmul.f32 %v2288, 1.442695
    %v2333 = vpow.pop %v2332
    %v2334 = vmul.f32 %v2289, 1.442695
    %v2335 = vpow.pop %v2334
    %v2336 = vmul.f32 %v2290, 1.442695
    %v2337 = vpow.pop %v2336
    %v2338 = vmul.f32 %v2291, 1.442695
    %v2339 = vpow.pop %v2338
    %v2340 = vmul.f32 %v2292, 1.442695
    %v2341 = vpow.pop %v2340
    %v2342 = vmul.f32 %v2293, 1.442695
    %v2343 = vpow.pop %v2342
    %v2344 = vmul.f32 %v2294, 1.442695
    %v2345 = vpow.pop %v2344
    %v2346 = vmul.f32 %v2295, 1.442695
    %v2347 = vpow.pop %v2346
    %v2348 = vmul.f32 %v2296, 1.442695
    %v2349 = vpow.pop %v2348
    %v2350 = vmul.f32 %v2297, 1.442695
    %v2351 = vpow.pop %v2350
    %v2352 = vmul.f32 %v2298, 1.442695
    %v2353 = vpow.pop %v2352
    %v2354 = vmul.f32 %v2299, 1.442695
    %v2355 = vpow.pop %v2354
    %v2356 = vmul.f32 %v2300, 1.442695
    %v2357 = vpow.pop %v2356
    %v2358 = vmul.f32 %v2301, 1.442695
    %v2359 = vpow.pop %v2358
    %v2360 = vmul.f32 %v2302, 1.442695
    %v2361 = vpow.pop %v2360
    %v2362 = vmul.f32 %v2303, 1.442695
    %v2363 = vpow.pop %v2362
    %v2364 = vmul.f32 %v2304, 1.442695
    %v2365 = vpow.pop %v2364
    %v2366 = vmul.f32 %v2305, 1.442695
    %v2367 = vpow.pop %v2366
    %v2368 = vmul.f32 %v2306, 1.442695
    %v2369 = vpow.pop %v2368
    %v2370 = vmul.f32 %v2307, 1.442695
    %v2371 = vpow.pop %v2370
    %2404 = vrot.lane.b32.xlu0 %v957, 32
    %v2405 = vpop.permute.xlu0 %2404
    %2406 = vrot.lane.b32.xlu0 %v960, 32
    %v2407 = vpop.permute.xlu0 %2406
    %2408 = vrot.lane.b32.xlu0 %v965, 32
    %v2409 = vpop.permute.xlu0 %2408
    %2410 = vrot.lane.b32.xlu0 %v968, 32
    %v2411 = vpop.permute.xlu0 %2410
    %2412 = vrot.lane.b32.xlu0 %v973, 32
    %v2413 = vpop.permute.xlu0 %2412
    %2414 = vrot.lane.b32.xlu0 %v976, 32
    %v2415 = vpop.permute.xlu0 %2414
    %2416 = vrot.lane.b32.xlu0 %v981, 32
    %v2417 = vpop.permute.xlu0 %2416
    %2418 = vrot.lane.b32.xlu0 %v984, 32
    %v2419 = vpop.permute.xlu0 %2418
    %2420 = vrot.lane.b32.xlu0 %v989, 32
    %v2421 = vpop.permute.xlu0 %2420
    %2422 = vrot.lane.b32.xlu0 %v992, 32
    %v2423 = vpop.permute.xlu0 %2422
    %2424 = vrot.lane.b32.xlu0 %v997, 32
    %v2425 = vpop.permute.xlu0 %2424
    %2426 = vrot.lane.b32.xlu0 %v1000, 32
    %v2427 = vpop.permute.xlu0 %2426
    %2428 = vrot.lane.b32.xlu0 %v1005, 32
    %v2429 = vpop.permute.xlu0 %2428
    %2430 = vrot.lane.b32.xlu0 %v1008, 32
    %v2431 = vpop.permute.xlu0 %2430
    %2432 = vrot.lane.b32.xlu0 %v1013, 32
    %v2433 = vpop.permute.xlu0 %2432
    %2434 = vrot.lane.b32.xlu0 %v1016, 32
    %v2435 = vpop.permute.xlu0 %2434
    %2436 = vrot.lane.b32.xlu0 %v1021, 32
    %v2437 = vpop.permute.xlu0 %2436
    %2438 = vrot.lane.b32.xlu0 %v1024, 32
    %v2439 = vpop.permute.xlu0 %2438
    %2440 = vrot.lane.b32.xlu0 %v1029, 32
    %v2441 = vpop.permute.xlu0 %2440
    %2442 = vrot.lane.b32.xlu0 %v1032, 32
    %v2443 = vpop.permute.xlu0 %2442
    %2444 = vrot.lane.b32.xlu0 %v1037, 32
    %v2445 = vpop.permute.xlu0 %2444
    %2446 = vrot.lane.b32.xlu0 %v1040, 32
    %v2447 = vpop.permute.xlu0 %2446
    %2448 = vrot.lane.b32.xlu0 %v1045, 32
    %v2449 = vpop.permute.xlu0 %2448
    %2450 = vrot.lane.b32.xlu0 %v1048, 32
    %v2451 = vpop.permute.xlu0 %2450
    %2452 = vrot.lane.b32.xlu0 %v1053, 32
    %v2453 = vpop.permute.xlu0 %2452
    %2454 = vrot.lane.b32.xlu0 %v1056, 32
    %v2455 = vpop.permute.xlu0 %2454
    %2456 = vrot.lane.b32.xlu0 %v1061, 32
    %v2457 = vpop.permute.xlu0 %2456
    %2458 = vrot.lane.b32.xlu0 %v1064, 32
    %v2459 = vpop.permute.xlu0 %2458
    %2460 = vrot.lane.b32.xlu0 %v1069, 32
    %v2461 = vpop.permute.xlu0 %2460
    %2462 = vrot.lane.b32.xlu0 %v1072, 32
    %v2463 = vpop.permute.xlu0 %2462
    %2464 = vrot.lane.b32.xlu0 %v1077, 32
    %v2465 = vpop.permute.xlu0 %2464
    %2466 = vrot.lane.b32.xlu0 %v1080, 32
    %v2467 = vpop.permute.xlu0 %2466
    %v2500 = vadd.f32 %v343, %v2405
    %v2501 = vadd.f32 %v346, %v2407
    %v2502 = vadd.f32 %v351, %v2409
    %v2503 = vadd.f32 %v354, %v2411
    %v2504 = vadd.f32 %v359, %v2413
    %v2505 = vadd.f32 %v362, %v2415
    %v2506 = vadd.f32 %v367, %v2417
    %v2507 = vadd.f32 %v370, %v2419
    %v2508 = vadd.f32 %v375, %v2421
    %v2509 = vadd.f32 %v378, %v2423
    %v2510 = vadd.f32 %v383, %v2425
    %v2511 = vadd.f32 %v386, %v2427
    %v2512 = vadd.f32 %v391, %v2429
    %v2513 = vadd.f32 %v394, %v2431
    %v2514 = vadd.f32 %v399, %v2433
    %v2515 = vadd.f32 %v402, %v2435
    %v2516 = vadd.f32 %v407, %v2437
    %v2517 = vadd.f32 %v410, %v2439
    %v2518 = vadd.f32 %v415, %v2441
    %v2519 = vadd.f32 %v418, %v2443
    %v2520 = vadd.f32 %v423, %v2445
    %v2521 = vadd.f32 %v426, %v2447
    %v2522 = vadd.f32 %v431, %v2449
    %v2523 = vadd.f32 %v434, %v2451
    %v2524 = vadd.f32 %v439, %v2453
    %v2525 = vadd.f32 %v442, %v2455
    %v2526 = vadd.f32 %v447, %v2457
    %v2527 = vadd.f32 %v450, %v2459
    %v2528 = vadd.f32 %v455, %v2461
    %v2529 = vadd.f32 %v458, %v2463
    %v2530 = vadd.f32 %v463, %v2465
    %v2531 = vadd.f32 %v466, %v2467
    %2564 = vrot.lane.b32.xlu0 %v2500, 96
    %v2565 = vpop.permute.xlu0 %2564
    %2566 = vrot.lane.b32.xlu0 %v2501, 96
    %v2567 = vpop.permute.xlu0 %2566
    %2568 = vrot.lane.b32.xlu0 %v2502, 96
    %v2569 = vpop.permute.xlu0 %2568
    %2570 = vrot.lane.b32.xlu0 %v2503, 96
    %v2571 = vpop.permute.xlu0 %2570
    %2572 = vrot.lane.b32.xlu0 %v2504, 96
    %v2573 = vpop.permute.xlu0 %2572
    %2574 = vrot.lane.b32.xlu0 %v2505, 96
    %v2575 = vpop.permute.xlu0 %2574
    %2576 = vrot.lane.b32.xlu0 %v2506, 96
    %v2577 = vpop.permute.xlu0 %2576
    %2578 = vrot.lane.b32.xlu0 %v2507, 96
    %v2579 = vpop.permute.xlu0 %2578
    %2580 = vrot.lane.b32.xlu0 %v2508, 96
    %v2581 = vpop.permute.xlu0 %2580
    %2582 = vrot.lane.b32.xlu0 %v2509, 96
    %v2583 = vpop.permute.xlu0 %2582
    %2584 = vrot.lane.b32.xlu0 %v2510, 96
    %v2585 = vpop.permute.xlu0 %2584
    %2586 = vrot.lane.b32.xlu0 %v2511, 96
    %v2587 = vpop.permute.xlu0 %2586
    %2588 = vrot.lane.b32.xlu0 %v2512, 96
    %v2589 = vpop.permute.xlu0 %2588
    %2590 = vrot.lane.b32.xlu0 %v2513, 96
    %v2591 = vpop.permute.xlu0 %2590
    %2592 = vrot.lane.b32.xlu0 %v2514, 96
    %v2593 = vpop.permute.xlu0 %2592
    %2594 = vrot.lane.b32.xlu0 %v2515, 96
    %v2595 = vpop.permute.xlu0 %2594
    %2596 = vrot.lane.b32.xlu0 %v2516, 96
    %v2597 = vpop.permute.xlu0 %2596
    %2598 = vrot.lane.b32.xlu0 %v2517, 96
    %v2599 = vpop.permute.xlu0 %2598
    %2600 = vrot.lane.b32.xlu0 %v2518, 96
    %v2601 = vpop.permute.xlu0 %2600
    %2602 = vrot.lane.b32.xlu0 %v2519, 96
    %v2603 = vpop.permute.xlu0 %2602
    %2604 = vrot.lane.b32.xlu0 %v2520, 96
    %v2605 = vpop.permute.xlu0 %2604
    %2606 = vrot.lane.b32.xlu0 %v2521, 96
    %v2607 = vpop.permute.xlu0 %2606
    %2608 = vrot.lane.b32.xlu0 %v2522, 96
    %v2609 = vpop.permute.xlu0 %2608
    %2610 = vrot.lane.b32.xlu0 %v2523, 96
    %v2611 = vpop.permute.xlu0 %2610
    %2612 = vrot.lane.b32.xlu0 %v2524, 96
    %v2613 = vpop.permute.xlu0 %2612
    %2614 = vrot.lane.b32.xlu0 %v2525, 96
    %v2615 = vpop.permute.xlu0 %2614
    %2616 = vrot.lane.b32.xlu0 %v2526, 96
    %v2617 = vpop.permute.xlu0 %2616
    %2618 = vrot.lane.b32.xlu0 %v2527, 96
    %v2619 = vpop.permute.xlu0 %2618
    %2620 = vrot.lane.b32.xlu0 %v2528, 96
    %v2621 = vpop.permute.xlu0 %2620
    %2622 = vrot.lane.b32.xlu0 %v2529, 96
    %v2623 = vpop.permute.xlu0 %2622
    %2624 = vrot.lane.b32.xlu0 %v2530, 96
    %v2625 = vpop.permute.xlu0 %2624
    %2626 = vrot.lane.b32.xlu0 %v2531, 96
    %v2627 = vpop.permute.xlu0 %2626
    %v2660 = vmul.f32 %v2309, %v2565
    %v2661 = vmul.f32 %v2311, %v2567
    %v2662 = vmul.f32 %v2313, %v2569
    %v2663 = vmul.f32 %v2315, %v2571
    %v2664 = vmul.f32 %v2317, %v2573
    %v2665 = vmul.f32 %v2319, %v2575
    %v2666 = vmul.f32 %v2321, %v2577
    %v2667 = vmul.f32 %v2323, %v2579
    %v2668 = vmul.f32 %v2325, %v2581
    %v2669 = vmul.f32 %v2327, %v2583
    %v2670 = vmul.f32 %v2329, %v2585
    %v2671 = vmul.f32 %v2331, %v2587
    %v2672 = vmul.f32 %v2333, %v2589
    %v2673 = vmul.f32 %v2335, %v2591
    %v2674 = vmul.f32 %v2337, %v2593
    %v2675 = vmul.f32 %v2339, %v2595
    %v2676 = vmul.f32 %v2341, %v2597
    %v2677 = vmul.f32 %v2343, %v2599
    %v2678 = vmul.f32 %v2345, %v2601
    %v2679 = vmul.f32 %v2347, %v2603
    %v2680 = vmul.f32 %v2349, %v2605
    %v2681 = vmul.f32 %v2351, %v2607
    %v2682 = vmul.f32 %v2353, %v2609
    %v2683 = vmul.f32 %v2355, %v2611
    %v2684 = vmul.f32 %v2357, %v2613
    %v2685 = vmul.f32 %v2359, %v2615
    %v2686 = vmul.f32 %v2361, %v2617
    %v2687 = vmul.f32 %v2363, %v2619
    %v2688 = vmul.f32 %v2365, %v2621
    %v2689 = vmul.f32 %v2367, %v2623
    %v2690 = vmul.f32 %v2369, %v2625
    %v2691 = vmul.f32 %v2371, %v2627
    %v2692 = vsel %vm108, %v2660, 0.0
    %v2693 = vrot.slane %v2692, 4
    %v2694 = vadd.f32 %v2692, %v2693
    %v2695 = vrot.slane %v2694, 2
    %v2696 = vadd.f32 %v2694, %v2695
    %v2697 = vrot.slane %v2696, 1
    %v2698 = vadd.f32 %v2696, %v2697
    %v2699 = vsel %vm108, %v2661, 0.0
    %v2700 = vrot.slane %v2699, 4
    %v2701 = vadd.f32 %v2699, %v2700
    %v2702 = vrot.slane %v2701, 2
    %v2703 = vadd.f32 %v2701, %v2702
    %v2704 = vrot.slane %v2703, 1
    %v2705 = vadd.f32 %v2703, %v2704
    %v2706 = vsel %vm108, %v2662, 0.0
    %v2707 = vrot.slane %v2706, 4
    %v2708 = vadd.f32 %v2706, %v2707
    %v2709 = vrot.slane %v2708, 2
    %v2710 = vadd.f32 %v2708, %v2709
    %v2711 = vrot.slane %v2710, 1
    %v2712 = vadd.f32 %v2710, %v2711
    %v2713 = vsel %vm108, %v2663, 0.0
    %v2714 = vrot.slane %v2713, 4
    %v2715 = vadd.f32 %v2713, %v2714
    %v2716 = vrot.slane %v2715, 2
    %v2717 = vadd.f32 %v2715, %v2716
    %v2718 = vrot.slane %v2717, 1
    %v2719 = vadd.f32 %v2717, %v2718
    %v2720 = vsel %vm108, %v2664, 0.0
    %v2721 = vrot.slane %v2720, 4
    %v2722 = vadd.f32 %v2720, %v2721
    %v2723 = vrot.slane %v2722, 2
    %v2724 = vadd.f32 %v2722, %v2723
    %v2725 = vrot.slane %v2724, 1
    %v2726 = vadd.f32 %v2724, %v2725
    %v2727 = vsel %vm108, %v2665, 0.0
    %v2728 = vrot.slane %v2727, 4
    %v2729 = vadd.f32 %v2727, %v2728
    %v2730 = vrot.slane %v2729, 2
    %v2731 = vadd.f32 %v2729, %v2730
    %v2732 = vrot.slane %v2731, 1
    %v2733 = vadd.f32 %v2731, %v2732
    %v2734 = vsel %vm108, %v2666, 0.0
    %v2735 = vrot.slane %v2734, 4
    %v2736 = vadd.f32 %v2734, %v2735
    %v2737 = vrot.slane %v2736, 2
    %v2738 = vadd.f32 %v2736, %v2737
    %v2739 = vrot.slane %v2738, 1
    %v2740 = vadd.f32 %v2738, %v2739
    %v2741 = vsel %vm108, %v2667, 0.0
    %v2742 = vrot.slane %v2741, 4
    %v2743 = vadd.f32 %v2741, %v2742
    %v2744 = vrot.slane %v2743, 2
    %v2745 = vadd.f32 %v2743, %v2744
    %v2746 = vrot.slane %v2745, 1
    %v2747 = vadd.f32 %v2745, %v2746
    %v2748 = vsel %vm108, %v2668, 0.0
    %v2749 = vrot.slane %v2748, 4
    %v2750 = vadd.f32 %v2748, %v2749
    %v2751 = vrot.slane %v2750, 2
    %v2752 = vadd.f32 %v2750, %v2751
    %v2753 = vrot.slane %v2752, 1
    %v2754 = vadd.f32 %v2752, %v2753
    %v2755 = vsel %vm108, %v2669, 0.0
    %v2756 = vrot.slane %v2755, 4
    %v2757 = vadd.f32 %v2755, %v2756
    %v2758 = vrot.slane %v2757, 2
    %v2759 = vadd.f32 %v2757, %v2758
    %v2760 = vrot.slane %v2759, 1
    %v2761 = vadd.f32 %v2759, %v2760
    %v2762 = vsel %vm108, %v2670, 0.0
    %v2763 = vrot.slane %v2762, 4
    %v2764 = vadd.f32 %v2762, %v2763
    %v2765 = vrot.slane %v2764, 2
    %v2766 = vadd.f32 %v2764, %v2765
    %v2767 = vrot.slane %v2766, 1
    %v2768 = vadd.f32 %v2766, %v2767
    %v2769 = vsel %vm108, %v2671, 0.0
    %v2770 = vrot.slane %v2769, 4
    %v2771 = vadd.f32 %v2769, %v2770
    %v2772 = vrot.slane %v2771, 2
    %v2773 = vadd.f32 %v2771, %v2772
    %v2774 = vrot.slane %v2773, 1
    %v2775 = vadd.f32 %v2773, %v2774
    %v2776 = vsel %vm108, %v2672, 0.0
    %v2777 = vrot.slane %v2776, 4
    %v2778 = vadd.f32 %v2776, %v2777
    %v2779 = vrot.slane %v2778, 2
    %v2780 = vadd.f32 %v2778, %v2779
    %v2781 = vrot.slane %v2780, 1
    %v2782 = vadd.f32 %v2780, %v2781
    %v2783 = vsel %vm108, %v2673, 0.0
    %v2784 = vrot.slane %v2783, 4
    %v2785 = vadd.f32 %v2783, %v2784
    %v2786 = vrot.slane %v2785, 2
    %v2787 = vadd.f32 %v2785, %v2786
    %v2788 = vrot.slane %v2787, 1
    %v2789 = vadd.f32 %v2787, %v2788
    %v2790 = vsel %vm108, %v2674, 0.0
    %v2791 = vrot.slane %v2790, 4
    %v2792 = vadd.f32 %v2790, %v2791
    %v2793 = vrot.slane %v2792, 2
    %v2794 = vadd.f32 %v2792, %v2793
    %v2795 = vrot.slane %v2794, 1
    %v2796 = vadd.f32 %v2794, %v2795
    %v2797 = vsel %vm108, %v2675, 0.0
    %v2798 = vrot.slane %v2797, 4
    %v2799 = vadd.f32 %v2797, %v2798
    %v2800 = vrot.slane %v2799, 2
    %v2801 = vadd.f32 %v2799, %v2800
    %v2802 = vrot.slane %v2801, 1
    %v2803 = vadd.f32 %v2801, %v2802
    %v2804 = vsel %vm108, %v2676, 0.0
    %v2805 = vrot.slane %v2804, 4
    %v2806 = vadd.f32 %v2804, %v2805
    %v2807 = vrot.slane %v2806, 2
    %v2808 = vadd.f32 %v2806, %v2807
    %v2809 = vrot.slane %v2808, 1
    %v2810 = vadd.f32 %v2808, %v2809
    %v2811 = vsel %vm108, %v2677, 0.0
    %v2812 = vrot.slane %v2811, 4
    %v2813 = vadd.f32 %v2811, %v2812
    %v2814 = vrot.slane %v2813, 2
    %v2815 = vadd.f32 %v2813, %v2814
    %v2816 = vrot.slane %v2815, 1
    %v2817 = vadd.f32 %v2815, %v2816
    %v2818 = vsel %vm108, %v2678, 0.0
    %v2819 = vrot.slane %v2818, 4
    %v2820 = vadd.f32 %v2818, %v2819
    %v2821 = vrot.slane %v2820, 2
    %v2822 = vadd.f32 %v2820, %v2821
    %v2823 = vrot.slane %v2822, 1
    %v2824 = vadd.f32 %v2822, %v2823
    %v2825 = vsel %vm108, %v2679, 0.0
    %v2826 = vrot.slane %v2825, 4
    %v2827 = vadd.f32 %v2825, %v2826
    %v2828 = vrot.slane %v2827, 2
    %v2829 = vadd.f32 %v2827, %v2828
    %v2830 = vrot.slane %v2829, 1
    %v2831 = vadd.f32 %v2829, %v2830
    %v2832 = vsel %vm108, %v2680, 0.0
    %v2833 = vrot.slane %v2832, 4
    %v2834 = vadd.f32 %v2832, %v2833
    %v2835 = vrot.slane %v2834, 2
    %v2836 = vadd.f32 %v2834, %v2835
    %v2837 = vrot.slane %v2836, 1
    %v2838 = vadd.f32 %v2836, %v2837
    %v2839 = vsel %vm108, %v2681, 0.0
    %v2840 = vrot.slane %v2839, 4
    %v2841 = vadd.f32 %v2839, %v2840
    %v2842 = vrot.slane %v2841, 2
    %v2843 = vadd.f32 %v2841, %v2842
    %v2844 = vrot.slane %v2843, 1
    %v2845 = vadd.f32 %v2843, %v2844
    %v2846 = vsel %vm108, %v2682, 0.0
    %v2847 = vrot.slane %v2846, 4
    %v2848 = vadd.f32 %v2846, %v2847
    %v2849 = vrot.slane %v2848, 2
    %v2850 = vadd.f32 %v2848, %v2849
    %v2851 = vrot.slane %v2850, 1
    %v2852 = vadd.f32 %v2850, %v2851
    %v2853 = vsel %vm108, %v2683, 0.0
    %v2854 = vrot.slane %v2853, 4
    %v2855 = vadd.f32 %v2853, %v2854
    %v2856 = vrot.slane %v2855, 2
    %v2857 = vadd.f32 %v2855, %v2856
    %v2858 = vrot.slane %v2857, 1
    %v2859 = vadd.f32 %v2857, %v2858
    %v2860 = vsel %vm108, %v2684, 0.0
    %v2861 = vrot.slane %v2860, 4
    %v2862 = vadd.f32 %v2860, %v2861
    %v2863 = vrot.slane %v2862, 2
    %v2864 = vadd.f32 %v2862, %v2863
    %v2865 = vrot.slane %v2864, 1
    %v2866 = vadd.f32 %v2864, %v2865
    %v2867 = vsel %vm108, %v2685, 0.0
    %v2868 = vrot.slane %v2867, 4
    %v2869 = vadd.f32 %v2867, %v2868
    %v2870 = vrot.slane %v2869, 2
    %v2871 = vadd.f32 %v2869, %v2870
    %v2872 = vrot.slane %v2871, 1
    %v2873 = vadd.f32 %v2871, %v2872
    %v2874 = vsel %vm108, %v2686, 0.0
    %v2875 = vrot.slane %v2874, 4
    %v2876 = vadd.f32 %v2874, %v2875
    %v2877 = vrot.slane %v2876, 2
    %v2878 = vadd.f32 %v2876, %v2877
    %v2879 = vrot.slane %v2878, 1
    %v2880 = vadd.f32 %v2878, %v2879
    %v2881 = vsel %vm108, %v2687, 0.0
    %v2882 = vrot.slane %v2881, 4
    %v2883 = vadd.f32 %v2881, %v2882
    %v2884 = vrot.slane %v2883, 2
    %v2885 = vadd.f32 %v2883, %v2884
    %v2886 = vrot.slane %v2885, 1
    %v2887 = vadd.f32 %v2885, %v2886
    %v2888 = vsel %vm108, %v2688, 0.0
    %v2889 = vrot.slane %v2888, 4
    %v2890 = vadd.f32 %v2888, %v2889
    %v2891 = vrot.slane %v2890, 2
    %v2892 = vadd.f32 %v2890, %v2891
    %v2893 = vrot.slane %v2892, 1
    %v2894 = vadd.f32 %v2892, %v2893
    %v2895 = vsel %vm108, %v2689, 0.0
    %v2896 = vrot.slane %v2895, 4
    %v2897 = vadd.f32 %v2895, %v2896
    %v2898 = vrot.slane %v2897, 2
    %v2899 = vadd.f32 %v2897, %v2898
    %v2900 = vrot.slane %v2899, 1
    %v2901 = vadd.f32 %v2899, %v2900
    %v2902 = vsel %vm108, %v2690, 0.0
    %v2903 = vrot.slane %v2902, 4
    %v2904 = vadd.f32 %v2902, %v2903
    %v2905 = vrot.slane %v2904, 2
    %v2906 = vadd.f32 %v2904, %v2905
    %v2907 = vrot.slane %v2906, 1
    %v2908 = vadd.f32 %v2906, %v2907
    %v2909 = vsel %vm108, %v2691, 0.0
    %v2910 = vrot.slane %v2909, 4
    %v2911 = vadd.f32 %v2909, %v2910
    %v2912 = vrot.slane %v2911, 2
    %v2913 = vadd.f32 %v2911, %v2912
    %v2914 = vrot.slane %v2913, 1
    %v2915 = vadd.f32 %v2913, %v2914
    %v2916 = vsel %vm108, %v2309, 0.0
    %v2917 = vrot.slane %v2916, 4
    %v2918 = vadd.f32 %v2916, %v2917
    %v2919 = vrot.slane %v2918, 2
    %v2920 = vadd.f32 %v2918, %v2919
    %v2921 = vrot.slane %v2920, 1
    %v2922 = vadd.f32 %v2920, %v2921
    %v2923 = vsel %vm108, %v2311, 0.0
    %v2924 = vrot.slane %v2923, 4
    %v2925 = vadd.f32 %v2923, %v2924
    %v2926 = vrot.slane %v2925, 2
    %v2927 = vadd.f32 %v2925, %v2926
    %v2928 = vrot.slane %v2927, 1
    %v2929 = vadd.f32 %v2927, %v2928
    %v2930 = vsel %vm108, %v2313, 0.0
    %v2931 = vrot.slane %v2930, 4
    %v2932 = vadd.f32 %v2930, %v2931
    %v2933 = vrot.slane %v2932, 2
    %v2934 = vadd.f32 %v2932, %v2933
    %v2935 = vrot.slane %v2934, 1
    %v2936 = vadd.f32 %v2934, %v2935
    %v2937 = vsel %vm108, %v2315, 0.0
    %v2938 = vrot.slane %v2937, 4
    %v2939 = vadd.f32 %v2937, %v2938
    %v2940 = vrot.slane %v2939, 2
    %v2941 = vadd.f32 %v2939, %v2940
    %v2942 = vrot.slane %v2941, 1
    %v2943 = vadd.f32 %v2941, %v2942
    %v2944 = vsel %vm108, %v2317, 0.0
    %v2945 = vrot.slane %v2944, 4
    %v2946 = vadd.f32 %v2944, %v2945
    %v2947 = vrot.slane %v2946, 2
    %v2948 = vadd.f32 %v2946, %v2947
    %v2949 = vrot.slane %v2948, 1
    %v2950 = vadd.f32 %v2948, %v2949
    %v2951 = vsel %vm108, %v2319, 0.0
    %v2952 = vrot.slane %v2951, 4
    %v2953 = vadd.f32 %v2951, %v2952
    %v2954 = vrot.slane %v2953, 2
    %v2955 = vadd.f32 %v2953, %v2954
    %v2956 = vrot.slane %v2955, 1
    %v2957 = vadd.f32 %v2955, %v2956
    %v2958 = vsel %vm108, %v2321, 0.0
    %v2959 = vrot.slane %v2958, 4
    %v2960 = vadd.f32 %v2958, %v2959
    %v2961 = vrot.slane %v2960, 2
    %v2962 = vadd.f32 %v2960, %v2961
    %v2963 = vrot.slane %v2962, 1
    %v2964 = vadd.f32 %v2962, %v2963
    %v2965 = vsel %vm108, %v2323, 0.0
    %v2966 = vrot.slane %v2965, 4
    %v2967 = vadd.f32 %v2965, %v2966
    %v2968 = vrot.slane %v2967, 2
    %v2969 = vadd.f32 %v2967, %v2968
    %v2970 = vrot.slane %v2969, 1
    %v2971 = vadd.f32 %v2969, %v2970
    %v2972 = vsel %vm108, %v2325, 0.0
    %v2973 = vrot.slane %v2972, 4
    %v2974 = vadd.f32 %v2972, %v2973
    %v2975 = vrot.slane %v2974, 2
    %v2976 = vadd.f32 %v2974, %v2975
    %v2977 = vrot.slane %v2976, 1
    %v2978 = vadd.f32 %v2976, %v2977
    %v2979 = vsel %vm108, %v2327, 0.0
    %v2980 = vrot.slane %v2979, 4
    %v2981 = vadd.f32 %v2979, %v2980
    %v2982 = vrot.slane %v2981, 2
    %v2983 = vadd.f32 %v2981, %v2982
    %v2984 = vrot.slane %v2983, 1
    %v2985 = vadd.f32 %v2983, %v2984
    %v2986 = vsel %vm108, %v2329, 0.0
    %v2987 = vrot.slane %v2986, 4
    %v2988 = vadd.f32 %v2986, %v2987
    %v2989 = vrot.slane %v2988, 2
    %v2990 = vadd.f32 %v2988, %v2989
    %v2991 = vrot.slane %v2990, 1
    %v2992 = vadd.f32 %v2990, %v2991
    %v2993 = vsel %vm108, %v2331, 0.0
    %v2994 = vrot.slane %v2993, 4
    %v2995 = vadd.f32 %v2993, %v2994
    %v2996 = vrot.slane %v2995, 2
    %v2997 = vadd.f32 %v2995, %v2996
    %v2998 = vrot.slane %v2997, 1
    %v2999 = vadd.f32 %v2997, %v2998
    %v3000 = vsel %vm108, %v2333, 0.0
    %v3001 = vrot.slane %v3000, 4
    %v3002 = vadd.f32 %v3000, %v3001
    %v3003 = vrot.slane %v3002, 2
    %v3004 = vadd.f32 %v3002, %v3003
    %v3005 = vrot.slane %v3004, 1
    %v3006 = vadd.f32 %v3004, %v3005
    %v3007 = vsel %vm108, %v2335, 0.0
    %v3008 = vrot.slane %v3007, 4
    %v3009 = vadd.f32 %v3007, %v3008
    %v3010 = vrot.slane %v3009, 2
    %v3011 = vadd.f32 %v3009, %v3010
    %v3012 = vrot.slane %v3011, 1
    %v3013 = vadd.f32 %v3011, %v3012
    %v3014 = vsel %vm108, %v2337, 0.0
    %v3015 = vrot.slane %v3014, 4
    %v3016 = vadd.f32 %v3014, %v3015
    %v3017 = vrot.slane %v3016, 2
    %v3018 = vadd.f32 %v3016, %v3017
    %v3019 = vrot.slane %v3018, 1
    %v3020 = vadd.f32 %v3018, %v3019
    %v3021 = vsel %vm108, %v2339, 0.0
    %v3022 = vrot.slane %v3021, 4
    %v3023 = vadd.f32 %v3021, %v3022
    %v3024 = vrot.slane %v3023, 2
    %v3025 = vadd.f32 %v3023, %v3024
    %v3026 = vrot.slane %v3025, 1
    %v3027 = vadd.f32 %v3025, %v3026
    %v3028 = vsel %vm108, %v2341, 0.0
    %v3029 = vrot.slane %v3028, 4
    %v3030 = vadd.f32 %v3028, %v3029
    %v3031 = vrot.slane %v3030, 2
    %v3032 = vadd.f32 %v3030, %v3031
    %v3033 = vrot.slane %v3032, 1
    %v3034 = vadd.f32 %v3032, %v3033
    %v3035 = vsel %vm108, %v2343, 0.0
    %v3036 = vrot.slane %v3035, 4
    %v3037 = vadd.f32 %v3035, %v3036
    %v3038 = vrot.slane %v3037, 2
    %v3039 = vadd.f32 %v3037, %v3038
    %v3040 = vrot.slane %v3039, 1
    %v3041 = vadd.f32 %v3039, %v3040
    %v3042 = vsel %vm108, %v2345, 0.0
    %v3043 = vrot.slane %v3042, 4
    %v3044 = vadd.f32 %v3042, %v3043
    %v3045 = vrot.slane %v3044, 2
    %v3046 = vadd.f32 %v3044, %v3045
    %v3047 = vrot.slane %v3046, 1
    %v3048 = vadd.f32 %v3046, %v3047
    %v3049 = vsel %vm108, %v2347, 0.0
    %v3050 = vrot.slane %v3049, 4
    %v3051 = vadd.f32 %v3049, %v3050
    %v3052 = vrot.slane %v3051, 2
    %v3053 = vadd.f32 %v3051, %v3052
    %v3054 = vrot.slane %v3053, 1
    %v3055 = vadd.f32 %v3053, %v3054
    %v3056 = vsel %vm108, %v2349, 0.0
    %v3057 = vrot.slane %v3056, 4
    %v3058 = vadd.f32 %v3056, %v3057
    %v3059 = vrot.slane %v3058, 2
    %v3060 = vadd.f32 %v3058, %v3059
    %v3061 = vrot.slane %v3060, 1
    %v3062 = vadd.f32 %v3060, %v3061
    %v3063 = vsel %vm108, %v2351, 0.0
    %v3064 = vrot.slane %v3063, 4
    %v3065 = vadd.f32 %v3063, %v3064
    %v3066 = vrot.slane %v3065, 2
    %v3067 = vadd.f32 %v3065, %v3066
    %v3068 = vrot.slane %v3067, 1
    %v3069 = vadd.f32 %v3067, %v3068
    %v3070 = vsel %vm108, %v2353, 0.0
    %v3071 = vrot.slane %v3070, 4
    %v3072 = vadd.f32 %v3070, %v3071
    %v3073 = vrot.slane %v3072, 2
    %v3074 = vadd.f32 %v3072, %v3073
    %v3075 = vrot.slane %v3074, 1
    %v3076 = vadd.f32 %v3074, %v3075
    %v3077 = vsel %vm108, %v2355, 0.0
    %v3078 = vrot.slane %v3077, 4
    %v3079 = vadd.f32 %v3077, %v3078
    %v3080 = vrot.slane %v3079, 2
    %v3081 = vadd.f32 %v3079, %v3080
    %v3082 = vrot.slane %v3081, 1
    %v3083 = vadd.f32 %v3081, %v3082
    %v3084 = vsel %vm108, %v2357, 0.0
    %v3085 = vrot.slane %v3084, 4
    %v3086 = vadd.f32 %v3084, %v3085
    %v3087 = vrot.slane %v3086, 2
    %v3088 = vadd.f32 %v3086, %v3087
    %v3089 = vrot.slane %v3088, 1
    %v3090 = vadd.f32 %v3088, %v3089
    %v3091 = vsel %vm108, %v2359, 0.0
    %v3092 = vrot.slane %v3091, 4
    %v3093 = vadd.f32 %v3091, %v3092
    %v3094 = vrot.slane %v3093, 2
    %v3095 = vadd.f32 %v3093, %v3094
    %v3096 = vrot.slane %v3095, 1
    %v3097 = vadd.f32 %v3095, %v3096
    %v3098 = vsel %vm108, %v2361, 0.0
    %v3099 = vrot.slane %v3098, 4
    %v3100 = vadd.f32 %v3098, %v3099
    %v3101 = vrot.slane %v3100, 2
    %v3102 = vadd.f32 %v3100, %v3101
    %v3103 = vrot.slane %v3102, 1
    %v3104 = vadd.f32 %v3102, %v3103
    %v3105 = vsel %vm108, %v2363, 0.0
    %v3106 = vrot.slane %v3105, 4
    %v3107 = vadd.f32 %v3105, %v3106
    %v3108 = vrot.slane %v3107, 2
    %v3109 = vadd.f32 %v3107, %v3108
    %v3110 = vrot.slane %v3109, 1
    %v3111 = vadd.f32 %v3109, %v3110
    %v3112 = vsel %vm108, %v2365, 0.0
    %v3113 = vrot.slane %v3112, 4
    %v3114 = vadd.f32 %v3112, %v3113
    %v3115 = vrot.slane %v3114, 2
    %v3116 = vadd.f32 %v3114, %v3115
    %v3117 = vrot.slane %v3116, 1
    %v3118 = vadd.f32 %v3116, %v3117
    %v3119 = vsel %vm108, %v2367, 0.0
    %v3120 = vrot.slane %v3119, 4
    %v3121 = vadd.f32 %v3119, %v3120
    %v3122 = vrot.slane %v3121, 2
    %v3123 = vadd.f32 %v3121, %v3122
    %v3124 = vrot.slane %v3123, 1
    %v3125 = vadd.f32 %v3123, %v3124
    %v3126 = vsel %vm108, %v2369, 0.0
    %v3127 = vrot.slane %v3126, 4
    %v3128 = vadd.f32 %v3126, %v3127
    %v3129 = vrot.slane %v3128, 2
    %v3130 = vadd.f32 %v3128, %v3129
    %v3131 = vrot.slane %v3130, 1
    %v3132 = vadd.f32 %v3130, %v3131
    %v3133 = vsel %vm108, %v2371, 0.0
    %v3134 = vrot.slane %v3133, 4
    %v3135 = vadd.f32 %v3133, %v3134
    %v3136 = vrot.slane %v3135, 2
    %v3137 = vadd.f32 %v3135, %v3136
    %v3138 = vrot.slane %v3137, 1
    %v3139 = vadd.f32 %v3137, %v3138
    %v3140 = vrcp.pop %v2922
    %v3141 = vrcp.pop %v2929
    %v3142 = vrcp.pop %v2936
    %v3143 = vrcp.pop %v2943
    %v3144 = vrcp.pop %v2950
    %v3145 = vrcp.pop %v2957
    %v3146 = vrcp.pop %v2964
    %v3147 = vrcp.pop %v2971
    %v3148 = vrcp.pop %v2978
    %v3149 = vrcp.pop %v2985
    %v3150 = vrcp.pop %v2992
    %v3151 = vrcp.pop %v2999
    %v3152 = vrcp.pop %v3006
    %v3153 = vrcp.pop %v3013
    %v3154 = vrcp.pop %v3020
    %v3155 = vrcp.pop %v3027
    %v3156 = vrcp.pop %v3034
    %v3157 = vrcp.pop %v3041
    %v3158 = vrcp.pop %v3048
    %v3159 = vrcp.pop %v3055
    %v3160 = vrcp.pop %v3062
    %v3161 = vrcp.pop %v3069
    %v3162 = vrcp.pop %v3076
    %v3163 = vrcp.pop %v3083
    %v3164 = vrcp.pop %v3090
    %v3165 = vrcp.pop %v3097
    %v3166 = vrcp.pop %v3104
    %v3167 = vrcp.pop %v3111
    %v3168 = vrcp.pop %v3118
    %v3169 = vrcp.pop %v3125
    %v3170 = vrcp.pop %v3132
    %v3171 = vrcp.pop %v3139
    %v3172 = vmul.f32 %v2698, %v3140
    %v3173 = vmul.f32 %v2705, %v3141
    %v3174 = vmul.f32 %v2712, %v3142
    %v3175 = vmul.f32 %v2719, %v3143
    %v3176 = vmul.f32 %v2726, %v3144
    %v3177 = vmul.f32 %v2733, %v3145
    %v3178 = vmul.f32 %v2740, %v3146
    %v3179 = vmul.f32 %v2747, %v3147
    %v3180 = vmul.f32 %v2754, %v3148
    %v3181 = vmul.f32 %v2761, %v3149
    %v3182 = vmul.f32 %v2768, %v3150
    %v3183 = vmul.f32 %v2775, %v3151
    %v3184 = vmul.f32 %v2782, %v3152
    %v3185 = vmul.f32 %v2789, %v3153
    %v3186 = vmul.f32 %v2796, %v3154
    %v3187 = vmul.f32 %v2803, %v3155
    %v3188 = vmul.f32 %v2810, %v3156
    %v3189 = vmul.f32 %v2817, %v3157
    %v3190 = vmul.f32 %v2824, %v3158
    %v3191 = vmul.f32 %v2831, %v3159
    %v3192 = vmul.f32 %v2838, %v3160
    %v3193 = vmul.f32 %v2845, %v3161
    %v3194 = vmul.f32 %v2852, %v3162
    %v3195 = vmul.f32 %v2859, %v3163
    %v3196 = vmul.f32 %v2866, %v3164
    %v3197 = vmul.f32 %v2873, %v3165
    %v3198 = vmul.f32 %v2880, %v3166
    %v3199 = vmul.f32 %v2887, %v3167
    %v3200 = vmul.f32 %v2894, %v3168
    %v3201 = vmul.f32 %v2901, %v3169
    %v3202 = vmul.f32 %v2908, %v3170
    %v3203 = vmul.f32 %v2915, %v3171
    %v3204 = vpack.c.bf16 %v3172, %v3172
    %v3205 = vpack.c.bf16 %v3173, %v3173
    %v3206 = vpack.c.bf16 %v3174, %v3174
    %v3207 = vpack.c.bf16 %v3175, %v3175
    %v3208 = vpack.c.bf16 %v3176, %v3176
    %v3209 = vpack.c.bf16 %v3177, %v3177
    %v3210 = vpack.c.bf16 %v3178, %v3178
    %v3211 = vpack.c.bf16 %v3179, %v3179
    %v3212 = vpack.c.bf16 %v3180, %v3180
    %v3213 = vpack.c.bf16 %v3181, %v3181
    %v3214 = vpack.c.bf16 %v3182, %v3182
    %v3215 = vpack.c.bf16 %v3183, %v3183
    %v3216 = vpack.c.bf16 %v3184, %v3184
    %v3217 = vpack.c.bf16 %v3185, %v3185
    %v3218 = vpack.c.bf16 %v3186, %v3186
    %v3219 = vpack.c.bf16 %v3187, %v3187
    %v3220 = vpack.c.bf16 %v3188, %v3188
    %v3221 = vpack.c.bf16 %v3189, %v3189
    %v3222 = vpack.c.bf16 %v3190, %v3190
    %v3223 = vpack.c.bf16 %v3191, %v3191
    %v3224 = vpack.c.bf16 %v3192, %v3192
    %v3225 = vpack.c.bf16 %v3193, %v3193
    %v3226 = vpack.c.bf16 %v3194, %v3194
    %v3227 = vpack.c.bf16 %v3195, %v3195
    %v3228 = vpack.c.bf16 %v3196, %v3196
    %v3229 = vpack.c.bf16 %v3197, %v3197
    %v3230 = vpack.c.bf16 %v3198, %v3198
    %v3231 = vpack.c.bf16 %v3199, %v3199
    %v3232 = vpack.c.bf16 %v3200, %v3200
    %v3233 = vpack.c.bf16 %v3201, %v3201
    %v3234 = vpack.c.bf16 %v3202, %v3202
    %v3235 = vpack.c.bf16 %v3203, %v3203
    %v3268 = vunpack.c.l.b16 %v3204
    %v3269 = vunpack.c.l.b16 %v3205
    %v3270 = vunpack.c.l.b16 %v3206
    %v3271 = vunpack.c.l.b16 %v3207
    %v3272 = vunpack.c.l.b16 %v3208
    %v3273 = vunpack.c.l.b16 %v3209
    %v3274 = vunpack.c.l.b16 %v3210
    %v3275 = vunpack.c.l.b16 %v3211
    %v3276 = vunpack.c.l.b16 %v3212
    %v3277 = vunpack.c.l.b16 %v3213
    %v3278 = vunpack.c.l.b16 %v3214
    %v3279 = vunpack.c.l.b16 %v3215
    %v3280 = vunpack.c.l.b16 %v3216
    %v3281 = vunpack.c.l.b16 %v3217
    %v3282 = vunpack.c.l.b16 %v3218
    %v3283 = vunpack.c.l.b16 %v3219
    %v3284 = vunpack.c.l.b16 %v3220
    %v3285 = vunpack.c.l.b16 %v3221
    %v3286 = vunpack.c.l.b16 %v3222
    %v3287 = vunpack.c.l.b16 %v3223
    %v3288 = vunpack.c.l.b16 %v3224
    %v3289 = vunpack.c.l.b16 %v3225
    %v3290 = vunpack.c.l.b16 %v3226
    %v3291 = vunpack.c.l.b16 %v3227
    %v3292 = vunpack.c.l.b16 %v3228
    %v3293 = vunpack.c.l.b16 %v3229
    %v3294 = vunpack.c.l.b16 %v3230
    %v3295 = vunpack.c.l.b16 %v3231
    %v3296 = vunpack.c.l.b16 %v3232
    %v3297 = vunpack.c.l.b16 %v3233
    %v3298 = vunpack.c.l.b16 %v3234
    %v3299 = vunpack.c.l.b16 %v3235
    %v3300 = vpack.c.b16 %v3268, %v3268
    %v3301 = vpack.c.b16 %v3269, %v3269
    %v3302 = vpack.c.b16 %v3270, %v3270
    %v3303 = vpack.c.b16 %v3271, %v3271
    %v3304 = vpack.c.b16 %v3272, %v3272
    %v3305 = vpack.c.b16 %v3273, %v3273
    %v3306 = vpack.c.b16 %v3274, %v3274
    %v3307 = vpack.c.b16 %v3275, %v3275
    %v3308 = vpack.c.b16 %v3276, %v3276
    %v3309 = vpack.c.b16 %v3277, %v3277
    %v3310 = vpack.c.b16 %v3278, %v3278
    %v3311 = vpack.c.b16 %v3279, %v3279
    %v3312 = vpack.c.b16 %v3280, %v3280
    %v3313 = vpack.c.b16 %v3281, %v3281
    %v3314 = vpack.c.b16 %v3282, %v3282
    %v3315 = vpack.c.b16 %v3283, %v3283
    %v3316 = vpack.c.b16 %v3284, %v3284
    %v3317 = vpack.c.b16 %v3285, %v3285
    %v3318 = vpack.c.b16 %v3286, %v3286
    %v3319 = vpack.c.b16 %v3287, %v3287
    %v3320 = vpack.c.b16 %v3288, %v3288
    %v3321 = vpack.c.b16 %v3289, %v3289
    %v3322 = vpack.c.b16 %v3290, %v3290
    %v3323 = vpack.c.b16 %v3291, %v3291
    %v3324 = vpack.c.b16 %v3292, %v3292
    %v3325 = vpack.c.b16 %v3293, %v3293
    %v3326 = vpack.c.b16 %v3294, %v3294
    %v3327 = vpack.c.b16 %v3295, %v3295
    %v3328 = vpack.c.b16 %v3296, %v3296
    %v3329 = vpack.c.b16 %v3297, %v3297
    %v3330 = vpack.c.b16 %v3298, %v3298
    %v3331 = vpack.c.b16 %v3299, %v3299
    %v3332 = vunpack.c.l.b16 %v3300
    %v3333 = vunpack.c.l.b16 %v3301
    %v3334 = vunpack.c.l.b16 %v3302
    %v3335 = vunpack.c.l.b16 %v3303
    %v3336 = vunpack.c.l.b16 %v3304
    %v3337 = vunpack.c.l.b16 %v3305
    %v3338 = vunpack.c.l.b16 %v3306
    %v3339 = vunpack.c.l.b16 %v3307
    %v3340 = vunpack.c.l.b16 %v3308
    %v3341 = vunpack.c.l.b16 %v3309
    %v3342 = vunpack.c.l.b16 %v3310
    %v3343 = vunpack.c.l.b16 %v3311
    %v3344 = vunpack.c.l.b16 %v3312
    %v3345 = vunpack.c.l.b16 %v3313
    %v3346 = vunpack.c.l.b16 %v3314
    %v3347 = vunpack.c.l.b16 %v3315
    %v3348 = vunpack.c.l.b16 %v3316
    %v3349 = vunpack.c.l.b16 %v3317
    %v3350 = vunpack.c.l.b16 %v3318
    %v3351 = vunpack.c.l.b16 %v3319
    %v3352 = vunpack.c.l.b16 %v3320
    %v3353 = vunpack.c.l.b16 %v3321
    %v3354 = vunpack.c.l.b16 %v3322
    %v3355 = vunpack.c.l.b16 %v3323
    %v3356 = vunpack.c.l.b16 %v3324
    %v3357 = vunpack.c.l.b16 %v3325
    %v3358 = vunpack.c.l.b16 %v3326
    %v3359 = vunpack.c.l.b16 %v3327
    %v3360 = vunpack.c.l.b16 %v3328
    %v3361 = vunpack.c.l.b16 %v3329
    %v3362 = vunpack.c.l.b16 %v3330
    %v3363 = vunpack.c.l.b16 %v3331
    %vm3364 = vcmask 1041409
    %v3365 = vsel %vm3364, %v3333, %v3332
    %vm3366 = vcmask 1042434
    %v3367 = vsel %vm3366, %v3334, %v3365
    %vm3368 = vcmask 1043459
    %v3369 = vsel %vm3368, %v3335, %v3367
    %vm3370 = vcmask 1044484
    %v3371 = vsel %vm3370, %v3336, %v3369
    %vm3372 = vcmask 1045509
    %v3373 = vsel %vm3372, %v3337, %v3371
    %vm3374 = vcmask 1046534
    %v3375 = vsel %vm3374, %v3338, %v3373
    %vm3376 = vcmask 1047559
    %v3377 = vsel %vm3376, %v3339, %v3375
    %v3378 = vsel %vm3364, %v3341, %v3340
    %v3379 = vsel %vm3366, %v3342, %v3378
    %v3380 = vsel %vm3368, %v3343, %v3379
    %v3381 = vsel %vm3370, %v3344, %v3380
    %v3382 = vsel %vm3372, %v3345, %v3381
    %v3383 = vsel %vm3374, %v3346, %v3382
    %v3384 = vsel %vm3376, %v3347, %v3383
    %v3385 = vsel %vm3364, %v3349, %v3348
    %v3386 = vsel %vm3366, %v3350, %v3385
    %v3387 = vsel %vm3368, %v3351, %v3386
    %v3388 = vsel %vm3370, %v3352, %v3387
    %v3389 = vsel %vm3372, %v3353, %v3388
    %v3390 = vsel %vm3374, %v3354, %v3389
    %v3391 = vsel %vm3376, %v3355, %v3390
    %v3392 = vsel %vm3364, %v3357, %v3356
    %v3393 = vsel %vm3366, %v3358, %v3392
    %v3394 = vsel %vm3368, %v3359, %v3393
    %v3395 = vsel %vm3370, %v3360, %v3394
    %v3396 = vsel %vm3372, %v3361, %v3395
    %v3397 = vsel %vm3374, %v3362, %v3396
    %v3398 = vsel %vm3376, %v3363, %v3397
    %v3399 = vpack.c.b16 %v3377, %v3377
    %v3400 = vpack.c.b16 %v3384, %v3384
    %v3401 = vpack.c.b16 %v3391, %v3391
    %v3402 = vpack.c.b16 %v3398, %v3398
    %vm3407 = vcmask 257024
    %3408 = vst.msk [vmem:[#allocation2] sm:$0xf] %vm3407, %v3399
    %3409 = vst.msk [vmem:[#allocation2 + $0x4] sm:$0xf] %vm3407, %v3400
    %3410 = vst.msk [vmem:[#allocation2 + $0x8] sm:$0xf] %vm3407, %v3401
    %3411 = vst.msk [vmem:[#allocation2 + $0xc] sm:$0xf] %vm3407, %v3402
    // Predicated region
    $region54: #{tpu_custom_call.1} parent=1 // pred_check
      _
    $region55: #{tpu_custom_call.1} parent=1 // pred_check_branch
      %3413 = sbr.rel (0) target = $region57
    $region56: #{tpu_custom_call.1} parent=1 // pred_region
      %s3415 = ssub.s32 256, 256
      %3416 = vsyncadd [#allocation3], %s3415
      %s3417 = sshll.u32 [#allocation2], 4
      %s3418 = int_to_ptr.vmem [resolvable:$true] %s3417
      %3423 = dma.vmem_to_hbm [thread:$0]  %s3418, 256, %s13, [#allocation3], 64, 64, 4
    $region57: #{tpu_custom_call.1} parent=1 // pred_fallthru
      _
    // Predicated region
    $region58: #{tpu_custom_call.1} parent=1 // pred_check
      _
    $region59: #{tpu_custom_call.1} parent=1 // pred_check_branch
      %3425 = sbr.rel (0) target = $region61
    $region60: #{tpu_custom_call.1} parent=1 // pred_region
      %3426 = dma.done [#allocation3], 256
    $region61: #{tpu_custom_call.1} parent=1 // pred_fallthru
      _
    %3427 = vsyncpa [#allocation3], 1

</llo_original>
